<compile_context>
chip_gen: v7x
topology: tpu7x:2x2x1
jax: 0.10.0
libtpu: 0.0.40
codegen_flags: <defaults>
</compile_context>

<pallas_src>
import jax
import jax.numpy as jnp
from jax.experimental import pallas as pl
from jax.experimental.pallas import tpu as pltpu


def _round_up(n, m):
    return (n + m - 1) // m * m


def _pad_to(x, size, axis):
    pad = size - x.shape[axis]
    if pad <= 0:
        return x
    widths = [(0, 0)] * x.ndim
    widths[axis] = (0, pad)
    return jnp.pad(x, widths)


# ---------------------------------------------------------------------------
# Pallas kernels
# ---------------------------------------------------------------------------
def _conv_pool_relu_kernel(x_ref, w_ref, b_ref, o_ref):
    """Fused conv (one merged matmul) + 2x2 max-pool + ReLU for a batch block.

    x_ref : (bb, 4, Ppad, K)  im2col patches; group g = di*2+dj holds the conv
                              windows whose output pixel is (2*ph+di, 2*pw+dj).
    w_ref : (K, C)            (kh, kw, InC)-flattened conv weights.
    b_ref : (1, C)            bias (float32).
    o_ref : (bb, Ppad, C)     pooled + ReLU'd activations.
    """
    bb, G, P, K = x_ref.shape
    C = w_ref.shape[1]
    # Ppad % 8 == 0, so collapsing the leading dims into the sublane dim is a
    # free reshape -- one big MXU matmul instead of four small ones.
    x = x_ref[...].reshape(bb * G * P, K)
    y = jnp.dot(x, w_ref[...], preferred_element_type=jnp.float32)
    y = y.reshape(bb, G, P, C)
    y = jnp.max(y, axis=1)                       # 2x2 max-pool on the VPU
    # bias is per-channel constant and ReLU is monotone, so adding/activating
    # after the max equals MaxPool2d(2) -> ReLU applied to conv(x) + bias.
    o_ref[...] = jnp.maximum(y + b_ref[...], 0.0)


def _head_kernel(x_ref, w3_ref, b3_ref, w4_ref, b4_ref, w5_ref, b5_ref, o_ref):
    """conv3 (5x5 conv on an exactly-5x5 input == matmul) + ReLU + fc1 + ReLU + fc2."""
    h = jnp.dot(x_ref[...], w3_ref[...], preferred_element_type=jnp.float32)
    h = jnp.maximum(h + b3_ref[...], 0.0)        # C5: Conv2d(16, 120, 5) + ReLU
    h = jnp.dot(h.astype(w4_ref.dtype), w4_ref[...],
                preferred_element_type=jnp.float32)
    h = jnp.maximum(h + b4_ref[...], 0.0)        # F6: Linear(120, 84) + ReLU
    h = jnp.dot(h.astype(w5_ref.dtype), w5_ref[...],
                preferred_element_type=jnp.float32)
    o_ref[...] = h + b5_ref[...]                 # Output: Linear(84, num_classes)


# ---------------------------------------------------------------------------
# Wrappers (thin JAX glue around the kernels)
# ---------------------------------------------------------------------------
def _pool_grouped_patches(x, kh, kw):
    """im2col with kh*kw full-channel slices, rows grouped by 2x2-pool tap.

    x: (B, H, W, C) -> (B, 4, Ppad, kh*kw*C), P = ((H-kh+1)//2)*((W-kw+1)//2)
    and Ppad = round_up(P, 8) (zero rows).  Patch columns are ordered
    (kh, kw, C), matching the conv weights transposed to (kh, kw, InC, OutC).
    """
    B, H, W, C = x.shape
    oh_c, ow_c = H - kh + 1, W - kw + 1          # conv output spatial dims
    oh_p, ow_p = oh_c // 2, ow_c // 2            # pooled output spatial dims
    slabs = [x[:, di:di + oh_c, dj:dj + ow_c, :]
             for di in range(kh) for dj in range(kw)]      # kh*kw slices
    patches = jnp.concatenate(slabs, axis=-1)              # (B, oh_c, ow_c, K)
    K = kh * kw * C
    patches = patches.reshape(B, oh_p, 2, ow_p, 2, K)      # (b, ph, di, pw, dj, K)
    patches = patches.transpose(0, 2, 4, 1, 3, 5)          # (b, di, dj, ph, pw, K)
    patches = patches.reshape(B, 4, oh_p * ow_p, K)
    patches = _pad_to(patches, _round_up(oh_p * ow_p, 8), axis=2)  # sublane pad
    return patches, (oh_p, ow_p)


def conv_pool_relu(x, w_flat, b_row, *, kh=5, kw=5, block_b=8):
    """Valid kxk conv (stride 1) + 2x2/2 max-pool + ReLU in one Pallas kernel.

    x:      (B, H, W, Cin) NHWC float32.
    w_flat: (kh*kw*Cin, Cout) pre-flattened weights (f32 or bf16).
    b_row:  (1, Cout) float32 bias.
    Returns (B, OH, OW, Cout) float32.
    """
    B = x.shape[0]
    patches, (oh_p, ow_p) = _pool_grouped_patches(x, kh, kw)
    patches = patches.astype(w_flat.dtype)        # bf16 operands if requested
    _, G, Pp, K = patches.shape
    C = w_flat.shape[1]
    bb = min(block_b, B)                          # bb == B or a multiple of 8
    out = pl.pallas_call(
        _conv_pool_relu_kernel,
        out_shape=jax.ShapeDtypeStruct((B, Pp, C), jnp.float32),
        grid=(pl.cdiv(B, bb),),
        in_specs=[
            pl.BlockSpec((bb, G, Pp, K), lambda i: (i, 0, 0, 0)),
            pl.BlockSpec((K, C), lambda i: (0, 0)),      # resident weights
            pl.BlockSpec((1, C), lambda i: (0, 0)),      # resident bias
        ],
        out_specs=pl.BlockSpec((bb, Pp, C), lambda i: (i, 0, 0)),
        compiler_params=pltpu.CompilerParams(
            dimension_semantics=("parallel",),
            vmem_limit_bytes=32 * 1024 * 1024),
    )(patches, w_flat, b_row)
    P = oh_p * ow_p
    return out[:, :P, :].reshape(B, oh_p, ow_p, C)        # drop padded rows


def head(x_flat, w3, b3, w4, b4, w5, b5, *, block_m=512):
    """Fused conv3 + ReLU + fc1 + ReLU + fc2.  x_flat: (B, 400) float32."""
    x_flat = x_flat.astype(w3.dtype)
    B, K = x_flat.shape
    nc = w5.shape[1]
    bm = min(block_m, B)                          # bm == B or a multiple of 8
    return pl.pallas_call(
        _head_kernel,
        out_shape=jax.ShapeDtypeStruct((B, nc), jnp.float32),
        grid=(pl.cdiv(B, bm),),
        in_specs=[pl.BlockSpec((bm, K), lambda i: (i, 0))]
                 + [pl.BlockSpec(p.shape, lambda i: (0, 0))
                    for p in (w3, b3, w4, b4, w5, b5)],
        out_specs=pl.BlockSpec((bm, nc), lambda i: (i, 0)),
        compiler_params=pltpu.CompilerParams(
            dimension_semantics=("parallel",),
            vmem_limit_bytes=32 * 1024 * 1024),
    )(x_flat, w3, b3, w4, b4, w5, b5)


# ---------------------------------------------------------------------------
# LeNet parameters & forward
# ---------------------------------------------------------------------------
def init_params(key, num_classes=10):
    """PyTorch-layout LeNet parameters (Conv2d / Linear default-style init)."""
    keys = jax.random.split(key, 10)

    def winit(k, shape, fan_in):
        bound = 1.0 / (fan_in ** 0.5)
        return jax.random.uniform(k, shape, jnp.float32, -bound, bound)

    return {
        "conv1_w": winit(keys[0], (6, 1, 5, 5), 1 * 25),
        "conv1_b": winit(keys[1], (6,), 1 * 25),
        "conv2_w": winit(keys[2], (16, 6, 5, 5), 6 * 25),
        "conv2_b": winit(keys[3], (16,), 6 * 25),
        "conv3_w": winit(keys[4], (120, 16, 5, 5), 16 * 25),
        "conv3_b": winit(keys[5], (120,), 16 * 25),
        "fc1_w":   winit(keys[6], (84, 120), 120),
        "fc1_b":   winit(keys[7], (84,), 120),
        "fc2_w":   winit(keys[8], (num_classes, 84), 84),
        "fc2_b":   winit(keys[9], (num_classes,), 84),
    }


def prepare_params(p, matmul_dtype=jnp.float32):
    """One-time repack of PyTorch-layout weights into the kernel-facing layout.

    Conv weights: (OutC, InC, kh, kw) -> (kh*kw*InC, OutC); FC weights
    transposed to (InF, OutF).  No zero-padding (keeps HBM traffic minimal).
    Pass matmul_dtype=jnp.bfloat16 for bf16 matmul operands (f32 accumulate);
    biases always stay float32.
    """
    def conv_w(w):
        out_c, in_c, kh, kw = w.shape
        return (jnp.transpose(w, (2, 3, 1, 0))
                .reshape(kh * kw * in_c, out_c).astype(matmul_dtype))

    def fc_w(w):
        return w.T.astype(matmul_dtype)

    def bias(b):
        return b.reshape(1, -1).astype(jnp.float32)

    return {
        "conv1_w": conv_w(p["conv1_w"]), "conv1_b": bias(p["conv1_b"]),
        "conv2_w": conv_w(p["conv2_w"]), "conv2_b": bias(p["conv2_b"]),
        "conv3_w": conv_w(p["conv3_w"]), "conv3_b": bias(p["conv3_b"]),
        "fc1_w":   fc_w(p["fc1_w"]),     "fc1_b":   bias(p["fc1_b"]),
        "fc2_w":   fc_w(p["fc2_w"]),     "fc2_b":   bias(p["fc2_b"]),
    }


def lenet_forward(params, x_nchw, *, block_b=8, block_m=512):
    """x_nchw: (B, 1, 32, 32) float32 (NCHW, like PyTorch) -> (B, num_classes)."""
    x = jnp.transpose(x_nchw, (0, 2, 3, 1))                      # NCHW -> NHWC
    # C1 + S2: Conv2d(1, 6, 5) ; MaxPool2d(2) ; ReLU  -> (B, 14, 14, 6)
    x = conv_pool_relu(x, params["conv1_w"], params["conv1_b"], block_b=block_b)
    # C3 + S4: Conv2d(6, 16, 5) ; MaxPool2d(2) ; ReLU -> (B, 5, 5, 16)
    x = conv_pool_relu(x, params["conv2_w"], params["conv2_b"], block_b=block_b)
    # C5 + F6 + output fused in one kernel: conv3's input is exactly 5x5, so it
    # is a matmul over the (kh, kw, InC)-ordered 400-vector; the Rearrange
    # ('b c h w -> b (c h w)') of the 120x1x1 map is just that vector.
    B = x.shape[0]
    x = x.reshape(B, -1)                                         # (B, 400)
    return head(x, params["conv3_w"], params["conv3_b"],
                params["fc1_w"], params["fc1_b"],
                params["fc2_w"], params["fc2_b"], block_m=block_m)


if __name__ == "__main__":
    key = jax.random.PRNGKey(0)
    pkey, xkey = jax.random.split(key)
    num_classes = 10
    # matmul_dtype=jnp.bfloat16 halves DMA bytes / ~3x MXU throughput on
    # v6e/v7x; kept float32 here for bit-exact parity with the PyTorch module.
    params = prepare_params(init_params(pkey, num_classes=num_classes),
                            matmul_dtype=jnp.float32)
    # LeNet expects 32x32 grayscale images; batch=2.
    x = jax.random.normal(xkey, (2, 1, 32, 32), jnp.float32)
    fwd = jax.jit(lenet_forward)
    out = jax.block_until_ready(fwd(params, x))
    assert out.shape == (2, num_classes) and out.dtype == jnp.float32
    print("KERNEL_OK")
</pallas_src>

<mosaic_0001>
module attributes {stable_mosaic.version = 11 : i64} {
  func.func @_conv_pool_relu_kernel(%arg0: i32, %arg1: memref<2x4x200x25xf32, #tpu.memory_space<vmem>>, %arg2: memref<25x6xf32, #tpu.memory_space<vmem>>, %arg3: memref<1x6xf32, #tpu.memory_space<vmem>>, %arg4: memref<2x200x6xf32, #tpu.memory_space<vmem>>) attributes {dimension_semantics = [#tpu.dimension_semantics<parallel>], iteration_bounds = array<i64: 1>, scalar_prefetch = 0 : i64, scratch_operands = 0 : i64, tpu.core_type = #tpu.core_type<tc>, window_params = [{transform_indices = @transform_0, window_bounds = array<i64: 2, 4, 200, 25>}, {pipeline_mode = #tpu.pipeline_mode<synchronous>, transform_indices = @transform_1, window_bounds = array<i64: 25, 6>}, {pipeline_mode = #tpu.pipeline_mode<synchronous>, transform_indices = @transform_2, window_bounds = array<i64: 1, 6>}, {transform_indices = @transform_3, window_bounds = array<i64: 2, 200, 6>}]} {
    %c0 = arith.constant 0 : index
    %c0_0 = arith.constant 0 : index
    %c0_1 = arith.constant 0 : index
    %c0_2 = arith.constant 0 : index
    %0 = vector.load %arg1[%c0, %c0_0, %c0_1, %c0_2] : memref<2x4x200x25xf32, #tpu.memory_space<vmem>>, vector<2x4x200x25xf32>
    %1 = vector.shape_cast %0 : vector<2x4x200x25xf32> to vector<1600x25xf32>
    %c0_3 = arith.constant 0 : index
    %c0_4 = arith.constant 0 : index
    %2 = vector.load %arg2[%c0_3, %c0_4] : memref<25x6xf32, #tpu.memory_space<vmem>>, vector<25x6xf32>
    %cst = arith.constant dense<0.000000e+00> : vector<1600x6xf32>
    %3 = tpu.matmul %1, %2, %cst {dimension_numbers = #tpu.dot_dimension_numbers<[1], [0], [0], [1], [0, 0, 1, 1], [], []>} : vector<1600x25xf32>, vector<25x6xf32>, vector<1600x6xf32> -> vector<1600x6xf32>
    %4 = vector.shape_cast %3 : vector<1600x6xf32> to vector<2x4x200x6xf32>
    %cst_5 = arith.constant dense<0xFF800000> : vector<2x200x6xf32>
    %5 = vector.multi_reduction <maximumf>, %4, %cst_5 [1] : vector<2x4x200x6xf32> to vector<2x200x6xf32>
    %c0_6 = arith.constant 0 : index
    %c0_7 = arith.constant 0 : index
    %6 = vector.load %arg3[%c0_6, %c0_7] : memref<1x6xf32, #tpu.memory_space<vmem>>, vector<1x6xf32>
    %7 = vector.shape_cast %6 : vector<1x6xf32> to vector<1x1x6xf32>
    %8 = vector.broadcast %7 : vector<1x1x6xf32> to vector<2x200x6xf32>
    %9 = arith.addf %5, %8 : vector<2x200x6xf32>
    %cst_8 = arith.constant 0.000000e+00 : f32
    %10 = vector.broadcast %cst_8 : f32 to vector<2x200x6xf32>
    %11 = arith.maximumf %9, %10 : vector<2x200x6xf32>
    %c0_9 = arith.constant 0 : index
    %c0_10 = arith.constant 0 : index
    %c0_11 = arith.constant 0 : index
    %12 = vector.load %arg4[%c0_9, %c0_10, %c0_11] : memref<2x200x6xf32, #tpu.memory_space<vmem>>, vector<2x200x6xf32>
    tpu.vector_store %arg4[%c0_9, %c0_10, %c0_11], %11 {strides = array<i32>} : memref<2x200x6xf32, #tpu.memory_space<vmem>>, vector<2x200x6xf32>,
    return
  }
  func.func @transform_0(%arg0: i32) -> (i32, i32, i32, i32) {
    %c0_i32 = arith.constant 0 : i32
    %c0_i32_0 = arith.constant 0 : i32
    %c0_i32_1 = arith.constant 0 : i32
    %c0_i32_2 = arith.constant 0 : i32
    return %arg0, %c0_i32, %c0_i32_0, %c0_i32_1 : i32, i32, i32, i32
  }
  func.func @transform_1(%arg0: i32) -> (i32, i32) {
    %c0_i32 = arith.constant 0 : i32
    %c0_i32_0 = arith.constant 0 : i32
    %c0_i32_1 = arith.constant 0 : i32
    return %c0_i32, %c0_i32_0 : i32, i32
  }
  func.func @transform_2(%arg0: i32) -> (i32, i32) {
    %c0_i32 = arith.constant 0 : i32
    %c0_i32_0 = arith.constant 0 : i32
    %c0_i32_1 = arith.constant 0 : i32
    return %c0_i32, %c0_i32_0 : i32, i32
  }
  func.func @transform_3(%arg0: i32) -> (i32, i32, i32) {
    %c0_i32 = arith.constant 0 : i32
    %c0_i32_0 = arith.constant 0 : i32
    %c0_i32_1 = arith.constant 0 : i32
    return %arg0, %c0_i32, %c0_i32_0 : i32, i32, i32
  }
}

module attributes {stable_mosaic.version = 11 : i64} {
  func.func @_conv_pool_relu_kernel(%arg0: i32, %arg1: memref<2x4x32x150xf32, #tpu.memory_space<vmem>>, %arg2: memref<150x16xf32, #tpu.memory_space<vmem>>, %arg3: memref<1x16xf32, #tpu.memory_space<vmem>>, %arg4: memref<2x32x16xf32, #tpu.memory_space<vmem>>) attributes {dimension_semantics = [#tpu.dimension_semantics<parallel>], iteration_bounds = array<i64: 1>, scalar_prefetch = 0 : i64, scratch_operands = 0 : i64, tpu.core_type = #tpu.core_type<tc>, window_params = [{transform_indices = @transform_0, window_bounds = array<i64: 2, 4, 32, 150>}, {pipeline_mode = #tpu.pipeline_mode<synchronous>, transform_indices = @transform_1, window_bounds = array<i64: 150, 16>}, {pipeline_mode = #tpu.pipeline_mode<synchronous>, transform_indices = @transform_2, window_bounds = array<i64: 1, 16>}, {transform_indices = @transform_3, window_bounds = array<i64: 2, 32, 16>}]} {
    %c0 = arith.constant 0 : index
    %c0_0 = arith.constant 0 : index
    %c0_1 = arith.constant 0 : index
    %c0_2 = arith.constant 0 : index
    %0 = vector.load %arg1[%c0, %c0_0, %c0_1, %c0_2] : memref<2x4x32x150xf32, #tpu.memory_space<vmem>>, vector<2x4x32x150xf32>
    %1 = vector.shape_cast %0 : vector<2x4x32x150xf32> to vector<256x150xf32>
    %c0_3 = arith.constant 0 : index
    %c0_4 = arith.constant 0 : index
    %2 = vector.load %arg2[%c0_3, %c0_4] : memref<150x16xf32, #tpu.memory_space<vmem>>, vector<150x16xf32>
    %cst = arith.constant dense<0.000000e+00> : vector<256x16xf32>
    %3 = tpu.matmul %1, %2, %cst {dimension_numbers = #tpu.dot_dimension_numbers<[1], [0], [0], [1], [0, 0, 1, 1], [], []>} : vector<256x150xf32>, vector<150x16xf32>, vector<256x16xf32> -> vector<256x16xf32>
    %4 = vector.shape_cast %3 : vector<256x16xf32> to vector<2x4x32x16xf32>
    %cst_5 = arith.constant dense<0xFF800000> : vector<2x32x16xf32>
    %5 = vector.multi_reduction <maximumf>, %4, %cst_5 [1] : vector<2x4x32x16xf32> to vector<2x32x16xf32>
    %c0_6 = arith.constant 0 : index
    %c0_7 = arith.constant 0 : index
    %6 = vector.load %arg3[%c0_6, %c0_7] : memref<1x16xf32, #tpu.memory_space<vmem>>, vector<1x16xf32>
    %7 = vector.shape_cast %6 : vector<1x16xf32> to vector<1x1x16xf32>
    %8 = vector.broadcast %7 : vector<1x1x16xf32> to vector<2x32x16xf32>
    %9 = arith.addf %5, %8 : vector<2x32x16xf32>
    %cst_8 = arith.constant 0.000000e+00 : f32
    %10 = vector.broadcast %cst_8 : f32 to vector<2x32x16xf32>
    %11 = arith.maximumf %9, %10 : vector<2x32x16xf32>
    %c0_9 = arith.constant 0 : index
    %c0_10 = arith.constant 0 : index
    %c0_11 = arith.constant 0 : index
    %12 = vector.load %arg4[%c0_9, %c0_10, %c0_11] : memref<2x32x16xf32, #tpu.memory_space<vmem>>, vector<2x32x16xf32>
    tpu.vector_store %arg4[%c0_9, %c0_10, %c0_11], %11 {strides = array<i32>} : memref<2x32x16xf32, #tpu.memory_space<vmem>>, vector<2x32x16xf32>,
    return
  }
  func.func @transform_0(%arg0: i32) -> (i32, i32, i32, i32) {
    %c0_i32 = arith.constant 0 : i32
    %c0_i32_0 = arith.constant 0 : i32
    %c0_i32_1 = arith.constant 0 : i32
    %c0_i32_2 = arith.constant 0 : i32
    return %arg0, %c0_i32, %c0_i32_0, %c0_i32_1 : i32, i32, i32, i32
  }
  func.func @transform_1(%arg0: i32) -> (i32, i32) {
    %c0_i32 = arith.constant 0 : i32
    %c0_i32_0 = arith.constant 0 : i32
    %c0_i32_1 = arith.constant 0 : i32
    return %c0_i32, %c0_i32_0 : i32, i32
  }
  func.func @transform_2(%arg0: i32) -> (i32, i32) {
    %c0_i32 = arith.constant 0 : i32
    %c0_i32_0 = arith.constant 0 : i32
    %c0_i32_1 = arith.constant 0 : i32
    return %c0_i32, %c0_i32_0 : i32, i32
  }
  func.func @transform_3(%arg0: i32) -> (i32, i32, i32) {
    %c0_i32 = arith.constant 0 : i32
    %c0_i32_0 = arith.constant 0 : i32
    %c0_i32_1 = arith.constant 0 : i32
    return %arg0, %c0_i32, %c0_i32_0 : i32, i32, i32
  }
}

module attributes {stable_mosaic.version = 11 : i64} {
  func.func @_head_kernel(%arg0: i32, %arg1: memref<2x400xf32, #tpu.memory_space<vmem>>, %arg2: memref<400x120xf32, #tpu.memory_space<vmem>>, %arg3: memref<1x120xf32, #tpu.memory_space<vmem>>, %arg4: memref<120x84xf32, #tpu.memory_space<vmem>>, %arg5: memref<1x84xf32, #tpu.memory_space<vmem>>, %arg6: memref<84x10xf32, #tpu.memory_space<vmem>>, %arg7: memref<1x10xf32, #tpu.memory_space<vmem>>, %arg8: memref<2x10xf32, #tpu.memory_space<vmem>>) attributes {dimension_semantics = [#tpu.dimension_semantics<parallel>], iteration_bounds = array<i64: 1>, scalar_prefetch = 0 : i64, scratch_operands = 0 : i64, tpu.core_type = #tpu.core_type<tc>, window_params = [{transform_indices = @transform_0, window_bounds = array<i64: 2, 400>}, {pipeline_mode = #tpu.pipeline_mode<synchronous>, transform_indices = @transform_1, window_bounds = array<i64: 400, 120>}, {pipeline_mode = #tpu.pipeline_mode<synchronous>, transform_indices = @transform_2, window_bounds = array<i64: 1, 120>}, {pipeline_mode = #tpu.pipeline_mode<synchronous>, transform_indices = @transform_3, window_bounds = array<i64: 120, 84>}, {pipeline_mode = #tpu.pipeline_mode<synchronous>, transform_indices = @transform_4, window_bounds = array<i64: 1, 84>}, {pipeline_mode = #tpu.pipeline_mode<synchronous>, transform_indices = @transform_5, window_bounds = array<i64: 84, 10>}, {pipeline_mode = #tpu.pipeline_mode<synchronous>, transform_indices = @transform_6, window_bounds = array<i64: 1, 10>}, {transform_indices = @transform_7, window_bounds = array<i64: 2, 10>}]} {
    %c0 = arith.constant 0 : index
    %c0_0 = arith.constant 0 : index
    %0 = vector.load %arg1[%c0, %c0_0] : memref<2x400xf32, #tpu.memory_space<vmem>>, vector<2x400xf32>
    %c0_1 = arith.constant 0 : index
    %c0_2 = arith.constant 0 : index
    %1 = vector.load %arg2[%c0_1, %c0_2] : memref<400x120xf32, #tpu.memory_space<vmem>>, vector<400x120xf32>
    %cst = arith.constant dense<0.000000e+00> : vector<2x120xf32>
    %2 = tpu.matmul %0, %1, %cst {dimension_numbers = #tpu.dot_dimension_numbers<[1], [0], [0], [1], [0, 0, 1, 1], [], []>} : vector<2x400xf32>, vector<400x120xf32>, vector<2x120xf32> -> vector<2x120xf32>
    %c0_3 = arith.constant 0 : index
    %c0_4 = arith.constant 0 : index
    %3 = vector.load %arg3[%c0_3, %c0_4] : memref<1x120xf32, #tpu.memory_space<vmem>>, vector<1x120xf32>
    %4 = vector.broadcast %3 : vector<1x120xf32> to vector<2x120xf32>
    %5 = arith.addf %2, %4 : vector<2x120xf32>
    %cst_5 = arith.constant 0.000000e+00 : f32
    %6 = vector.broadcast %cst_5 : f32 to vector<2x120xf32>
    %7 = arith.maximumf %5, %6 : vector<2x120xf32>
    %c0_6 = arith.constant 0 : index
    %c0_7 = arith.constant 0 : index
    %8 = vector.load %arg4[%c0_6, %c0_7] : memref<120x84xf32, #tpu.memory_space<vmem>>, vector<120x84xf32>
    %cst_8 = arith.constant dense<0.000000e+00> : vector<2x84xf32>
    %9 = tpu.matmul %7, %8, %cst_8 {dimension_numbers = #tpu.dot_dimension_numbers<[1], [0], [0], [1], [0, 0, 1, 1], [], []>} : vector<2x120xf32>, vector<120x84xf32>, vector<2x84xf32> -> vector<2x84xf32>
    %c0_9 = arith.constant 0 : index
    %c0_10 = arith.constant 0 : index
    %10 = vector.load %arg5[%c0_9, %c0_10] : memref<1x84xf32, #tpu.memory_space<vmem>>, vector<1x84xf32>
    %11 = vector.broadcast %10 : vector<1x84xf32> to vector<2x84xf32>
    %12 = arith.addf %9, %11 : vector<2x84xf32>
    %cst_11 = arith.constant 0.000000e+00 : f32
    %13 = vector.broadcast %cst_11 : f32 to vector<2x84xf32>
    %14 = arith.maximumf %12, %13 : vector<2x84xf32>
    %c0_12 = arith.constant 0 : index
    %c0_13 = arith.constant 0 : index
    %15 = vector.load %arg6[%c0_12, %c0_13] : memref<84x10xf32, #tpu.memory_space<vmem>>, vector<84x10xf32>
    %cst_14 = arith.constant dense<0.000000e+00> : vector<2x10xf32>
    %16 = tpu.matmul %14, %15, %cst_14 {dimension_numbers = #tpu.dot_dimension_numbers<[1], [0], [0], [1], [0, 0, 1, 1], [], []>} : vector<2x84xf32>, vector<84x10xf32>, vector<2x10xf32> -> vector<2x10xf32>
    %c0_15 = arith.constant 0 : index
    %c0_16 = arith.constant 0 : index
    %17 = vector.load %arg7[%c0_15, %c0_16] : memref<1x10xf32, #tpu.memory_space<vmem>>, vector<1x10xf32>
    %18 = vector.broadcast %17 : vector<1x10xf32> to vector<2x10xf32>
    %19 = arith.addf %16, %18 : vector<2x10xf32>
    %c0_17 = arith.constant 0 : index
    %c0_18 = arith.constant 0 : index
    %20 = vector.load %arg8[%c0_17, %c0_18] : memref<2x10xf32, #tpu.memory_space<vmem>>, vector<2x10xf32>
    tpu.vector_store %arg8[%c0_17, %c0_18], %19 {strides = array<i32>} : memref<2x10xf32, #tpu.memory_space<vmem>>, vector<2x10xf32>,
    return
  }
  func.func @transform_0(%arg0: i32) -> (i32, i32) {
    %c0_i32 = arith.constant 0 : i32
    %c0_i32_0 = arith.constant 0 : i32
    return %arg0, %c0_i32 : i32, i32
  }
  func.func @transform_1(%arg0: i32) -> (i32, i32) {
    %c0_i32 = arith.constant 0 : i32
    %c0_i32_0 = arith.constant 0 : i32
    %c0_i32_1 = arith.constant 0 : i32
    return %c0_i32, %c0_i32_0 : i32, i32
  }
  func.func @transform_2(%arg0: i32) -> (i32, i32) {
    %c0_i32 = arith.constant 0 : i32
    %c0_i32_0 = arith.constant 0 : i32
    %c0_i32_1 = arith.constant 0 : i32
    return %c0_i32, %c0_i32_0 : i32, i32
  }
  func.func @transform_3(%arg0: i32) -> (i32, i32) {
    %c0_i32 = arith.constant 0 : i32
    %c0_i32_0 = arith.constant 0 : i32
    %c0_i32_1 = arith.constant 0 : i32
    return %c0_i32, %c0_i32_0 : i32, i32
  }
  func.func @transform_4(%arg0: i32) -> (i32, i32) {
    %c0_i32 = arith.constant 0 : i32
    %c0_i32_0 = arith.constant 0 : i32
    %c0_i32_1 = arith.constant 0 : i32
    return %c0_i32, %c0_i32_0 : i32, i32
  }
  func.func @transform_5(%arg0: i32) -> (i32, i32) {
    %c0_i32 = arith.constant 0 : i32
    %c0_i32_0 = arith.constant 0 : i32
    %c0_i32_1 = arith.constant 0 : i32
    return %c0_i32, %c0_i32_0 : i32, i32
  }
  func.func @transform_6(%arg0: i32) -> (i32, i32) {
    %c0_i32 = arith.constant 0 : i32
    %c0_i32_0 = arith.constant 0 : i32
    %c0_i32_1 = arith.constant 0 : i32
    return %c0_i32, %c0_i32_0 : i32, i32
  }
  func.func @transform_7(%arg0: i32) -> (i32, i32) {
    %c0_i32 = arith.constant 0 : i32
    %c0_i32_0 = arith.constant 0 : i32
    return %arg0, %c0_i32 : i32, i32
  }
}

</mosaic_0001>

<llo_original>
// kernel: lenet_forward.3
$region0: #{lenet_forward.3}
  #allocation0 [shape = 'u32[]', space=smem, size = 0x4, offset = 0x4, fixed_abs, tag = 'smem constant byte address 0x4 - core index']
  #allocation1 [shape = 'u32[144,128]{1,0:T(1,128)}', space=vmem, size = 0x12000, scoped, tag = 'internal scratch']
  %s0 = inlined_call_operand.vmem [shape: f32[2,4,200,25], index: 0, kind: input, shape index: {}]
  %s1 = inlined_call_operand.vmem [shape: f32[25,6], index: 1, kind: input, shape index: {}]
  %s2 = inlined_call_operand.vmem [shape: f32[1,6], index: 2, kind: input, shape index: {}]
  %s3 = inlined_call_operand.vmem [shape: f32[2,200,6], index: 3, kind: output, shape index: {}]
  %s4 = sld [smem:[#allocation0]]
  $region22: #{lenet_forward.3} parent=0
    _
  %s6 = ssub.s32 1, %s4
  %s7 = scalar_select 0, %s6, %s4
  // Predicated region
  $region2: #{lenet_forward.3} parent=0 // pred_check
    _
  $region3: #{lenet_forward.3} parent=0 // pred_check_branch
    %9 = sbr.rel (0) target = $region5
  $region4: #{lenet_forward.3} parent=0 // pred_region
    _
  $region5: #{lenet_forward.3} parent=0 // pred_fallthru
    _
  // Predicated region
  $region6: #{lenet_forward.3} parent=0 // pred_check
    _
  $region7: #{lenet_forward.3} parent=0 // pred_check_branch
    %11 = sbr.rel (0) target = $region9
  $region8: #{lenet_forward.3} parent=0 // pred_region
    _
  $region9: #{lenet_forward.3} parent=0 // pred_fallthru
    _
  // Predicated region
  $region10: #{lenet_forward.3} parent=0 // pred_check
    _
  $region11: #{lenet_forward.3} parent=0 // pred_check_branch
    %13 = sbr.rel (0) target = $region13
  $region12: #{lenet_forward.3} parent=0 // pred_region
    _
  $region13: #{lenet_forward.3} parent=0 // pred_fallthru
    _
  %v14 = vld [vmem:[%s0] sm:$0xff]
  %v15 = vld [vmem:[%s0 + $0x8] sm:$0xff]
  %v16 = vld [vmem:[%s0 + $0x10] sm:$0xff]
  %v17 = vld [vmem:[%s0 + $0x18] sm:$0xff]
  %v18 = vld [vmem:[%s0 + $0x20] sm:$0xff]
  %v19 = vld [vmem:[%s0 + $0x28] sm:$0xff]
  %v20 = vld [vmem:[%s0 + $0x30] sm:$0xff]
  %v21 = vld [vmem:[%s0 + $0x38] sm:$0xff]
  %v22 = vld [vmem:[%s0 + $0x40] sm:$0xff]
  %v23 = vld [vmem:[%s0 + $0x48] sm:$0xff]
  %v24 = vld [vmem:[%s0 + $0x50] sm:$0xff]
  %v25 = vld [vmem:[%s0 + $0x58] sm:$0xff]
  %v26 = vld [vmem:[%s0 + $0x60] sm:$0xff]
  %v27 = vld [vmem:[%s0 + $0x68] sm:$0xff]
  %v28 = vld [vmem:[%s0 + $0x70] sm:$0xff]
  %v29 = vld [vmem:[%s0 + $0x78] sm:$0xff]
  %v30 = vld [vmem:[%s0 + $0x80] sm:$0xff]
  %v31 = vld [vmem:[%s0 + $0x88] sm:$0xff]
  %v32 = vld [vmem:[%s0 + $0x90] sm:$0xff]
  %v33 = vld [vmem:[%s0 + $0x98] sm:$0xff]
  %v34 = vld [vmem:[%s0 + $0xa0] sm:$0xff]
  %v35 = vld [vmem:[%s0 + $0xa8] sm:$0xff]
  %v36 = vld [vmem:[%s0 + $0xb0] sm:$0xff]
  %v37 = vld [vmem:[%s0 + $0xb8] sm:$0xff]
  %v38 = vld [vmem:[%s0 + $0xc0] sm:$0xff]
  %v39 = vld [vmem:[%s0 + $0xc8] sm:$0xff]
  %v40 = vld [vmem:[%s0 + $0xd0] sm:$0xff]
  %v41 = vld [vmem:[%s0 + $0xd8] sm:$0xff]
  %v42 = vld [vmem:[%s0 + $0xe0] sm:$0xff]
  %v43 = vld [vmem:[%s0 + $0xe8] sm:$0xff]
  %v44 = vld [vmem:[%s0 + $0xf0] sm:$0xff]
  %v45 = vld [vmem:[%s0 + $0xf8] sm:$0xff]
  %v46 = vld [vmem:[%s0 + $0x100] sm:$0xff]
  %v47 = vld [vmem:[%s0 + $0x108] sm:$0xff]
  %v48 = vld [vmem:[%s0 + $0x110] sm:$0xff]
  %v49 = vld [vmem:[%s0 + $0x118] sm:$0xff]
  %v50 = vld [vmem:[%s0 + $0x120] sm:$0xff]
  %v51 = vld [vmem:[%s0 + $0x128] sm:$0xff]
  %v52 = vld [vmem:[%s0 + $0x130] sm:$0xff]
  %v53 = vld [vmem:[%s0 + $0x138] sm:$0xff]
  %v54 = vld [vmem:[%s0 + $0x140] sm:$0xff]
  %v55 = vld [vmem:[%s0 + $0x148] sm:$0xff]
  %v56 = vld [vmem:[%s0 + $0x150] sm:$0xff]
  %v57 = vld [vmem:[%s0 + $0x158] sm:$0xff]
  %v58 = vld [vmem:[%s0 + $0x160] sm:$0xff]
  %v59 = vld [vmem:[%s0 + $0x168] sm:$0xff]
  %v60 = vld [vmem:[%s0 + $0x170] sm:$0xff]
  %v61 = vld [vmem:[%s0 + $0x178] sm:$0xff]
  %v62 = vld [vmem:[%s0 + $0x180] sm:$0xff]
  %v63 = vld [vmem:[%s0 + $0x188] sm:$0xff]
  %v64 = vld [vmem:[%s0 + $0x190] sm:$0xff]
  %v65 = vld [vmem:[%s0 + $0x198] sm:$0xff]
  %v66 = vld [vmem:[%s0 + $0x1a0] sm:$0xff]
  %v67 = vld [vmem:[%s0 + $0x1a8] sm:$0xff]
  %v68 = vld [vmem:[%s0 + $0x1b0] sm:$0xff]
  %v69 = vld [vmem:[%s0 + $0x1b8] sm:$0xff]
  %v70 = vld [vmem:[%s0 + $0x1c0] sm:$0xff]
  %v71 = vld [vmem:[%s0 + $0x1c8] sm:$0xff]
  %v72 = vld [vmem:[%s0 + $0x1d0] sm:$0xff]
  %v73 = vld [vmem:[%s0 + $0x1d8] sm:$0xff]
  %v74 = vld [vmem:[%s0 + $0x1e0] sm:$0xff]
  %v75 = vld [vmem:[%s0 + $0x1e8] sm:$0xff]
  %v76 = vld [vmem:[%s0 + $0x1f0] sm:$0xff]
  %v77 = vld [vmem:[%s0 + $0x1f8] sm:$0xff]
  %v78 = vld [vmem:[%s0 + $0x200] sm:$0xff]
  %v79 = vld [vmem:[%s0 + $0x208] sm:$0xff]
  %v80 = vld [vmem:[%s0 + $0x210] sm:$0xff]
  %v81 = vld [vmem:[%s0 + $0x218] sm:$0xff]
  %v82 = vld [vmem:[%s0 + $0x220] sm:$0xff]
  %v83 = vld [vmem:[%s0 + $0x228] sm:$0xff]
  %v84 = vld [vmem:[%s0 + $0x230] sm:$0xff]
  %v85 = vld [vmem:[%s0 + $0x238] sm:$0xff]
  %v86 = vld [vmem:[%s0 + $0x240] sm:$0xff]
  %v87 = vld [vmem:[%s0 + $0x248] sm:$0xff]
  %v88 = vld [vmem:[%s0 + $0x250] sm:$0xff]
  %v89 = vld [vmem:[%s0 + $0x258] sm:$0xff]
  %v90 = vld [vmem:[%s0 + $0x260] sm:$0xff]
  %v91 = vld [vmem:[%s0 + $0x268] sm:$0xff]
  %v92 = vld [vmem:[%s0 + $0x270] sm:$0xff]
  %v93 = vld [vmem:[%s0 + $0x278] sm:$0xff]
  %v94 = vld [vmem:[%s0 + $0x280] sm:$0xff]
  %v95 = vld [vmem:[%s0 + $0x288] sm:$0xff]
  %v96 = vld [vmem:[%s0 + $0x290] sm:$0xff]
  %v97 = vld [vmem:[%s0 + $0x298] sm:$0xff]
  %v98 = vld [vmem:[%s0 + $0x2a0] sm:$0xff]
  %v99 = vld [vmem:[%s0 + $0x2a8] sm:$0xff]
  %v100 = vld [vmem:[%s0 + $0x2b0] sm:$0xff]
  %v101 = vld [vmem:[%s0 + $0x2b8] sm:$0xff]
  %v102 = vld [vmem:[%s0 + $0x2c0] sm:$0xff]
  %v103 = vld [vmem:[%s0 + $0x2c8] sm:$0xff]
  %v104 = vld [vmem:[%s0 + $0x2d0] sm:$0xff]
  %v105 = vld [vmem:[%s0 + $0x2d8] sm:$0xff]
  %v106 = vld [vmem:[%s0 + $0x2e0] sm:$0xff]
  %v107 = vld [vmem:[%s0 + $0x2e8] sm:$0xff]
  %v108 = vld [vmem:[%s0 + $0x2f0] sm:$0xff]
  %v109 = vld [vmem:[%s0 + $0x2f8] sm:$0xff]
  %v110 = vld [vmem:[%s0 + $0x300] sm:$0xff]
  %v111 = vld [vmem:[%s0 + $0x308] sm:$0xff]
  %v112 = vld [vmem:[%s0 + $0x310] sm:$0xff]
  %v113 = vld [vmem:[%s0 + $0x318] sm:$0xff]
  %v114 = vld [vmem:[%s0 + $0x320] sm:$0xff]
  %v115 = vld [vmem:[%s0 + $0x328] sm:$0xff]
  %v116 = vld [vmem:[%s0 + $0x330] sm:$0xff]
  %v117 = vld [vmem:[%s0 + $0x338] sm:$0xff]
  %v118 = vld [vmem:[%s0 + $0x340] sm:$0xff]
  %v119 = vld [vmem:[%s0 + $0x348] sm:$0xff]
  %v120 = vld [vmem:[%s0 + $0x350] sm:$0xff]
  %v121 = vld [vmem:[%s0 + $0x358] sm:$0xff]
  %v122 = vld [vmem:[%s0 + $0x360] sm:$0xff]
  %v123 = vld [vmem:[%s0 + $0x368] sm:$0xff]
  %v124 = vld [vmem:[%s0 + $0x370] sm:$0xff]
  %v125 = vld [vmem:[%s0 + $0x378] sm:$0xff]
  %v126 = vld [vmem:[%s0 + $0x380] sm:$0xff]
  %v127 = vld [vmem:[%s0 + $0x388] sm:$0xff]
  %v128 = vld [vmem:[%s0 + $0x390] sm:$0xff]
  %v129 = vld [vmem:[%s0 + $0x398] sm:$0xff]
  %v130 = vld [vmem:[%s0 + $0x3a0] sm:$0xff]
  %v131 = vld [vmem:[%s0 + $0x3a8] sm:$0xff]
  %v132 = vld [vmem:[%s0 + $0x3b0] sm:$0xff]
  %v133 = vld [vmem:[%s0 + $0x3b8] sm:$0xff]
  %v134 = vld [vmem:[%s0 + $0x3c0] sm:$0xff]
  %v135 = vld [vmem:[%s0 + $0x3c8] sm:$0xff]
  %v136 = vld [vmem:[%s0 + $0x3d0] sm:$0xff]
  %v137 = vld [vmem:[%s0 + $0x3d8] sm:$0xff]
  %v138 = vld [vmem:[%s0 + $0x3e0] sm:$0xff]
  %v139 = vld [vmem:[%s0 + $0x3e8] sm:$0xff]
  %v140 = vld [vmem:[%s0 + $0x3f0] sm:$0xff]
  %v141 = vld [vmem:[%s0 + $0x3f8] sm:$0xff]
  %v142 = vld [vmem:[%s0 + $0x400] sm:$0xff]
  %v143 = vld [vmem:[%s0 + $0x408] sm:$0xff]
  %v144 = vld [vmem:[%s0 + $0x410] sm:$0xff]
  %v145 = vld [vmem:[%s0 + $0x418] sm:$0xff]
  %v146 = vld [vmem:[%s0 + $0x420] sm:$0xff]
  %v147 = vld [vmem:[%s0 + $0x428] sm:$0xff]
  %v148 = vld [vmem:[%s0 + $0x430] sm:$0xff]
  %v149 = vld [vmem:[%s0 + $0x438] sm:$0xff]
  %v150 = vld [vmem:[%s0 + $0x440] sm:$0xff]
  %v151 = vld [vmem:[%s0 + $0x448] sm:$0xff]
  %v152 = vld [vmem:[%s0 + $0x450] sm:$0xff]
  %v153 = vld [vmem:[%s0 + $0x458] sm:$0xff]
  %v154 = vld [vmem:[%s0 + $0x460] sm:$0xff]
  %v155 = vld [vmem:[%s0 + $0x468] sm:$0xff]
  %v156 = vld [vmem:[%s0 + $0x470] sm:$0xff]
  %v157 = vld [vmem:[%s0 + $0x478] sm:$0xff]
  %v158 = vld [vmem:[%s0 + $0x480] sm:$0xff]
  %v159 = vld [vmem:[%s0 + $0x488] sm:$0xff]
  %v160 = vld [vmem:[%s0 + $0x490] sm:$0xff]
  %v161 = vld [vmem:[%s0 + $0x498] sm:$0xff]
  %v162 = vld [vmem:[%s0 + $0x4a0] sm:$0xff]
  %v163 = vld [vmem:[%s0 + $0x4a8] sm:$0xff]
  %v164 = vld [vmem:[%s0 + $0x4b0] sm:$0xff]
  %v165 = vld [vmem:[%s0 + $0x4b8] sm:$0xff]
  %v166 = vld [vmem:[%s0 + $0x4c0] sm:$0xff]
  %v167 = vld [vmem:[%s0 + $0x4c8] sm:$0xff]
  %v168 = vld [vmem:[%s0 + $0x4d0] sm:$0xff]
  %v169 = vld [vmem:[%s0 + $0x4d8] sm:$0xff]
  %v170 = vld [vmem:[%s0 + $0x4e0] sm:$0xff]
  %v171 = vld [vmem:[%s0 + $0x4e8] sm:$0xff]
  %v172 = vld [vmem:[%s0 + $0x4f0] sm:$0xff]
  %v173 = vld [vmem:[%s0 + $0x4f8] sm:$0xff]
  %v174 = vld [vmem:[%s0 + $0x500] sm:$0xff]
  %v175 = vld [vmem:[%s0 + $0x508] sm:$0xff]
  %v176 = vld [vmem:[%s0 + $0x510] sm:$0xff]
  %v177 = vld [vmem:[%s0 + $0x518] sm:$0xff]
  %v178 = vld [vmem:[%s0 + $0x520] sm:$0xff]
  %v179 = vld [vmem:[%s0 + $0x528] sm:$0xff]
  %v180 = vld [vmem:[%s0 + $0x530] sm:$0xff]
  %v181 = vld [vmem:[%s0 + $0x538] sm:$0xff]
  %v182 = vld [vmem:[%s0 + $0x540] sm:$0xff]
  %v183 = vld [vmem:[%s0 + $0x548] sm:$0xff]
  %v184 = vld [vmem:[%s0 + $0x550] sm:$0xff]
  %v185 = vld [vmem:[%s0 + $0x558] sm:$0xff]
  %v186 = vld [vmem:[%s0 + $0x560] sm:$0xff]
  %v187 = vld [vmem:[%s0 + $0x568] sm:$0xff]
  %v188 = vld [vmem:[%s0 + $0x570] sm:$0xff]
  %v189 = vld [vmem:[%s0 + $0x578] sm:$0xff]
  %v190 = vld [vmem:[%s0 + $0x580] sm:$0xff]
  %v191 = vld [vmem:[%s0 + $0x588] sm:$0xff]
  %v192 = vld [vmem:[%s0 + $0x590] sm:$0xff]
  %v193 = vld [vmem:[%s0 + $0x598] sm:$0xff]
  %v194 = vld [vmem:[%s0 + $0x5a0] sm:$0xff]
  %v195 = vld [vmem:[%s0 + $0x5a8] sm:$0xff]
  %v196 = vld [vmem:[%s0 + $0x5b0] sm:$0xff]
  %v197 = vld [vmem:[%s0 + $0x5b8] sm:$0xff]
  %v198 = vld [vmem:[%s0 + $0x5c0] sm:$0xff]
  %v199 = vld [vmem:[%s0 + $0x5c8] sm:$0xff]
  %v200 = vld [vmem:[%s0 + $0x5d0] sm:$0xff]
  %v201 = vld [vmem:[%s0 + $0x5d8] sm:$0xff]
  %v202 = vld [vmem:[%s0 + $0x5e0] sm:$0xff]
  %v203 = vld [vmem:[%s0 + $0x5e8] sm:$0xff]
  %v204 = vld [vmem:[%s0 + $0x5f0] sm:$0xff]
  %v205 = vld [vmem:[%s0 + $0x5f8] sm:$0xff]
  %v206 = vld [vmem:[%s0 + $0x600] sm:$0xff]
  %v207 = vld [vmem:[%s0 + $0x608] sm:$0xff]
  %v208 = vld [vmem:[%s0 + $0x610] sm:$0xff]
  %v209 = vld [vmem:[%s0 + $0x618] sm:$0xff]
  %v210 = vld [vmem:[%s0 + $0x620] sm:$0xff]
  %v211 = vld [vmem:[%s0 + $0x628] sm:$0xff]
  %v212 = vld [vmem:[%s0 + $0x630] sm:$0xff]
  %v213 = vld [vmem:[%s0 + $0x638] sm:$0xff]
  %v214 = vld [vmem:[%s1] sm:$0xff]
  %v215 = vld [vmem:[%s1 + $0x8] sm:$0xff]
  %v216 = vld [vmem:[%s1 + $0x10] sm:$0xff]
  %v217 = vld [vmem:[%s1 + $0x18] sm:$0x1]
  %vm218 = vcmask 203776
  %v220 = vsel %vm218, %v14, 0
  %v223 = vsel %vm218, %v15, 0
  %v226 = vsel %vm218, %v16, 0
  %v229 = vsel %vm218, %v17, 0
  %v232 = vsel %vm218, %v18, 0
  %v235 = vsel %vm218, %v19, 0
  %v238 = vsel %vm218, %v20, 0
  %v241 = vsel %vm218, %v21, 0
  %v244 = vsel %vm218, %v22, 0
  %v247 = vsel %vm218, %v23, 0
  %v250 = vsel %vm218, %v24, 0
  %v253 = vsel %vm218, %v25, 0
  %v256 = vsel %vm218, %v26, 0
  %v259 = vsel %vm218, %v27, 0
  %v262 = vsel %vm218, %v28, 0
  %v265 = vsel %vm218, %v29, 0
  %v268 = vsel %vm218, %v30, 0
  %v271 = vsel %vm218, %v31, 0
  %v274 = vsel %vm218, %v32, 0
  %v277 = vsel %vm218, %v33, 0
  %v280 = vsel %vm218, %v34, 0
  %v283 = vsel %vm218, %v35, 0
  %v286 = vsel %vm218, %v36, 0
  %v289 = vsel %vm218, %v37, 0
  %v292 = vsel %vm218, %v38, 0
  %v295 = vsel %vm218, %v39, 0
  %v298 = vsel %vm218, %v40, 0
  %v301 = vsel %vm218, %v41, 0
  %v304 = vsel %vm218, %v42, 0
  %v307 = vsel %vm218, %v43, 0
  %v310 = vsel %vm218, %v44, 0
  %v313 = vsel %vm218, %v45, 0
  %v316 = vsel %vm218, %v46, 0
  %v319 = vsel %vm218, %v47, 0
  %v322 = vsel %vm218, %v48, 0
  %v325 = vsel %vm218, %v49, 0
  %v328 = vsel %vm218, %v50, 0
  %v331 = vsel %vm218, %v51, 0
  %v334 = vsel %vm218, %v52, 0
  %v337 = vsel %vm218, %v53, 0
  %v340 = vsel %vm218, %v54, 0
  %v343 = vsel %vm218, %v55, 0
  %v346 = vsel %vm218, %v56, 0
  %v349 = vsel %vm218, %v57, 0
  %v352 = vsel %vm218, %v58, 0
  %v355 = vsel %vm218, %v59, 0
  %v358 = vsel %vm218, %v60, 0
  %v361 = vsel %vm218, %v61, 0
  %v364 = vsel %vm218, %v62, 0
  %v367 = vsel %vm218, %v63, 0
  %v370 = vsel %vm218, %v64, 0
  %v373 = vsel %vm218, %v65, 0
  %v376 = vsel %vm218, %v66, 0
  %v379 = vsel %vm218, %v67, 0
  %v382 = vsel %vm218, %v68, 0
  %v385 = vsel %vm218, %v69, 0
  %v388 = vsel %vm218, %v70, 0
  %v391 = vsel %vm218, %v71, 0
  %v394 = vsel %vm218, %v72, 0
  %v397 = vsel %vm218, %v73, 0
  %v400 = vsel %vm218, %v74, 0
  %v403 = vsel %vm218, %v75, 0
  %v406 = vsel %vm218, %v76, 0
  %v409 = vsel %vm218, %v77, 0
  %v412 = vsel %vm218, %v78, 0
  %v415 = vsel %vm218, %v79, 0
  %v418 = vsel %vm218, %v80, 0
  %v421 = vsel %vm218, %v81, 0
  %v424 = vsel %vm218, %v82, 0
  %v427 = vsel %vm218, %v83, 0
  %v430 = vsel %vm218, %v84, 0
  %v433 = vsel %vm218, %v85, 0
  %v436 = vsel %vm218, %v86, 0
  %v439 = vsel %vm218, %v87, 0
  %v442 = vsel %vm218, %v88, 0
  %v445 = vsel %vm218, %v89, 0
  %v448 = vsel %vm218, %v90, 0
  %v451 = vsel %vm218, %v91, 0
  %v454 = vsel %vm218, %v92, 0
  %v457 = vsel %vm218, %v93, 0
  %v460 = vsel %vm218, %v94, 0
  %v463 = vsel %vm218, %v95, 0
  %v466 = vsel %vm218, %v96, 0
  %v469 = vsel %vm218, %v97, 0
  %v472 = vsel %vm218, %v98, 0
  %v475 = vsel %vm218, %v99, 0
  %v478 = vsel %vm218, %v100, 0
  %v481 = vsel %vm218, %v101, 0
  %v484 = vsel %vm218, %v102, 0
  %v487 = vsel %vm218, %v103, 0
  %v490 = vsel %vm218, %v104, 0
  %v493 = vsel %vm218, %v105, 0
  %v496 = vsel %vm218, %v106, 0
  %v499 = vsel %vm218, %v107, 0
  %v502 = vsel %vm218, %v108, 0
  %v505 = vsel %vm218, %v109, 0
  %v508 = vsel %vm218, %v110, 0
  %v511 = vsel %vm218, %v111, 0
  %v514 = vsel %vm218, %v112, 0
  %v517 = vsel %vm218, %v113, 0
  %v520 = vsel %vm218, %v114, 0
  %v523 = vsel %vm218, %v115, 0
  %v526 = vsel %vm218, %v116, 0
  %v529 = vsel %vm218, %v117, 0
  %v532 = vsel %vm218, %v118, 0
  %v535 = vsel %vm218, %v119, 0
  %v538 = vsel %vm218, %v120, 0
  %v541 = vsel %vm218, %v121, 0
  %v544 = vsel %vm218, %v122, 0
  %v547 = vsel %vm218, %v123, 0
  %v550 = vsel %vm218, %v124, 0
  %v553 = vsel %vm218, %v125, 0
  %v556 = vsel %vm218, %v126, 0
  %v559 = vsel %vm218, %v127, 0
  %v562 = vsel %vm218, %v128, 0
  %v565 = vsel %vm218, %v129, 0
  %v568 = vsel %vm218, %v130, 0
  %v571 = vsel %vm218, %v131, 0
  %v574 = vsel %vm218, %v132, 0
  %v577 = vsel %vm218, %v133, 0
  %v580 = vsel %vm218, %v134, 0
  %v583 = vsel %vm218, %v135, 0
  %v586 = vsel %vm218, %v136, 0
  %v589 = vsel %vm218, %v137, 0
  %v592 = vsel %vm218, %v138, 0
  %v595 = vsel %vm218, %v139, 0
  %v598 = vsel %vm218, %v140, 0
  %v601 = vsel %vm218, %v141, 0
  %v604 = vsel %vm218, %v142, 0
  %v607 = vsel %vm218, %v143, 0
  %v610 = vsel %vm218, %v144, 0
  %v613 = vsel %vm218, %v145, 0
  %v616 = vsel %vm218, %v146, 0
  %v619 = vsel %vm218, %v147, 0
  %v622 = vsel %vm218, %v148, 0
  %v625 = vsel %vm218, %v149, 0
  %v628 = vsel %vm218, %v150, 0
  %v631 = vsel %vm218, %v151, 0
  %v634 = vsel %vm218, %v152, 0
  %v637 = vsel %vm218, %v153, 0
  %v640 = vsel %vm218, %v154, 0
  %v643 = vsel %vm218, %v155, 0
  %v646 = vsel %vm218, %v156, 0
  %v649 = vsel %vm218, %v157, 0
  %v652 = vsel %vm218, %v158, 0
  %v655 = vsel %vm218, %v159, 0
  %v658 = vsel %vm218, %v160, 0
  %v661 = vsel %vm218, %v161, 0
  %v664 = vsel %vm218, %v162, 0
  %v667 = vsel %vm218, %v163, 0
  %v670 = vsel %vm218, %v164, 0
  %v673 = vsel %vm218, %v165, 0
  %v676 = vsel %vm218, %v166, 0
  %v679 = vsel %vm218, %v167, 0
  %v682 = vsel %vm218, %v168, 0
  %v685 = vsel %vm218, %v169, 0
  %v688 = vsel %vm218, %v170, 0
  %v691 = vsel %vm218, %v171, 0
  %v694 = vsel %vm218, %v172, 0
  %v697 = vsel %vm218, %v173, 0
  %v700 = vsel %vm218, %v174, 0
  %v703 = vsel %vm218, %v175, 0
  %v706 = vsel %vm218, %v176, 0
  %v709 = vsel %vm218, %v177, 0
  %v712 = vsel %vm218, %v178, 0
  %v715 = vsel %vm218, %v179, 0
  %v718 = vsel %vm218, %v180, 0
  %v721 = vsel %vm218, %v181, 0
  %v724 = vsel %vm218, %v182, 0
  %v727 = vsel %vm218, %v183, 0
  %v730 = vsel %vm218, %v184, 0
  %v733 = vsel %vm218, %v185, 0
  %v736 = vsel %vm218, %v186, 0
  %v739 = vsel %vm218, %v187, 0
  %v742 = vsel %vm218, %v188, 0
  %v745 = vsel %vm218, %v189, 0
  %v748 = vsel %vm218, %v190, 0
  %v751 = vsel %vm218, %v191, 0
  %v754 = vsel %vm218, %v192, 0
  %v757 = vsel %vm218, %v193, 0
  %v760 = vsel %vm218, %v194, 0
  %v763 = vsel %vm218, %v195, 0
  %v766 = vsel %vm218, %v196, 0
  %v769 = vsel %vm218, %v197, 0
  %v772 = vsel %vm218, %v198, 0
  %v775 = vsel %vm218, %v199, 0
  %v778 = vsel %vm218, %v200, 0
  %v781 = vsel %vm218, %v201, 0
  %v784 = vsel %vm218, %v202, 0
  %v787 = vsel %vm218, %v203, 0
  %v790 = vsel %vm218, %v204, 0
  %v793 = vsel %vm218, %v205, 0
  %v796 = vsel %vm218, %v206, 0
  %v799 = vsel %vm218, %v207, 0
  %v802 = vsel %vm218, %v208, 0
  %v805 = vsel %vm218, %v209, 0
  %v808 = vsel %vm218, %v210, 0
  %v811 = vsel %vm218, %v211, 0
  %v814 = vsel %vm218, %v212, 0
  %v817 = vsel %vm218, %v213, 0
  %vm819 = vcmask 1040384
  %v821 = vsel %vm819, %v217, 0
  %823 = vmatprep.subr.mxu0 0.0
  %824 = vmatpush1.msra.mxu0 %v214
  %825 = vmatprep.subr.mxu0 0.0
  %826 = vmatpush1.msra.mxu0 %v215
  %827 = vmatprep.subr.mxu0 0.0
  %828 = vmatpush1.msra.mxu0 %v216
  %829 = vmatprep.subr.mxu0 0.0
  %830 = vmatpush1.msra.mxu0 %v821
  %831 = vmatprep.subr.mxu0 0.0
  %832 = vmatpush1.msra.mxu0 0.0
  %833 = vmatprep.subr.mxu0 0.0
  %834 = vmatpush1.msra.mxu0 0.0
  %835 = vmatprep.subr.mxu0 0.0
  %836 = vmatpush1.msra.mxu0 0.0
  %837 = vmatprep.subr.mxu0 0.0
  %838 = vmatpush1.msra.mxu0 0.0
  %839 = vmatprep.subr.mxu0 0.0
  %840 = vmatpush1.msra.mxu0 0.0
  %841 = vmatprep.subr.mxu0 0.0
  %842 = vmatpush1.msra.mxu0 0.0
  %843 = vmatprep.subr.mxu0 0.0
  %844 = vmatpush1.msra.mxu0 0.0
  %845 = vmatprep.subr.mxu0 0.0
  %846 = vmatpush1.msra.mxu0 0.0
  %847 = vmatprep.subr.mxu0 0.0
  %848 = vmatpush1.msra.mxu0 0.0
  %849 = vmatprep.subr.mxu0 0.0
  %850 = vmatpush1.msra.mxu0 0.0
  %851 = vmatprep.subr.mxu0 0.0
  %852 = vmatpush1.msra.mxu0 0.0
  %853 = vmatprep.subr.mxu0 0.0
  %854 = vmatpush1.msra.mxu0 0.0
  %855 = vmatprep.subr.mxu0 0.0
  %856 = vmatpush1.msra.mxu0 0.0
  %857 = vmatprep.subr.mxu0 0.0
  %858 = vmatpush1.msra.mxu0 0.0
  %859 = vmatprep.subr.mxu0 0.0
  %860 = vmatpush1.msra.mxu0 0.0
  %861 = vmatprep.subr.mxu0 0.0
  %862 = vmatpush1.msra.mxu0 0.0
  %863 = vmatprep.subr.mxu0 0.0
  %864 = vmatpush1.msra.mxu0 0.0
  %865 = vmatprep.subr.mxu0 0.0
  %866 = vmatpush1.msra.mxu0 0.0
  %867 = vmatprep.subr.mxu0 0.0
  %868 = vmatpush1.msra.mxu0 0.0
  %869 = vmatprep.subr.mxu0 0.0
  %870 = vmatpush1.msra.mxu0 0.0
  %871 = vmatprep.subr.mxu0 0.0
  %872 = vmatpush1.msra.mxu0 0.0
  %873 = vmatprep.subr.mxu0 0.0
  %874 = vmatpush1.msra.mxu0 0.0
  %875 = vmatprep.subr.mxu0 0.0
  %876 = vmatpush1.msra.mxu0 0.0
  %877 = vmatprep.subr.mxu0 0.0
  %878 = vmatpush1.msra.mxu0 0.0
  %879 = vmatprep.subr.mxu0 0.0
  %880 = vmatpush1.msra.mxu0 0.0
  %881 = vmatprep.subr.mxu0 0.0
  %882 = vmatpush1.msra.mxu0 0.0
  %883 = vmatprep.subr.mxu0 0.0
  %884 = vmatpush1.msra.mxu0 0.0
  %885 = vmatprep.subr.mxu0 0.0
  %886 = vmatpush1.msra.mxu0 0.0
  %887 = vmatprep.mubr.f32.mxu0 0.0
  %888 = vmatmul.mubr.f32.gmra.mrb[0].mxu0 %v220
  %v889 = vpop.f32.mrb[0].mxu0
  %v890 = vadd.f32 0.0, %v889
  %v891 = vpop.f32.mrb[0].mxu0
  %892 = vmatprep.mubr.f32.mxu0 0.0
  %893 = vmatmul.mubr.f32.gmra.mrb[0].mxu0 %v223
  %v894 = vpop.f32.mrb[0].mxu0
  %v895 = vadd.f32 0.0, %v894
  %v896 = vpop.f32.mrb[0].mxu0
  %897 = vmatprep.mubr.f32.mxu0 0.0
  %898 = vmatmul.mubr.f32.gmra.mrb[0].mxu0 %v226
  %v899 = vpop.f32.mrb[0].mxu0
  %v900 = vadd.f32 0.0, %v899
  %v901 = vpop.f32.mrb[0].mxu0
  %902 = vmatprep.mubr.f32.mxu0 0.0
  %903 = vmatmul.mubr.f32.gmra.mrb[0].mxu0 %v229
  %v904 = vpop.f32.mrb[0].mxu0
  %v905 = vadd.f32 0.0, %v904
  %v906 = vpop.f32.mrb[0].mxu0
  %907 = vmatprep.mubr.f32.mxu0 0.0
  %908 = vmatmul.mubr.f32.gmra.mrb[0].mxu0 %v232
  %v909 = vpop.f32.mrb[0].mxu0
  %v910 = vadd.f32 0.0, %v909
  %v911 = vpop.f32.mrb[0].mxu0
  %912 = vmatprep.mubr.f32.mxu0 0.0
  %913 = vmatmul.mubr.f32.gmra.mrb[0].mxu0 %v235
  %v914 = vpop.f32.mrb[0].mxu0
  %v915 = vadd.f32 0.0, %v914
  %v916 = vpop.f32.mrb[0].mxu0
  %917 = vmatprep.mubr.f32.mxu0 0.0
  %918 = vmatmul.mubr.f32.gmra.mrb[0].mxu0 %v238
  %v919 = vpop.f32.mrb[0].mxu0
  %v920 = vadd.f32 0.0, %v919
  %v921 = vpop.f32.mrb[0].mxu0
  %922 = vmatprep.mubr.f32.mxu0 0.0
  %923 = vmatmul.mubr.f32.gmra.mrb[0].mxu0 %v241
  %v924 = vpop.f32.mrb[0].mxu0
  %v925 = vadd.f32 0.0, %v924
  %v926 = vpop.f32.mrb[0].mxu0
  %927 = vmatprep.mubr.f32.mxu0 0.0
  %928 = vmatmul.mubr.f32.gmra.mrb[0].mxu0 %v244
  %v929 = vpop.f32.mrb[0].mxu0
  %v930 = vadd.f32 0.0, %v929
  %v931 = vpop.f32.mrb[0].mxu0
  %932 = vmatprep.mubr.f32.mxu0 0.0
  %933 = vmatmul.mubr.f32.gmra.mrb[0].mxu0 %v247
  %v934 = vpop.f32.mrb[0].mxu0
  %v935 = vadd.f32 0.0, %v934
  %v936 = vpop.f32.mrb[0].mxu0
  %937 = vmatprep.mubr.f32.mxu0 0.0
  %938 = vmatmul.mubr.f32.gmra.mrb[0].mxu0 %v250
  %v939 = vpop.f32.mrb[0].mxu0
  %v940 = vadd.f32 0.0, %v939
  %v941 = vpop.f32.mrb[0].mxu0
  %942 = vmatprep.mubr.f32.mxu0 0.0
  %943 = vmatmul.mubr.f32.gmra.mrb[0].mxu0 %v253
  %v944 = vpop.f32.mrb[0].mxu0
  %v945 = vadd.f32 0.0, %v944
  %v946 = vpop.f32.mrb[0].mxu0
  %947 = vmatprep.mubr.f32.mxu0 0.0
  %948 = vmatmul.mubr.f32.gmra.mrb[0].mxu0 %v256
  %v949 = vpop.f32.mrb[0].mxu0
  %v950 = vadd.f32 0.0, %v949
  %v951 = vpop.f32.mrb[0].mxu0
  %952 = vmatprep.mubr.f32.mxu0 0.0
  %953 = vmatmul.mubr.f32.gmra.mrb[0].mxu0 %v259
  %v954 = vpop.f32.mrb[0].mxu0
  %v955 = vadd.f32 0.0, %v954
  %v956 = vpop.f32.mrb[0].mxu0
  %957 = vmatprep.mubr.f32.mxu0 0.0
  %958 = vmatmul.mubr.f32.gmra.mrb[0].mxu0 %v262
  %v959 = vpop.f32.mrb[0].mxu0
  %v960 = vadd.f32 0.0, %v959
  %v961 = vpop.f32.mrb[0].mxu0
  %962 = vmatprep.mubr.f32.mxu0 0.0
  %963 = vmatmul.mubr.f32.gmra.mrb[0].mxu0 %v265
  %v964 = vpop.f32.mrb[0].mxu0
  %v965 = vadd.f32 0.0, %v964
  %v966 = vpop.f32.mrb[0].mxu0
  %967 = vmatprep.mubr.f32.mxu0 0.0
  %968 = vmatmul.mubr.f32.gmra.mrb[0].mxu0 %v268
  %v969 = vpop.f32.mrb[0].mxu0
  %v970 = vadd.f32 0.0, %v969
  %v971 = vpop.f32.mrb[0].mxu0
  %972 = vmatprep.mubr.f32.mxu0 0.0
  %973 = vmatmul.mubr.f32.gmra.mrb[0].mxu0 %v271
  %v974 = vpop.f32.mrb[0].mxu0
  %v975 = vadd.f32 0.0, %v974
  %v976 = vpop.f32.mrb[0].mxu0
  %977 = vmatprep.mubr.f32.mxu0 0.0
  %978 = vmatmul.mubr.f32.gmra.mrb[0].mxu0 %v274
  %v979 = vpop.f32.mrb[0].mxu0
  %v980 = vadd.f32 0.0, %v979
  %v981 = vpop.f32.mrb[0].mxu0
  %982 = vmatprep.mubr.f32.mxu0 0.0
  %983 = vmatmul.mubr.f32.gmra.mrb[0].mxu0 %v277
  %v984 = vpop.f32.mrb[0].mxu0
  %v985 = vadd.f32 0.0, %v984
  %v986 = vpop.f32.mrb[0].mxu0
  %987 = vmatprep.mubr.f32.mxu0 0.0
  %988 = vmatmul.mubr.f32.gmra.mrb[0].mxu0 %v280
  %v989 = vpop.f32.mrb[0].mxu0
  %v990 = vadd.f32 0.0, %v989
  %v991 = vpop.f32.mrb[0].mxu0
  %992 = vmatprep.mubr.f32.mxu0 0.0
  %993 = vmatmul.mubr.f32.gmra.mrb[0].mxu0 %v283
  %v994 = vpop.f32.mrb[0].mxu0
  %v995 = vadd.f32 0.0, %v994
  %v996 = vpop.f32.mrb[0].mxu0
  %997 = vmatprep.mubr.f32.mxu0 0.0
  %998 = vmatmul.mubr.f32.gmra.mrb[0].mxu0 %v286
  %v999 = vpop.f32.mrb[0].mxu0
  %v1000 = vadd.f32 0.0, %v999
  %v1001 = vpop.f32.mrb[0].mxu0
  %1002 = vmatprep.mubr.f32.mxu0 0.0
  %1003 = vmatmul.mubr.f32.gmra.mrb[0].mxu0 %v289
  %v1004 = vpop.f32.mrb[0].mxu0
  %v1005 = vadd.f32 0.0, %v1004
  %v1006 = vpop.f32.mrb[0].mxu0
  %1007 = vmatprep.mubr.f32.mxu0 0.0
  %1008 = vmatmul.mubr.f32.gmra.mrb[0].mxu0 %v292
  %v1009 = vpop.f32.mrb[0].mxu0
  %v1010 = vadd.f32 0.0, %v1009
  %v1011 = vpop.f32.mrb[0].mxu0
  %1012 = vmatprep.mubr.f32.mxu0 0.0
  %1013 = vmatmul.mubr.f32.gmra.mrb[0].mxu0 %v295
  %v1014 = vpop.f32.mrb[0].mxu0
  %v1015 = vadd.f32 0.0, %v1014
  %v1016 = vpop.f32.mrb[0].mxu0
  %1017 = vmatprep.mubr.f32.mxu0 0.0
  %1018 = vmatmul.mubr.f32.gmra.mrb[0].mxu0 %v298
  %v1019 = vpop.f32.mrb[0].mxu0
  %v1020 = vadd.f32 0.0, %v1019
  %v1021 = vpop.f32.mrb[0].mxu0
  %1022 = vmatprep.mubr.f32.mxu0 0.0
  %1023 = vmatmul.mubr.f32.gmra.mrb[0].mxu0 %v301
  %v1024 = vpop.f32.mrb[0].mxu0
  %v1025 = vadd.f32 0.0, %v1024
  %v1026 = vpop.f32.mrb[0].mxu0
  %1027 = vmatprep.mubr.f32.mxu0 0.0
  %1028 = vmatmul.mubr.f32.gmra.mrb[0].mxu0 %v304
  %v1029 = vpop.f32.mrb[0].mxu0
  %v1030 = vadd.f32 0.0, %v1029
  %v1031 = vpop.f32.mrb[0].mxu0
  %1032 = vmatprep.mubr.f32.mxu0 0.0
  %1033 = vmatmul.mubr.f32.gmra.mrb[0].mxu0 %v307
  %v1034 = vpop.f32.mrb[0].mxu0
  %v1035 = vadd.f32 0.0, %v1034
  %v1036 = vpop.f32.mrb[0].mxu0
  %1037 = vmatprep.mubr.f32.mxu0 0.0
  %1038 = vmatmul.mubr.f32.gmra.mrb[0].mxu0 %v310
  %v1039 = vpop.f32.mrb[0].mxu0
  %v1040 = vadd.f32 0.0, %v1039
  %v1041 = vpop.f32.mrb[0].mxu0
  %1042 = vmatprep.mubr.f32.mxu0 0.0
  %1043 = vmatmul.mubr.f32.gmra.mrb[0].mxu0 %v313
  %v1044 = vpop.f32.mrb[0].mxu0
  %v1045 = vadd.f32 0.0, %v1044
  %v1046 = vpop.f32.mrb[0].mxu0
  %1047 = vmatprep.mubr.f32.mxu0 0.0
  %1048 = vmatmul.mubr.f32.gmra.mrb[0].mxu0 %v316
  %v1049 = vpop.f32.mrb[0].mxu0
  %v1050 = vadd.f32 0.0, %v1049
  %v1051 = vpop.f32.mrb[0].mxu0
  %1052 = vmatprep.mubr.f32.mxu0 0.0
  %1053 = vmatmul.mubr.f32.gmra.mrb[0].mxu0 %v319
  %v1054 = vpop.f32.mrb[0].mxu0
  %v1055 = vadd.f32 0.0, %v1054
  %v1056 = vpop.f32.mrb[0].mxu0
  %1057 = vmatprep.mubr.f32.mxu0 0.0
  %1058 = vmatmul.mubr.f32.gmra.mrb[0].mxu0 %v322
  %v1059 = vpop.f32.mrb[0].mxu0
  %v1060 = vadd.f32 0.0, %v1059
  %v1061 = vpop.f32.mrb[0].mxu0
  %1062 = vmatprep.mubr.f32.mxu0 0.0
  %1063 = vmatmul.mubr.f32.gmra.mrb[0].mxu0 %v325
  %v1064 = vpop.f32.mrb[0].mxu0
  %v1065 = vadd.f32 0.0, %v1064
  %v1066 = vpop.f32.mrb[0].mxu0
  %1067 = vmatprep.mubr.f32.mxu0 0.0
  %1068 = vmatmul.mubr.f32.gmra.mrb[0].mxu0 %v328
  %v1069 = vpop.f32.mrb[0].mxu0
  %v1070 = vadd.f32 0.0, %v1069
  %v1071 = vpop.f32.mrb[0].mxu0
  %1072 = vmatprep.mubr.f32.mxu0 0.0
  %1073 = vmatmul.mubr.f32.gmra.mrb[0].mxu0 %v331
  %v1074 = vpop.f32.mrb[0].mxu0
  %v1075 = vadd.f32 0.0, %v1074
  %v1076 = vpop.f32.mrb[0].mxu0
  %1077 = vmatprep.mubr.f32.mxu0 0.0
  %1078 = vmatmul.mubr.f32.gmra.mrb[0].mxu0 %v334
  %v1079 = vpop.f32.mrb[0].mxu0
  %v1080 = vadd.f32 0.0, %v1079
  %v1081 = vpop.f32.mrb[0].mxu0
  %1082 = vmatprep.mubr.f32.mxu0 0.0
  %1083 = vmatmul.mubr.f32.gmra.mrb[0].mxu0 %v337
  %v1084 = vpop.f32.mrb[0].mxu0
  %v1085 = vadd.f32 0.0, %v1084
  %v1086 = vpop.f32.mrb[0].mxu0
  %1087 = vmatprep.mubr.f32.mxu0 0.0
  %1088 = vmatmul.mubr.f32.gmra.mrb[0].mxu0 %v340
  %v1089 = vpop.f32.mrb[0].mxu0
  %v1090 = vadd.f32 0.0, %v1089
  %v1091 = vpop.f32.mrb[0].mxu0
  %1092 = vmatprep.mubr.f32.mxu0 0.0
  %1093 = vmatmul.mubr.f32.gmra.mrb[0].mxu0 %v343
  %v1094 = vpop.f32.mrb[0].mxu0
  %v1095 = vadd.f32 0.0, %v1094
  %v1096 = vpop.f32.mrb[0].mxu0
  %1097 = vmatprep.mubr.f32.mxu0 0.0
  %1098 = vmatmul.mubr.f32.gmra.mrb[0].mxu0 %v346
  %v1099 = vpop.f32.mrb[0].mxu0
  %v1100 = vadd.f32 0.0, %v1099
  %v1101 = vpop.f32.mrb[0].mxu0
  %1102 = vmatprep.mubr.f32.mxu0 0.0
  %1103 = vmatmul.mubr.f32.gmra.mrb[0].mxu0 %v349
  %v1104 = vpop.f32.mrb[0].mxu0
  %v1105 = vadd.f32 0.0, %v1104
  %v1106 = vpop.f32.mrb[0].mxu0
  %1107 = vmatprep.mubr.f32.mxu0 0.0
  %1108 = vmatmul.mubr.f32.gmra.mrb[0].mxu0 %v352
  %v1109 = vpop.f32.mrb[0].mxu0
  %v1110 = vadd.f32 0.0, %v1109
  %v1111 = vpop.f32.mrb[0].mxu0
  %1112 = vmatprep.mubr.f32.mxu0 0.0
  %1113 = vmatmul.mubr.f32.gmra.mrb[0].mxu0 %v355
  %v1114 = vpop.f32.mrb[0].mxu0
  %v1115 = vadd.f32 0.0, %v1114
  %v1116 = vpop.f32.mrb[0].mxu0
  %1117 = vmatprep.mubr.f32.mxu0 0.0
  %1118 = vmatmul.mubr.f32.gmra.mrb[0].mxu0 %v358
  %v1119 = vpop.f32.mrb[0].mxu0
  %v1120 = vadd.f32 0.0, %v1119
  %v1121 = vpop.f32.mrb[0].mxu0
  %1122 = vmatprep.mubr.f32.mxu0 0.0
  %1123 = vmatmul.mubr.f32.gmra.mrb[0].mxu0 %v361
  %v1124 = vpop.f32.mrb[0].mxu0
  %v1125 = vadd.f32 0.0, %v1124
  %v1126 = vpop.f32.mrb[0].mxu0
  %1127 = vmatprep.mubr.f32.mxu0 0.0
  %1128 = vmatmul.mubr.f32.gmra.mrb[0].mxu0 %v364
  %v1129 = vpop.f32.mrb[0].mxu0
  %v1130 = vadd.f32 0.0, %v1129
  %v1131 = vpop.f32.mrb[0].mxu0
  %1132 = vmatprep.mubr.f32.mxu0 0.0
  %1133 = vmatmul.mubr.f32.gmra.mrb[0].mxu0 %v367
  %v1134 = vpop.f32.mrb[0].mxu0
  %v1135 = vadd.f32 0.0, %v1134
  %v1136 = vpop.f32.mrb[0].mxu0
  %1137 = vmatprep.mubr.f32.mxu0 0.0
  %1138 = vmatmul.mubr.f32.gmra.mrb[0].mxu0 %v370
  %v1139 = vpop.f32.mrb[0].mxu0
  %v1140 = vadd.f32 0.0, %v1139
  %v1141 = vpop.f32.mrb[0].mxu0
  %1142 = vmatprep.mubr.f32.mxu0 0.0
  %1143 = vmatmul.mubr.f32.gmra.mrb[0].mxu0 %v373
  %v1144 = vpop.f32.mrb[0].mxu0
  %v1145 = vadd.f32 0.0, %v1144
  %v1146 = vpop.f32.mrb[0].mxu0
  %1147 = vmatprep.mubr.f32.mxu0 0.0
  %1148 = vmatmul.mubr.f32.gmra.mrb[0].mxu0 %v376
  %v1149 = vpop.f32.mrb[0].mxu0
  %v1150 = vadd.f32 0.0, %v1149
  %v1151 = vpop.f32.mrb[0].mxu0
  %1152 = vmatprep.mubr.f32.mxu0 0.0
  %1153 = vmatmul.mubr.f32.gmra.mrb[0].mxu0 %v379
  %v1154 = vpop.f32.mrb[0].mxu0
  %v1155 = vadd.f32 0.0, %v1154
  %v1156 = vpop.f32.mrb[0].mxu0
  %1157 = vmatprep.mubr.f32.mxu0 0.0
  %1158 = vmatmul.mubr.f32.gmra.mrb[0].mxu0 %v382
  %v1159 = vpop.f32.mrb[0].mxu0
  %v1160 = vadd.f32 0.0, %v1159
  %v1161 = vpop.f32.mrb[0].mxu0
  %1162 = vmatprep.mubr.f32.mxu0 0.0
  %1163 = vmatmul.mubr.f32.gmra.mrb[0].mxu0 %v385
  %v1164 = vpop.f32.mrb[0].mxu0
  %v1165 = vadd.f32 0.0, %v1164
  %v1166 = vpop.f32.mrb[0].mxu0
  %1167 = vmatprep.mubr.f32.mxu0 0.0
  %1168 = vmatmul.mubr.f32.gmra.mrb[0].mxu0 %v388
  %v1169 = vpop.f32.mrb[0].mxu0
  %v1170 = vadd.f32 0.0, %v1169
  %v1171 = vpop.f32.mrb[0].mxu0
  %1172 = vmatprep.mubr.f32.mxu0 0.0
  %1173 = vmatmul.mubr.f32.gmra.mrb[0].mxu0 %v391
  %v1174 = vpop.f32.mrb[0].mxu0
  %v1175 = vadd.f32 0.0, %v1174
  %v1176 = vpop.f32.mrb[0].mxu0
  %1177 = vmatprep.mubr.f32.mxu0 0.0
  %1178 = vmatmul.mubr.f32.gmra.mrb[0].mxu0 %v394
  %v1179 = vpop.f32.mrb[0].mxu0
  %v1180 = vadd.f32 0.0, %v1179
  %v1181 = vpop.f32.mrb[0].mxu0
  %1182 = vmatprep.mubr.f32.mxu0 0.0
  %1183 = vmatmul.mubr.f32.gmra.mrb[0].mxu0 %v397
  %v1184 = vpop.f32.mrb[0].mxu0
  %v1185 = vadd.f32 0.0, %v1184
  %v1186 = vpop.f32.mrb[0].mxu0
  %1187 = vmatprep.mubr.f32.mxu0 0.0
  %1188 = vmatmul.mubr.f32.gmra.mrb[0].mxu0 %v400
  %v1189 = vpop.f32.mrb[0].mxu0
  %v1190 = vadd.f32 0.0, %v1189
  %v1191 = vpop.f32.mrb[0].mxu0
  %1192 = vmatprep.mubr.f32.mxu0 0.0
  %1193 = vmatmul.mubr.f32.gmra.mrb[0].mxu0 %v403
  %v1194 = vpop.f32.mrb[0].mxu0
  %v1195 = vadd.f32 0.0, %v1194
  %v1196 = vpop.f32.mrb[0].mxu0
  %1197 = vmatprep.mubr.f32.mxu0 0.0
  %1198 = vmatmul.mubr.f32.gmra.mrb[0].mxu0 %v406
  %v1199 = vpop.f32.mrb[0].mxu0
  %v1200 = vadd.f32 0.0, %v1199
  %v1201 = vpop.f32.mrb[0].mxu0
  %1202 = vmatprep.mubr.f32.mxu0 0.0
  %1203 = vmatmul.mubr.f32.gmra.mrb[0].mxu0 %v409
  %v1204 = vpop.f32.mrb[0].mxu0
  %v1205 = vadd.f32 0.0, %v1204
  %v1206 = vpop.f32.mrb[0].mxu0
  %1207 = vmatprep.mubr.f32.mxu0 0.0
  %1208 = vmatmul.mubr.f32.gmra.mrb[0].mxu0 %v412
  %v1209 = vpop.f32.mrb[0].mxu0
  %v1210 = vadd.f32 0.0, %v1209
  %v1211 = vpop.f32.mrb[0].mxu0
  %1212 = vmatprep.mubr.f32.mxu0 0.0
  %1213 = vmatmul.mubr.f32.gmra.mrb[0].mxu0 %v415
  %v1214 = vpop.f32.mrb[0].mxu0
  %v1215 = vadd.f32 0.0, %v1214
  %v1216 = vpop.f32.mrb[0].mxu0
  %1217 = vmatprep.mubr.f32.mxu0 0.0
  %1218 = vmatmul.mubr.f32.gmra.mrb[0].mxu0 %v418
  %v1219 = vpop.f32.mrb[0].mxu0
  %v1220 = vadd.f32 0.0, %v1219
  %v1221 = vpop.f32.mrb[0].mxu0
  %1222 = vmatprep.mubr.f32.mxu0 0.0
  %1223 = vmatmul.mubr.f32.gmra.mrb[0].mxu0 %v421
  %v1224 = vpop.f32.mrb[0].mxu0
  %v1225 = vadd.f32 0.0, %v1224
  %v1226 = vpop.f32.mrb[0].mxu0
  %1227 = vmatprep.mubr.f32.mxu0 0.0
  %1228 = vmatmul.mubr.f32.gmra.mrb[0].mxu0 %v424
  %v1229 = vpop.f32.mrb[0].mxu0
  %v1230 = vadd.f32 0.0, %v1229
  %v1231 = vpop.f32.mrb[0].mxu0
  %1232 = vmatprep.mubr.f32.mxu0 0.0
  %1233 = vmatmul.mubr.f32.gmra.mrb[0].mxu0 %v427
  %v1234 = vpop.f32.mrb[0].mxu0
  %v1235 = vadd.f32 0.0, %v1234
  %v1236 = vpop.f32.mrb[0].mxu0
  %1237 = vmatprep.mubr.f32.mxu0 0.0
  %1238 = vmatmul.mubr.f32.gmra.mrb[0].mxu0 %v430
  %v1239 = vpop.f32.mrb[0].mxu0
  %v1240 = vadd.f32 0.0, %v1239
  %v1241 = vpop.f32.mrb[0].mxu0
  %1242 = vmatprep.mubr.f32.mxu0 0.0
  %1243 = vmatmul.mubr.f32.gmra.mrb[0].mxu0 %v433
  %v1244 = vpop.f32.mrb[0].mxu0
  %v1245 = vadd.f32 0.0, %v1244
  %v1246 = vpop.f32.mrb[0].mxu0
  %1247 = vmatprep.mubr.f32.mxu0 0.0
  %1248 = vmatmul.mubr.f32.gmra.mrb[0].mxu0 %v436
  %v1249 = vpop.f32.mrb[0].mxu0
  %v1250 = vadd.f32 0.0, %v1249
  %v1251 = vpop.f32.mrb[0].mxu0
  %1252 = vmatprep.mubr.f32.mxu0 0.0
  %1253 = vmatmul.mubr.f32.gmra.mrb[0].mxu0 %v439
  %v1254 = vpop.f32.mrb[0].mxu0
  %v1255 = vadd.f32 0.0, %v1254
  %v1256 = vpop.f32.mrb[0].mxu0
  %1257 = vmatprep.mubr.f32.mxu0 0.0
  %1258 = vmatmul.mubr.f32.gmra.mrb[0].mxu0 %v442
  %v1259 = vpop.f32.mrb[0].mxu0
  %v1260 = vadd.f32 0.0, %v1259
  %v1261 = vpop.f32.mrb[0].mxu0
  %1262 = vmatprep.mubr.f32.mxu0 0.0
  %1263 = vmatmul.mubr.f32.gmra.mrb[0].mxu0 %v445
  %v1264 = vpop.f32.mrb[0].mxu0
  %v1265 = vadd.f32 0.0, %v1264
  %v1266 = vpop.f32.mrb[0].mxu0
  %1267 = vmatprep.mubr.f32.mxu0 0.0
  %1268 = vmatmul.mubr.f32.gmra.mrb[0].mxu0 %v448
  %v1269 = vpop.f32.mrb[0].mxu0
  %v1270 = vadd.f32 0.0, %v1269
  %v1271 = vpop.f32.mrb[0].mxu0
  %1272 = vmatprep.mubr.f32.mxu0 0.0
  %1273 = vmatmul.mubr.f32.gmra.mrb[0].mxu0 %v451
  %v1274 = vpop.f32.mrb[0].mxu0
  %v1275 = vadd.f32 0.0, %v1274
  %v1276 = vpop.f32.mrb[0].mxu0
  %1277 = vmatprep.mubr.f32.mxu0 0.0
  %1278 = vmatmul.mubr.f32.gmra.mrb[0].mxu0 %v454
  %v1279 = vpop.f32.mrb[0].mxu0
  %v1280 = vadd.f32 0.0, %v1279
  %v1281 = vpop.f32.mrb[0].mxu0
  %1282 = vmatprep.mubr.f32.mxu0 0.0
  %1283 = vmatmul.mubr.f32.gmra.mrb[0].mxu0 %v457
  %v1284 = vpop.f32.mrb[0].mxu0
  %v1285 = vadd.f32 0.0, %v1284
  %v1286 = vpop.f32.mrb[0].mxu0
  %1287 = vmatprep.mubr.f32.mxu0 0.0
  %1288 = vmatmul.mubr.f32.gmra.mrb[0].mxu0 %v460
  %v1289 = vpop.f32.mrb[0].mxu0
  %v1290 = vadd.f32 0.0, %v1289
  %v1291 = vpop.f32.mrb[0].mxu0
  %1292 = vmatprep.mubr.f32.mxu0 0.0
  %1293 = vmatmul.mubr.f32.gmra.mrb[0].mxu0 %v463
  %v1294 = vpop.f32.mrb[0].mxu0
  %v1295 = vadd.f32 0.0, %v1294
  %v1296 = vpop.f32.mrb[0].mxu0
  %1297 = vmatprep.mubr.f32.mxu0 0.0
  %1298 = vmatmul.mubr.f32.gmra.mrb[0].mxu0 %v466
  %v1299 = vpop.f32.mrb[0].mxu0
  %v1300 = vadd.f32 0.0, %v1299
  %v1301 = vpop.f32.mrb[0].mxu0
  %1302 = vmatprep.mubr.f32.mxu0 0.0
  %1303 = vmatmul.mubr.f32.gmra.mrb[0].mxu0 %v469
  %v1304 = vpop.f32.mrb[0].mxu0
  %v1305 = vadd.f32 0.0, %v1304
  %v1306 = vpop.f32.mrb[0].mxu0
  %1307 = vmatprep.mubr.f32.mxu0 0.0
  %1308 = vmatmul.mubr.f32.gmra.mrb[0].mxu0 %v472
  %v1309 = vpop.f32.mrb[0].mxu0
  %v1310 = vadd.f32 0.0, %v1309
  %v1311 = vpop.f32.mrb[0].mxu0
  %1312 = vmatprep.mubr.f32.mxu0 0.0
  %1313 = vmatmul.mubr.f32.gmra.mrb[0].mxu0 %v475
  %v1314 = vpop.f32.mrb[0].mxu0
  %v1315 = vadd.f32 0.0, %v1314
  %v1316 = vpop.f32.mrb[0].mxu0
  %1317 = vmatprep.mubr.f32.mxu0 0.0
  %1318 = vmatmul.mubr.f32.gmra.mrb[0].mxu0 %v478
  %v1319 = vpop.f32.mrb[0].mxu0
  %v1320 = vadd.f32 0.0, %v1319
  %v1321 = vpop.f32.mrb[0].mxu0
  %1322 = vmatprep.mubr.f32.mxu0 0.0
  %1323 = vmatmul.mubr.f32.gmra.mrb[0].mxu0 %v481
  %v1324 = vpop.f32.mrb[0].mxu0
  %v1325 = vadd.f32 0.0, %v1324
  %v1326 = vpop.f32.mrb[0].mxu0
  %1327 = vmatprep.mubr.f32.mxu0 0.0
  %1328 = vmatmul.mubr.f32.gmra.mrb[0].mxu0 %v484
  %v1329 = vpop.f32.mrb[0].mxu0
  %v1330 = vadd.f32 0.0, %v1329
  %v1331 = vpop.f32.mrb[0].mxu0
  %1332 = vmatprep.mubr.f32.mxu0 0.0
  %1333 = vmatmul.mubr.f32.gmra.mrb[0].mxu0 %v487
  %v1334 = vpop.f32.mrb[0].mxu0
  %v1335 = vadd.f32 0.0, %v1334
  %v1336 = vpop.f32.mrb[0].mxu0
  %1337 = vmatprep.mubr.f32.mxu0 0.0
  %1338 = vmatmul.mubr.f32.gmra.mrb[0].mxu0 %v490
  %v1339 = vpop.f32.mrb[0].mxu0
  %v1340 = vadd.f32 0.0, %v1339
  %v1341 = vpop.f32.mrb[0].mxu0
  %1342 = vmatprep.mubr.f32.mxu0 0.0
  %1343 = vmatmul.mubr.f32.gmra.mrb[0].mxu0 %v493
  %v1344 = vpop.f32.mrb[0].mxu0
  %v1345 = vadd.f32 0.0, %v1344
  %v1346 = vpop.f32.mrb[0].mxu0
  %1347 = vmatprep.mubr.f32.mxu0 0.0
  %1348 = vmatmul.mubr.f32.gmra.mrb[0].mxu0 %v496
  %v1349 = vpop.f32.mrb[0].mxu0
  %v1350 = vadd.f32 0.0, %v1349
  %v1351 = vpop.f32.mrb[0].mxu0
  %1352 = vmatprep.mubr.f32.mxu0 0.0
  %1353 = vmatmul.mubr.f32.gmra.mrb[0].mxu0 %v499
  %v1354 = vpop.f32.mrb[0].mxu0
  %v1355 = vadd.f32 0.0, %v1354
  %v1356 = vpop.f32.mrb[0].mxu0
  %1357 = vmatprep.mubr.f32.mxu0 0.0
  %1358 = vmatmul.mubr.f32.gmra.mrb[0].mxu0 %v502
  %v1359 = vpop.f32.mrb[0].mxu0
  %v1360 = vadd.f32 0.0, %v1359
  %v1361 = vpop.f32.mrb[0].mxu0
  %1362 = vmatprep.mubr.f32.mxu0 0.0
  %1363 = vmatmul.mubr.f32.gmra.mrb[0].mxu0 %v505
  %v1364 = vpop.f32.mrb[0].mxu0
  %v1365 = vadd.f32 0.0, %v1364
  %v1366 = vpop.f32.mrb[0].mxu0
  %1367 = vmatprep.mubr.f32.mxu0 0.0
  %1368 = vmatmul.mubr.f32.gmra.mrb[0].mxu0 %v508
  %v1369 = vpop.f32.mrb[0].mxu0
  %v1370 = vadd.f32 0.0, %v1369
  %v1371 = vpop.f32.mrb[0].mxu0
  %1372 = vmatprep.mubr.f32.mxu0 0.0
  %1373 = vmatmul.mubr.f32.gmra.mrb[0].mxu0 %v511
  %v1374 = vpop.f32.mrb[0].mxu0
  %v1375 = vadd.f32 0.0, %v1374
  %v1376 = vpop.f32.mrb[0].mxu0
  %1377 = vmatprep.mubr.f32.mxu0 0.0
  %1378 = vmatmul.mubr.f32.gmra.mrb[0].mxu0 %v514
  %v1379 = vpop.f32.mrb[0].mxu0
  %v1380 = vadd.f32 0.0, %v1379
  %v1381 = vpop.f32.mrb[0].mxu0
  %1382 = vmatprep.mubr.f32.mxu0 0.0
  %1383 = vmatmul.mubr.f32.gmra.mrb[0].mxu0 %v517
  %v1384 = vpop.f32.mrb[0].mxu0
  %v1385 = vadd.f32 0.0, %v1384
  %v1386 = vpop.f32.mrb[0].mxu0
  %1387 = vmatprep.mubr.f32.mxu0 0.0
  %1388 = vmatmul.mubr.f32.gmra.mrb[0].mxu0 %v520
  %v1389 = vpop.f32.mrb[0].mxu0
  %v1390 = vadd.f32 0.0, %v1389
  %v1391 = vpop.f32.mrb[0].mxu0
  %1392 = vmatprep.mubr.f32.mxu0 0.0
  %1393 = vmatmul.mubr.f32.gmra.mrb[0].mxu0 %v523
  %v1394 = vpop.f32.mrb[0].mxu0
  %v1395 = vadd.f32 0.0, %v1394
  %v1396 = vpop.f32.mrb[0].mxu0
  %1397 = vmatprep.mubr.f32.mxu0 0.0
  %1398 = vmatmul.mubr.f32.gmra.mrb[0].mxu0 %v526
  %v1399 = vpop.f32.mrb[0].mxu0
  %v1400 = vadd.f32 0.0, %v1399
  %v1401 = vpop.f32.mrb[0].mxu0
  %1402 = vmatprep.mubr.f32.mxu0 0.0
  %1403 = vmatmul.mubr.f32.gmra.mrb[0].mxu0 %v529
  %v1404 = vpop.f32.mrb[0].mxu0
  %v1405 = vadd.f32 0.0, %v1404
  %v1406 = vpop.f32.mrb[0].mxu0
  %1407 = vmatprep.mubr.f32.mxu0 0.0
  %1408 = vmatmul.mubr.f32.gmra.mrb[0].mxu0 %v532
  %v1409 = vpop.f32.mrb[0].mxu0
  %v1410 = vadd.f32 0.0, %v1409
  %v1411 = vpop.f32.mrb[0].mxu0
  %1412 = vmatprep.mubr.f32.mxu0 0.0
  %1413 = vmatmul.mubr.f32.gmra.mrb[0].mxu0 %v535
  %v1414 = vpop.f32.mrb[0].mxu0
  %v1415 = vadd.f32 0.0, %v1414
  %v1416 = vpop.f32.mrb[0].mxu0
  %1417 = vmatprep.mubr.f32.mxu0 0.0
  %1418 = vmatmul.mubr.f32.gmra.mrb[0].mxu0 %v538
  %v1419 = vpop.f32.mrb[0].mxu0
  %v1420 = vadd.f32 0.0, %v1419
  %v1421 = vpop.f32.mrb[0].mxu0
  %1422 = vmatprep.mubr.f32.mxu0 0.0
  %1423 = vmatmul.mubr.f32.gmra.mrb[0].mxu0 %v541
  %v1424 = vpop.f32.mrb[0].mxu0
  %v1425 = vadd.f32 0.0, %v1424
  %v1426 = vpop.f32.mrb[0].mxu0
  %1427 = vmatprep.mubr.f32.mxu0 0.0
  %1428 = vmatmul.mubr.f32.gmra.mrb[0].mxu0 %v544
  %v1429 = vpop.f32.mrb[0].mxu0
  %v1430 = vadd.f32 0.0, %v1429
  %v1431 = vpop.f32.mrb[0].mxu0
  %1432 = vmatprep.mubr.f32.mxu0 0.0
  %1433 = vmatmul.mubr.f32.gmra.mrb[0].mxu0 %v547
  %v1434 = vpop.f32.mrb[0].mxu0
  %v1435 = vadd.f32 0.0, %v1434
  %v1436 = vpop.f32.mrb[0].mxu0
  %1437 = vmatprep.mubr.f32.mxu0 0.0
  %1438 = vmatmul.mubr.f32.gmra.mrb[0].mxu0 %v550
  %v1439 = vpop.f32.mrb[0].mxu0
  %v1440 = vadd.f32 0.0, %v1439
  %v1441 = vpop.f32.mrb[0].mxu0
  %1442 = vmatprep.mubr.f32.mxu0 0.0
  %1443 = vmatmul.mubr.f32.gmra.mrb[0].mxu0 %v553
  %v1444 = vpop.f32.mrb[0].mxu0
  %v1445 = vadd.f32 0.0, %v1444
  %v1446 = vpop.f32.mrb[0].mxu0
  %1447 = vmatprep.mubr.f32.mxu0 0.0
  %1448 = vmatmul.mubr.f32.gmra.mrb[0].mxu0 %v556
  %v1449 = vpop.f32.mrb[0].mxu0
  %v1450 = vadd.f32 0.0, %v1449
  %v1451 = vpop.f32.mrb[0].mxu0
  %1452 = vmatprep.mubr.f32.mxu0 0.0
  %1453 = vmatmul.mubr.f32.gmra.mrb[0].mxu0 %v559
  %v1454 = vpop.f32.mrb[0].mxu0
  %v1455 = vadd.f32 0.0, %v1454
  %v1456 = vpop.f32.mrb[0].mxu0
  %1457 = vmatprep.mubr.f32.mxu0 0.0
  %1458 = vmatmul.mubr.f32.gmra.mrb[0].mxu0 %v562
  %v1459 = vpop.f32.mrb[0].mxu0
  %v1460 = vadd.f32 0.0, %v1459
  %v1461 = vpop.f32.mrb[0].mxu0
  %1462 = vmatprep.mubr.f32.mxu0 0.0
  %1463 = vmatmul.mubr.f32.gmra.mrb[0].mxu0 %v565
  %v1464 = vpop.f32.mrb[0].mxu0
  %v1465 = vadd.f32 0.0, %v1464
  %v1466 = vpop.f32.mrb[0].mxu0
  %1467 = vmatprep.mubr.f32.mxu0 0.0
  %1468 = vmatmul.mubr.f32.gmra.mrb[0].mxu0 %v568
  %v1469 = vpop.f32.mrb[0].mxu0
  %v1470 = vadd.f32 0.0, %v1469
  %v1471 = vpop.f32.mrb[0].mxu0
  %1472 = vmatprep.mubr.f32.mxu0 0.0
  %1473 = vmatmul.mubr.f32.gmra.mrb[0].mxu0 %v571
  %v1474 = vpop.f32.mrb[0].mxu0
  %v1475 = vadd.f32 0.0, %v1474
  %v1476 = vpop.f32.mrb[0].mxu0
  %1477 = vmatprep.mubr.f32.mxu0 0.0
  %1478 = vmatmul.mubr.f32.gmra.mrb[0].mxu0 %v574
  %v1479 = vpop.f32.mrb[0].mxu0
  %v1480 = vadd.f32 0.0, %v1479
  %v1481 = vpop.f32.mrb[0].mxu0
  %1482 = vmatprep.mubr.f32.mxu0 0.0
  %1483 = vmatmul.mubr.f32.gmra.mrb[0].mxu0 %v577
  %v1484 = vpop.f32.mrb[0].mxu0
  %v1485 = vadd.f32 0.0, %v1484
  %v1486 = vpop.f32.mrb[0].mxu0
  %1487 = vmatprep.mubr.f32.mxu0 0.0
  %1488 = vmatmul.mubr.f32.gmra.mrb[0].mxu0 %v580
  %v1489 = vpop.f32.mrb[0].mxu0
  %v1490 = vadd.f32 0.0, %v1489
  %v1491 = vpop.f32.mrb[0].mxu0
  %1492 = vmatprep.mubr.f32.mxu0 0.0
  %1493 = vmatmul.mubr.f32.gmra.mrb[0].mxu0 %v583
  %v1494 = vpop.f32.mrb[0].mxu0
  %v1495 = vadd.f32 0.0, %v1494
  %v1496 = vpop.f32.mrb[0].mxu0
  %1497 = vmatprep.mubr.f32.mxu0 0.0
  %1498 = vmatmul.mubr.f32.gmra.mrb[0].mxu0 %v586
  %v1499 = vpop.f32.mrb[0].mxu0
  %v1500 = vadd.f32 0.0, %v1499
  %v1501 = vpop.f32.mrb[0].mxu0
  %1502 = vmatprep.mubr.f32.mxu0 0.0
  %1503 = vmatmul.mubr.f32.gmra.mrb[0].mxu0 %v589
  %v1504 = vpop.f32.mrb[0].mxu0
  %v1505 = vadd.f32 0.0, %v1504
  %v1506 = vpop.f32.mrb[0].mxu0
  %1507 = vmatprep.mubr.f32.mxu0 0.0
  %1508 = vmatmul.mubr.f32.gmra.mrb[0].mxu0 %v592
  %v1509 = vpop.f32.mrb[0].mxu0
  %v1510 = vadd.f32 0.0, %v1509
  %v1511 = vpop.f32.mrb[0].mxu0
  %1512 = vmatprep.mubr.f32.mxu0 0.0
  %1513 = vmatmul.mubr.f32.gmra.mrb[0].mxu0 %v595
  %v1514 = vpop.f32.mrb[0].mxu0
  %v1515 = vadd.f32 0.0, %v1514
  %v1516 = vpop.f32.mrb[0].mxu0
  %1517 = vmatprep.mubr.f32.mxu0 0.0
  %1518 = vmatmul.mubr.f32.gmra.mrb[0].mxu0 %v598
  %v1519 = vpop.f32.mrb[0].mxu0
  %v1520 = vadd.f32 0.0, %v1519
  %v1521 = vpop.f32.mrb[0].mxu0
  %1522 = vmatprep.mubr.f32.mxu0 0.0
  %1523 = vmatmul.mubr.f32.gmra.mrb[0].mxu0 %v601
  %v1524 = vpop.f32.mrb[0].mxu0
  %v1525 = vadd.f32 0.0, %v1524
  %v1526 = vpop.f32.mrb[0].mxu0
  %1527 = vmatprep.mubr.f32.mxu0 0.0
  %1528 = vmatmul.mubr.f32.gmra.mrb[0].mxu0 %v604
  %v1529 = vpop.f32.mrb[0].mxu0
  %v1530 = vadd.f32 0.0, %v1529
  %v1531 = vpop.f32.mrb[0].mxu0
  %1532 = vmatprep.mubr.f32.mxu0 0.0
  %1533 = vmatmul.mubr.f32.gmra.mrb[0].mxu0 %v607
  %v1534 = vpop.f32.mrb[0].mxu0
  %v1535 = vadd.f32 0.0, %v1534
  %v1536 = vpop.f32.mrb[0].mxu0
  %1537 = vmatprep.mubr.f32.mxu0 0.0
  %1538 = vmatmul.mubr.f32.gmra.mrb[0].mxu0 %v610
  %v1539 = vpop.f32.mrb[0].mxu0
  %v1540 = vadd.f32 0.0, %v1539
  %v1541 = vpop.f32.mrb[0].mxu0
  %1542 = vmatprep.mubr.f32.mxu0 0.0
  %1543 = vmatmul.mubr.f32.gmra.mrb[0].mxu0 %v613
  %v1544 = vpop.f32.mrb[0].mxu0
  %v1545 = vadd.f32 0.0, %v1544
  %v1546 = vpop.f32.mrb[0].mxu0
  %1547 = vmatprep.mubr.f32.mxu0 0.0
  %1548 = vmatmul.mubr.f32.gmra.mrb[0].mxu0 %v616
  %v1549 = vpop.f32.mrb[0].mxu0
  %v1550 = vadd.f32 0.0, %v1549
  %v1551 = vpop.f32.mrb[0].mxu0
  %1552 = vmatprep.mubr.f32.mxu0 0.0
  %1553 = vmatmul.mubr.f32.gmra.mrb[0].mxu0 %v619
  %v1554 = vpop.f32.mrb[0].mxu0
  %v1555 = vadd.f32 0.0, %v1554
  %v1556 = vpop.f32.mrb[0].mxu0
  %1557 = vmatprep.mubr.f32.mxu0 0.0
  %1558 = vmatmul.mubr.f32.gmra.mrb[0].mxu0 %v622
  %v1559 = vpop.f32.mrb[0].mxu0
  %v1560 = vadd.f32 0.0, %v1559
  %v1561 = vpop.f32.mrb[0].mxu0
  %1562 = vmatprep.mubr.f32.mxu0 0.0
  %1563 = vmatmul.mubr.f32.gmra.mrb[0].mxu0 %v625
  %v1564 = vpop.f32.mrb[0].mxu0
  %v1565 = vadd.f32 0.0, %v1564
  %v1566 = vpop.f32.mrb[0].mxu0
  %1567 = vmatprep.mubr.f32.mxu0 0.0
  %1568 = vmatmul.mubr.f32.gmra.mrb[0].mxu0 %v628
  %v1569 = vpop.f32.mrb[0].mxu0
  %v1570 = vadd.f32 0.0, %v1569
  %v1571 = vpop.f32.mrb[0].mxu0
  %1572 = vmatprep.mubr.f32.mxu0 0.0
  %1573 = vmatmul.mubr.f32.gmra.mrb[0].mxu0 %v631
  %v1574 = vpop.f32.mrb[0].mxu0
  %v1575 = vadd.f32 0.0, %v1574
  %v1576 = vpop.f32.mrb[0].mxu0
  %1577 = vmatprep.mubr.f32.mxu0 0.0
  %1578 = vmatmul.mubr.f32.gmra.mrb[0].mxu0 %v634
  %v1579 = vpop.f32.mrb[0].mxu0
  %v1580 = vadd.f32 0.0, %v1579
  %v1581 = vpop.f32.mrb[0].mxu0
  %1582 = vmatprep.mubr.f32.mxu0 0.0
  %1583 = vmatmul.mubr.f32.gmra.mrb[0].mxu0 %v637
  %v1584 = vpop.f32.mrb[0].mxu0
  %v1585 = vadd.f32 0.0, %v1584
  %v1586 = vpop.f32.mrb[0].mxu0
  %1587 = vmatprep.mubr.f32.mxu0 0.0
  %1588 = vmatmul.mubr.f32.gmra.mrb[0].mxu0 %v640
  %v1589 = vpop.f32.mrb[0].mxu0
  %v1590 = vadd.f32 0.0, %v1589
  %v1591 = vpop.f32.mrb[0].mxu0
  %1592 = vmatprep.mubr.f32.mxu0 0.0
  %1593 = vmatmul.mubr.f32.gmra.mrb[0].mxu0 %v643
  %v1594 = vpop.f32.mrb[0].mxu0
  %v1595 = vadd.f32 0.0, %v1594
  %v1596 = vpop.f32.mrb[0].mxu0
  %1597 = vmatprep.mubr.f32.mxu0 0.0
  %1598 = vmatmul.mubr.f32.gmra.mrb[0].mxu0 %v646
  %v1599 = vpop.f32.mrb[0].mxu0
  %v1600 = vadd.f32 0.0, %v1599
  %v1601 = vpop.f32.mrb[0].mxu0
  %1602 = vmatprep.mubr.f32.mxu0 0.0
  %1603 = vmatmul.mubr.f32.gmra.mrb[0].mxu0 %v649
  %v1604 = vpop.f32.mrb[0].mxu0
  %v1605 = vadd.f32 0.0, %v1604
  %v1606 = vpop.f32.mrb[0].mxu0
  %1607 = vmatprep.mubr.f32.mxu0 0.0
  %1608 = vmatmul.mubr.f32.gmra.mrb[0].mxu0 %v652
  %v1609 = vpop.f32.mrb[0].mxu0
  %v1610 = vadd.f32 0.0, %v1609
  %v1611 = vpop.f32.mrb[0].mxu0
  %1612 = vmatprep.mubr.f32.mxu0 0.0
  %1613 = vmatmul.mubr.f32.gmra.mrb[0].mxu0 %v655
  %v1614 = vpop.f32.mrb[0].mxu0
  %v1615 = vadd.f32 0.0, %v1614
  %v1616 = vpop.f32.mrb[0].mxu0
  %1617 = vmatprep.mubr.f32.mxu0 0.0
  %1618 = vmatmul.mubr.f32.gmra.mrb[0].mxu0 %v658
  %v1619 = vpop.f32.mrb[0].mxu0
  %v1620 = vadd.f32 0.0, %v1619
  %v1621 = vpop.f32.mrb[0].mxu0
  %1622 = vmatprep.mubr.f32.mxu0 0.0
  %1623 = vmatmul.mubr.f32.gmra.mrb[0].mxu0 %v661
  %v1624 = vpop.f32.mrb[0].mxu0
  %v1625 = vadd.f32 0.0, %v1624
  %v1626 = vpop.f32.mrb[0].mxu0
  %1627 = vmatprep.mubr.f32.mxu0 0.0
  %1628 = vmatmul.mubr.f32.gmra.mrb[0].mxu0 %v664
  %v1629 = vpop.f32.mrb[0].mxu0
  %v1630 = vadd.f32 0.0, %v1629
  %v1631 = vpop.f32.mrb[0].mxu0
  %1632 = vmatprep.mubr.f32.mxu0 0.0
  %1633 = vmatmul.mubr.f32.gmra.mrb[0].mxu0 %v667
  %v1634 = vpop.f32.mrb[0].mxu0
  %v1635 = vadd.f32 0.0, %v1634
  %v1636 = vpop.f32.mrb[0].mxu0
  %1637 = vmatprep.mubr.f32.mxu0 0.0
  %1638 = vmatmul.mubr.f32.gmra.mrb[0].mxu0 %v670
  %v1639 = vpop.f32.mrb[0].mxu0
  %v1640 = vadd.f32 0.0, %v1639
  %v1641 = vpop.f32.mrb[0].mxu0
  %1642 = vmatprep.mubr.f32.mxu0 0.0
  %1643 = vmatmul.mubr.f32.gmra.mrb[0].mxu0 %v673
  %v1644 = vpop.f32.mrb[0].mxu0
  %v1645 = vadd.f32 0.0, %v1644
  %v1646 = vpop.f32.mrb[0].mxu0
  %1647 = vmatprep.mubr.f32.mxu0 0.0
  %1648 = vmatmul.mubr.f32.gmra.mrb[0].mxu0 %v676
  %v1649 = vpop.f32.mrb[0].mxu0
  %v1650 = vadd.f32 0.0, %v1649
  %v1651 = vpop.f32.mrb[0].mxu0
  %1652 = vmatprep.mubr.f32.mxu0 0.0
  %1653 = vmatmul.mubr.f32.gmra.mrb[0].mxu0 %v679
  %v1654 = vpop.f32.mrb[0].mxu0
  %v1655 = vadd.f32 0.0, %v1654
  %v1656 = vpop.f32.mrb[0].mxu0
  %1657 = vmatprep.mubr.f32.mxu0 0.0
  %1658 = vmatmul.mubr.f32.gmra.mrb[0].mxu0 %v682
  %v1659 = vpop.f32.mrb[0].mxu0
  %v1660 = vadd.f32 0.0, %v1659
  %v1661 = vpop.f32.mrb[0].mxu0
  %1662 = vmatprep.mubr.f32.mxu0 0.0
  %1663 = vmatmul.mubr.f32.gmra.mrb[0].mxu0 %v685
  %v1664 = vpop.f32.mrb[0].mxu0
  %v1665 = vadd.f32 0.0, %v1664
  %v1666 = vpop.f32.mrb[0].mxu0
  %1667 = vmatprep.mubr.f32.mxu0 0.0
  %1668 = vmatmul.mubr.f32.gmra.mrb[0].mxu0 %v688
  %v1669 = vpop.f32.mrb[0].mxu0
  %v1670 = vadd.f32 0.0, %v1669
  %v1671 = vpop.f32.mrb[0].mxu0
  %1672 = vmatprep.mubr.f32.mxu0 0.0
  %1673 = vmatmul.mubr.f32.gmra.mrb[0].mxu0 %v691
  %v1674 = vpop.f32.mrb[0].mxu0
  %v1675 = vadd.f32 0.0, %v1674
  %v1676 = vpop.f32.mrb[0].mxu0
  %1677 = vmatprep.mubr.f32.mxu0 0.0
  %1678 = vmatmul.mubr.f32.gmra.mrb[0].mxu0 %v694
  %v1679 = vpop.f32.mrb[0].mxu0
  %v1680 = vadd.f32 0.0, %v1679
  %v1681 = vpop.f32.mrb[0].mxu0
  %1682 = vmatprep.mubr.f32.mxu0 0.0
  %1683 = vmatmul.mubr.f32.gmra.mrb[0].mxu0 %v697
  %v1684 = vpop.f32.mrb[0].mxu0
  %v1685 = vadd.f32 0.0, %v1684
  %v1686 = vpop.f32.mrb[0].mxu0
  %1687 = vmatprep.mubr.f32.mxu0 0.0
  %1688 = vmatmul.mubr.f32.gmra.mrb[0].mxu0 %v700
  %v1689 = vpop.f32.mrb[0].mxu0
  %v1690 = vadd.f32 0.0, %v1689
  %v1691 = vpop.f32.mrb[0].mxu0
  %1692 = vmatprep.mubr.f32.mxu0 0.0
  %1693 = vmatmul.mubr.f32.gmra.mrb[0].mxu0 %v703
  %v1694 = vpop.f32.mrb[0].mxu0
  %v1695 = vadd.f32 0.0, %v1694
  %v1696 = vpop.f32.mrb[0].mxu0
  %1697 = vmatprep.mubr.f32.mxu0 0.0
  %1698 = vmatmul.mubr.f32.gmra.mrb[0].mxu0 %v706
  %v1699 = vpop.f32.mrb[0].mxu0
  %v1700 = vadd.f32 0.0, %v1699
  %v1701 = vpop.f32.mrb[0].mxu0
  %1702 = vmatprep.mubr.f32.mxu0 0.0
  %1703 = vmatmul.mubr.f32.gmra.mrb[0].mxu0 %v709
  %v1704 = vpop.f32.mrb[0].mxu0
  %v1705 = vadd.f32 0.0, %v1704
  %v1706 = vpop.f32.mrb[0].mxu0
  %1707 = vmatprep.mubr.f32.mxu0 0.0
  %1708 = vmatmul.mubr.f32.gmra.mrb[0].mxu0 %v712
  %v1709 = vpop.f32.mrb[0].mxu0
  %v1710 = vadd.f32 0.0, %v1709
  %v1711 = vpop.f32.mrb[0].mxu0
  %1712 = vmatprep.mubr.f32.mxu0 0.0
  %1713 = vmatmul.mubr.f32.gmra.mrb[0].mxu0 %v715
  %v1714 = vpop.f32.mrb[0].mxu0
  %v1715 = vadd.f32 0.0, %v1714
  %v1716 = vpop.f32.mrb[0].mxu0
  %1717 = vmatprep.mubr.f32.mxu0 0.0
  %1718 = vmatmul.mubr.f32.gmra.mrb[0].mxu0 %v718
  %v1719 = vpop.f32.mrb[0].mxu0
  %v1720 = vadd.f32 0.0, %v1719
  %v1721 = vpop.f32.mrb[0].mxu0
  %1722 = vmatprep.mubr.f32.mxu0 0.0
  %1723 = vmatmul.mubr.f32.gmra.mrb[0].mxu0 %v721
  %v1724 = vpop.f32.mrb[0].mxu0
  %v1725 = vadd.f32 0.0, %v1724
  %v1726 = vpop.f32.mrb[0].mxu0
  %1727 = vmatprep.mubr.f32.mxu0 0.0
  %1728 = vmatmul.mubr.f32.gmra.mrb[0].mxu0 %v724
  %v1729 = vpop.f32.mrb[0].mxu0
  %v1730 = vadd.f32 0.0, %v1729
  %v1731 = vpop.f32.mrb[0].mxu0
  %1732 = vmatprep.mubr.f32.mxu0 0.0
  %1733 = vmatmul.mubr.f32.gmra.mrb[0].mxu0 %v727
  %v1734 = vpop.f32.mrb[0].mxu0
  %v1735 = vadd.f32 0.0, %v1734
  %v1736 = vpop.f32.mrb[0].mxu0
  %1737 = vmatprep.mubr.f32.mxu0 0.0
  %1738 = vmatmul.mubr.f32.gmra.mrb[0].mxu0 %v730
  %v1739 = vpop.f32.mrb[0].mxu0
  %v1740 = vadd.f32 0.0, %v1739
  %v1741 = vpop.f32.mrb[0].mxu0
  %1742 = vmatprep.mubr.f32.mxu0 0.0
  %1743 = vmatmul.mubr.f32.gmra.mrb[0].mxu0 %v733
  %v1744 = vpop.f32.mrb[0].mxu0
  %v1745 = vadd.f32 0.0, %v1744
  %v1746 = vpop.f32.mrb[0].mxu0
  %1747 = vmatprep.mubr.f32.mxu0 0.0
  %1748 = vmatmul.mubr.f32.gmra.mrb[0].mxu0 %v736
  %v1749 = vpop.f32.mrb[0].mxu0
  %v1750 = vadd.f32 0.0, %v1749
  %v1751 = vpop.f32.mrb[0].mxu0
  %1752 = vmatprep.mubr.f32.mxu0 0.0
  %1753 = vmatmul.mubr.f32.gmra.mrb[0].mxu0 %v739
  %v1754 = vpop.f32.mrb[0].mxu0
  %v1755 = vadd.f32 0.0, %v1754
  %v1756 = vpop.f32.mrb[0].mxu0
  %1757 = vmatprep.mubr.f32.mxu0 0.0
  %1758 = vmatmul.mubr.f32.gmra.mrb[0].mxu0 %v742
  %v1759 = vpop.f32.mrb[0].mxu0
  %v1760 = vadd.f32 0.0, %v1759
  %v1761 = vpop.f32.mrb[0].mxu0
  %1762 = vmatprep.mubr.f32.mxu0 0.0
  %1763 = vmatmul.mubr.f32.gmra.mrb[0].mxu0 %v745
  %v1764 = vpop.f32.mrb[0].mxu0
  %v1765 = vadd.f32 0.0, %v1764
  %v1766 = vpop.f32.mrb[0].mxu0
  %1767 = vmatprep.mubr.f32.mxu0 0.0
  %1768 = vmatmul.mubr.f32.gmra.mrb[0].mxu0 %v748
  %v1769 = vpop.f32.mrb[0].mxu0
  %v1770 = vadd.f32 0.0, %v1769
  %v1771 = vpop.f32.mrb[0].mxu0
  %1772 = vmatprep.mubr.f32.mxu0 0.0
  %1773 = vmatmul.mubr.f32.gmra.mrb[0].mxu0 %v751
  %v1774 = vpop.f32.mrb[0].mxu0
  %v1775 = vadd.f32 0.0, %v1774
  %v1776 = vpop.f32.mrb[0].mxu0
  %1777 = vmatprep.mubr.f32.mxu0 0.0
  %1778 = vmatmul.mubr.f32.gmra.mrb[0].mxu0 %v754
  %v1779 = vpop.f32.mrb[0].mxu0
  %v1780 = vadd.f32 0.0, %v1779
  %v1781 = vpop.f32.mrb[0].mxu0
  %1782 = vmatprep.mubr.f32.mxu0 0.0
  %1783 = vmatmul.mubr.f32.gmra.mrb[0].mxu0 %v757
  %v1784 = vpop.f32.mrb[0].mxu0
  %v1785 = vadd.f32 0.0, %v1784
  %v1786 = vpop.f32.mrb[0].mxu0
  %1787 = vmatprep.mubr.f32.mxu0 0.0
  %1788 = vmatmul.mubr.f32.gmra.mrb[0].mxu0 %v760
  %v1789 = vpop.f32.mrb[0].mxu0
  %v1790 = vadd.f32 0.0, %v1789
  %v1791 = vpop.f32.mrb[0].mxu0
  %1792 = vmatprep.mubr.f32.mxu0 0.0
  %1793 = vmatmul.mubr.f32.gmra.mrb[0].mxu0 %v763
  %v1794 = vpop.f32.mrb[0].mxu0
  %v1795 = vadd.f32 0.0, %v1794
  %v1796 = vpop.f32.mrb[0].mxu0
  %1797 = vmatprep.mubr.f32.mxu0 0.0
  %1798 = vmatmul.mubr.f32.gmra.mrb[0].mxu0 %v766
  %v1799 = vpop.f32.mrb[0].mxu0
  %v1800 = vadd.f32 0.0, %v1799
  %v1801 = vpop.f32.mrb[0].mxu0
  %1802 = vmatprep.mubr.f32.mxu0 0.0
  %1803 = vmatmul.mubr.f32.gmra.mrb[0].mxu0 %v769
  %v1804 = vpop.f32.mrb[0].mxu0
  %v1805 = vadd.f32 0.0, %v1804
  %v1806 = vpop.f32.mrb[0].mxu0
  %1807 = vmatprep.mubr.f32.mxu0 0.0
  %1808 = vmatmul.mubr.f32.gmra.mrb[0].mxu0 %v772
  %v1809 = vpop.f32.mrb[0].mxu0
  %v1810 = vadd.f32 0.0, %v1809
  %v1811 = vpop.f32.mrb[0].mxu0
  %1812 = vmatprep.mubr.f32.mxu0 0.0
  %1813 = vmatmul.mubr.f32.gmra.mrb[0].mxu0 %v775
  %v1814 = vpop.f32.mrb[0].mxu0
  %v1815 = vadd.f32 0.0, %v1814
  %v1816 = vpop.f32.mrb[0].mxu0
  %1817 = vmatprep.mubr.f32.mxu0 0.0
  %1818 = vmatmul.mubr.f32.gmra.mrb[0].mxu0 %v778
  %v1819 = vpop.f32.mrb[0].mxu0
  %v1820 = vadd.f32 0.0, %v1819
  %v1821 = vpop.f32.mrb[0].mxu0
  %1822 = vmatprep.mubr.f32.mxu0 0.0
  %1823 = vmatmul.mubr.f32.gmra.mrb[0].mxu0 %v781
  %v1824 = vpop.f32.mrb[0].mxu0
  %v1825 = vadd.f32 0.0, %v1824
  %v1826 = vpop.f32.mrb[0].mxu0
  %1827 = vmatprep.mubr.f32.mxu0 0.0
  %1828 = vmatmul.mubr.f32.gmra.mrb[0].mxu0 %v784
  %v1829 = vpop.f32.mrb[0].mxu0
  %v1830 = vadd.f32 0.0, %v1829
  %v1831 = vpop.f32.mrb[0].mxu0
  %1832 = vmatprep.mubr.f32.mxu0 0.0
  %1833 = vmatmul.mubr.f32.gmra.mrb[0].mxu0 %v787
  %v1834 = vpop.f32.mrb[0].mxu0
  %v1835 = vadd.f32 0.0, %v1834
  %v1836 = vpop.f32.mrb[0].mxu0
  %1837 = vmatprep.mubr.f32.mxu0 0.0
  %1838 = vmatmul.mubr.f32.gmra.mrb[0].mxu0 %v790
  %v1839 = vpop.f32.mrb[0].mxu0
  %v1840 = vadd.f32 0.0, %v1839
  %v1841 = vpop.f32.mrb[0].mxu0
  %1842 = vmatprep.mubr.f32.mxu0 0.0
  %1843 = vmatmul.mubr.f32.gmra.mrb[0].mxu0 %v793
  %v1844 = vpop.f32.mrb[0].mxu0
  %v1845 = vadd.f32 0.0, %v1844
  %v1846 = vpop.f32.mrb[0].mxu0
  %1847 = vmatprep.mubr.f32.mxu0 0.0
  %1848 = vmatmul.mubr.f32.gmra.mrb[0].mxu0 %v796
  %v1849 = vpop.f32.mrb[0].mxu0
  %v1850 = vadd.f32 0.0, %v1849
  %v1851 = vpop.f32.mrb[0].mxu0
  %1852 = vmatprep.mubr.f32.mxu0 0.0
  %1853 = vmatmul.mubr.f32.gmra.mrb[0].mxu0 %v799
  %v1854 = vpop.f32.mrb[0].mxu0
  %v1855 = vadd.f32 0.0, %v1854
  %v1856 = vpop.f32.mrb[0].mxu0
  %1857 = vmatprep.mubr.f32.mxu0 0.0
  %1858 = vmatmul.mubr.f32.gmra.mrb[0].mxu0 %v802
  %v1859 = vpop.f32.mrb[0].mxu0
  %v1860 = vadd.f32 0.0, %v1859
  %v1861 = vpop.f32.mrb[0].mxu0
  %1862 = vmatprep.mubr.f32.mxu0 0.0
  %1863 = vmatmul.mubr.f32.gmra.mrb[0].mxu0 %v805
  %v1864 = vpop.f32.mrb[0].mxu0
  %v1865 = vadd.f32 0.0, %v1864
  %v1866 = vpop.f32.mrb[0].mxu0
  %1867 = vmatprep.mubr.f32.mxu0 0.0
  %1868 = vmatmul.mubr.f32.gmra.mrb[0].mxu0 %v808
  %v1869 = vpop.f32.mrb[0].mxu0
  %v1870 = vadd.f32 0.0, %v1869
  %v1871 = vpop.f32.mrb[0].mxu0
  %1872 = vmatprep.mubr.f32.mxu0 0.0
  %1873 = vmatmul.mubr.f32.gmra.mrb[0].mxu0 %v811
  %v1874 = vpop.f32.mrb[0].mxu0
  %v1875 = vadd.f32 0.0, %v1874
  %v1876 = vpop.f32.mrb[0].mxu0
  %1877 = vmatprep.mubr.f32.mxu0 0.0
  %1878 = vmatmul.mubr.f32.gmra.mrb[0].mxu0 %v814
  %v1879 = vpop.f32.mrb[0].mxu0
  %v1880 = vadd.f32 0.0, %v1879
  %v1881 = vpop.f32.mrb[0].mxu0
  %1882 = vmatprep.mubr.f32.mxu0 0.0
  %1883 = vmatmul.mubr.f32.gmra.mrb[0].mxu0 %v817
  %v1884 = vpop.f32.mrb[0].mxu0
  %v1885 = vadd.f32 0.0, %v1884
  %v1886 = vpop.f32.mrb[0].mxu0
  %1887 = vdwg.mxu0
  %vm1888 = vcmask 48128
  %v1889 = vsel %vm1888, %v890, -inf
  %v1890 = vsel %vm1888, %v1015, -inf
  %v1891 = vmax.f32 %v1889, %v1890
  %v1892 = vsel %vm1888, %v1140, -inf
  %v1893 = vmax.f32 %v1891, %v1892
  %v1894 = vsel %vm1888, %v1265, -inf
  %v1895 = vmax.f32 %v1893, %v1894
  %v1896 = vsel %vm1888, %v895, -inf
  %v1897 = vsel %vm1888, %v1020, -inf
  %v1898 = vmax.f32 %v1896, %v1897
  %v1899 = vsel %vm1888, %v1145, -inf
  %v1900 = vmax.f32 %v1898, %v1899
  %v1901 = vsel %vm1888, %v1270, -inf
  %v1902 = vmax.f32 %v1900, %v1901
  %v1903 = vsel %vm1888, %v900, -inf
  %v1904 = vsel %vm1888, %v1025, -inf
  %v1905 = vmax.f32 %v1903, %v1904
  %v1906 = vsel %vm1888, %v1150, -inf
  %v1907 = vmax.f32 %v1905, %v1906
  %v1908 = vsel %vm1888, %v1275, -inf
  %v1909 = vmax.f32 %v1907, %v1908
  %v1910 = vsel %vm1888, %v905, -inf
  %v1911 = vsel %vm1888, %v1030, -inf
  %v1912 = vmax.f32 %v1910, %v1911
  %v1913 = vsel %vm1888, %v1155, -inf
  %v1914 = vmax.f32 %v1912, %v1913
  %v1915 = vsel %vm1888, %v1280, -inf
  %v1916 = vmax.f32 %v1914, %v1915
  %v1917 = vsel %vm1888, %v910, -inf
  %v1918 = vsel %vm1888, %v1035, -inf
  %v1919 = vmax.f32 %v1917, %v1918
  %v1920 = vsel %vm1888, %v1160, -inf
  %v1921 = vmax.f32 %v1919, %v1920
  %v1922 = vsel %vm1888, %v1285, -inf
  %v1923 = vmax.f32 %v1921, %v1922
  %v1924 = vsel %vm1888, %v915, -inf
  %v1925 = vsel %vm1888, %v1040, -inf
  %v1926 = vmax.f32 %v1924, %v1925
  %v1927 = vsel %vm1888, %v1165, -inf
  %v1928 = vmax.f32 %v1926, %v1927
  %v1929 = vsel %vm1888, %v1290, -inf
  %v1930 = vmax.f32 %v1928, %v1929
  %v1931 = vsel %vm1888, %v920, -inf
  %v1932 = vsel %vm1888, %v1045, -inf
  %v1933 = vmax.f32 %v1931, %v1932
  %v1934 = vsel %vm1888, %v1170, -inf
  %v1935 = vmax.f32 %v1933, %v1934
  %v1936 = vsel %vm1888, %v1295, -inf
  %v1937 = vmax.f32 %v1935, %v1936
  %v1938 = vsel %vm1888, %v925, -inf
  %v1939 = vsel %vm1888, %v1050, -inf
  %v1940 = vmax.f32 %v1938, %v1939
  %v1941 = vsel %vm1888, %v1175, -inf
  %v1942 = vmax.f32 %v1940, %v1941
  %v1943 = vsel %vm1888, %v1300, -inf
  %v1944 = vmax.f32 %v1942, %v1943
  %v1945 = vsel %vm1888, %v930, -inf
  %v1946 = vsel %vm1888, %v1055, -inf
  %v1947 = vmax.f32 %v1945, %v1946
  %v1948 = vsel %vm1888, %v1180, -inf
  %v1949 = vmax.f32 %v1947, %v1948
  %v1950 = vsel %vm1888, %v1305, -inf
  %v1951 = vmax.f32 %v1949, %v1950
  %v1952 = vsel %vm1888, %v935, -inf
  %v1953 = vsel %vm1888, %v1060, -inf
  %v1954 = vmax.f32 %v1952, %v1953
  %v1955 = vsel %vm1888, %v1185, -inf
  %v1956 = vmax.f32 %v1954, %v1955
  %v1957 = vsel %vm1888, %v1310, -inf
  %v1958 = vmax.f32 %v1956, %v1957
  %v1959 = vsel %vm1888, %v940, -inf
  %v1960 = vsel %vm1888, %v1065, -inf
  %v1961 = vmax.f32 %v1959, %v1960
  %v1962 = vsel %vm1888, %v1190, -inf
  %v1963 = vmax.f32 %v1961, %v1962
  %v1964 = vsel %vm1888, %v1315, -inf
  %v1965 = vmax.f32 %v1963, %v1964
  %v1966 = vsel %vm1888, %v945, -inf
  %v1967 = vsel %vm1888, %v1070, -inf
  %v1968 = vmax.f32 %v1966, %v1967
  %v1969 = vsel %vm1888, %v1195, -inf
  %v1970 = vmax.f32 %v1968, %v1969
  %v1971 = vsel %vm1888, %v1320, -inf
  %v1972 = vmax.f32 %v1970, %v1971
  %v1973 = vsel %vm1888, %v950, -inf
  %v1974 = vsel %vm1888, %v1075, -inf
  %v1975 = vmax.f32 %v1973, %v1974
  %v1976 = vsel %vm1888, %v1200, -inf
  %v1977 = vmax.f32 %v1975, %v1976
  %v1978 = vsel %vm1888, %v1325, -inf
  %v1979 = vmax.f32 %v1977, %v1978
  %v1980 = vsel %vm1888, %v955, -inf
  %v1981 = vsel %vm1888, %v1080, -inf
  %v1982 = vmax.f32 %v1980, %v1981
  %v1983 = vsel %vm1888, %v1205, -inf
  %v1984 = vmax.f32 %v1982, %v1983
  %v1985 = vsel %vm1888, %v1330, -inf
  %v1986 = vmax.f32 %v1984, %v1985
  %v1987 = vsel %vm1888, %v960, -inf
  %v1988 = vsel %vm1888, %v1085, -inf
  %v1989 = vmax.f32 %v1987, %v1988
  %v1990 = vsel %vm1888, %v1210, -inf
  %v1991 = vmax.f32 %v1989, %v1990
  %v1992 = vsel %vm1888, %v1335, -inf
  %v1993 = vmax.f32 %v1991, %v1992
  %v1994 = vsel %vm1888, %v965, -inf
  %v1995 = vsel %vm1888, %v1090, -inf
  %v1996 = vmax.f32 %v1994, %v1995
  %v1997 = vsel %vm1888, %v1215, -inf
  %v1998 = vmax.f32 %v1996, %v1997
  %v1999 = vsel %vm1888, %v1340, -inf
  %v2000 = vmax.f32 %v1998, %v1999
  %v2001 = vsel %vm1888, %v970, -inf
  %v2002 = vsel %vm1888, %v1095, -inf
  %v2003 = vmax.f32 %v2001, %v2002
  %v2004 = vsel %vm1888, %v1220, -inf
  %v2005 = vmax.f32 %v2003, %v2004
  %v2006 = vsel %vm1888, %v1345, -inf
  %v2007 = vmax.f32 %v2005, %v2006
  %v2008 = vsel %vm1888, %v975, -inf
  %v2009 = vsel %vm1888, %v1100, -inf
  %v2010 = vmax.f32 %v2008, %v2009
  %v2011 = vsel %vm1888, %v1225, -inf
  %v2012 = vmax.f32 %v2010, %v2011
  %v2013 = vsel %vm1888, %v1350, -inf
  %v2014 = vmax.f32 %v2012, %v2013
  %v2015 = vsel %vm1888, %v980, -inf
  %v2016 = vsel %vm1888, %v1105, -inf
  %v2017 = vmax.f32 %v2015, %v2016
  %v2018 = vsel %vm1888, %v1230, -inf
  %v2019 = vmax.f32 %v2017, %v2018
  %v2020 = vsel %vm1888, %v1355, -inf
  %v2021 = vmax.f32 %v2019, %v2020
  %v2022 = vsel %vm1888, %v985, -inf
  %v2023 = vsel %vm1888, %v1110, -inf
  %v2024 = vmax.f32 %v2022, %v2023
  %v2025 = vsel %vm1888, %v1235, -inf
  %v2026 = vmax.f32 %v2024, %v2025
  %v2027 = vsel %vm1888, %v1360, -inf
  %v2028 = vmax.f32 %v2026, %v2027
  %v2029 = vsel %vm1888, %v990, -inf
  %v2030 = vsel %vm1888, %v1115, -inf
  %v2031 = vmax.f32 %v2029, %v2030
  %v2032 = vsel %vm1888, %v1240, -inf
  %v2033 = vmax.f32 %v2031, %v2032
  %v2034 = vsel %vm1888, %v1365, -inf
  %v2035 = vmax.f32 %v2033, %v2034
  %v2036 = vsel %vm1888, %v995, -inf
  %v2037 = vsel %vm1888, %v1120, -inf
  %v2038 = vmax.f32 %v2036, %v2037
  %v2039 = vsel %vm1888, %v1245, -inf
  %v2040 = vmax.f32 %v2038, %v2039
  %v2041 = vsel %vm1888, %v1370, -inf
  %v2042 = vmax.f32 %v2040, %v2041
  %v2043 = vsel %vm1888, %v1000, -inf
  %v2044 = vsel %vm1888, %v1125, -inf
  %v2045 = vmax.f32 %v2043, %v2044
  %v2046 = vsel %vm1888, %v1250, -inf
  %v2047 = vmax.f32 %v2045, %v2046
  %v2048 = vsel %vm1888, %v1375, -inf
  %v2049 = vmax.f32 %v2047, %v2048
  %v2050 = vsel %vm1888, %v1005, -inf
  %v2051 = vsel %vm1888, %v1130, -inf
  %v2052 = vmax.f32 %v2050, %v2051
  %v2053 = vsel %vm1888, %v1255, -inf
  %v2054 = vmax.f32 %v2052, %v2053
  %v2055 = vsel %vm1888, %v1380, -inf
  %v2056 = vmax.f32 %v2054, %v2055
  %v2057 = vsel %vm1888, %v1010, -inf
  %v2058 = vsel %vm1888, %v1135, -inf
  %v2059 = vmax.f32 %v2057, %v2058
  %v2060 = vsel %vm1888, %v1260, -inf
  %v2061 = vmax.f32 %v2059, %v2060
  %v2062 = vsel %vm1888, %v1385, -inf
  %v2063 = vmax.f32 %v2061, %v2062
  %v2064 = vsel %vm1888, %v1390, -inf
  %v2065 = vsel %vm1888, %v1515, -inf
  %v2066 = vmax.f32 %v2064, %v2065
  %v2067 = vsel %vm1888, %v1640, -inf
  %v2068 = vmax.f32 %v2066, %v2067
  %v2069 = vsel %vm1888, %v1765, -inf
  %v2070 = vmax.f32 %v2068, %v2069
  %v2071 = vsel %vm1888, %v1395, -inf
  %v2072 = vsel %vm1888, %v1520, -inf
  %v2073 = vmax.f32 %v2071, %v2072
  %v2074 = vsel %vm1888, %v1645, -inf
  %v2075 = vmax.f32 %v2073, %v2074
  %v2076 = vsel %vm1888, %v1770, -inf
  %v2077 = vmax.f32 %v2075, %v2076
  %v2078 = vsel %vm1888, %v1400, -inf
  %v2079 = vsel %vm1888, %v1525, -inf
  %v2080 = vmax.f32 %v2078, %v2079
  %v2081 = vsel %vm1888, %v1650, -inf
  %v2082 = vmax.f32 %v2080, %v2081
  %v2083 = vsel %vm1888, %v1775, -inf
  %v2084 = vmax.f32 %v2082, %v2083
  %v2085 = vsel %vm1888, %v1405, -inf
  %v2086 = vsel %vm1888, %v1530, -inf
  %v2087 = vmax.f32 %v2085, %v2086
  %v2088 = vsel %vm1888, %v1655, -inf
  %v2089 = vmax.f32 %v2087, %v2088
  %v2090 = vsel %vm1888, %v1780, -inf
  %v2091 = vmax.f32 %v2089, %v2090
  %v2092 = vsel %vm1888, %v1410, -inf
  %v2093 = vsel %vm1888, %v1535, -inf
  %v2094 = vmax.f32 %v2092, %v2093
  %v2095 = vsel %vm1888, %v1660, -inf
  %v2096 = vmax.f32 %v2094, %v2095
  %v2097 = vsel %vm1888, %v1785, -inf
  %v2098 = vmax.f32 %v2096, %v2097
  %v2099 = vsel %vm1888, %v1415, -inf
  %v2100 = vsel %vm1888, %v1540, -inf
  %v2101 = vmax.f32 %v2099, %v2100
  %v2102 = vsel %vm1888, %v1665, -inf
  %v2103 = vmax.f32 %v2101, %v2102
  %v2104 = vsel %vm1888, %v1790, -inf
  %v2105 = vmax.f32 %v2103, %v2104
  %v2106 = vsel %vm1888, %v1420, -inf
  %v2107 = vsel %vm1888, %v1545, -inf
  %v2108 = vmax.f32 %v2106, %v2107
  %v2109 = vsel %vm1888, %v1670, -inf
  %v2110 = vmax.f32 %v2108, %v2109
  %v2111 = vsel %vm1888, %v1795, -inf
  %v2112 = vmax.f32 %v2110, %v2111
  %v2113 = vsel %vm1888, %v1425, -inf
  %v2114 = vsel %vm1888, %v1550, -inf
  %v2115 = vmax.f32 %v2113, %v2114
  %v2116 = vsel %vm1888, %v1675, -inf
  %v2117 = vmax.f32 %v2115, %v2116
  %v2118 = vsel %vm1888, %v1800, -inf
  %v2119 = vmax.f32 %v2117, %v2118
  %v2120 = vsel %vm1888, %v1430, -inf
  %v2121 = vsel %vm1888, %v1555, -inf
  %v2122 = vmax.f32 %v2120, %v2121
  %v2123 = vsel %vm1888, %v1680, -inf
  %v2124 = vmax.f32 %v2122, %v2123
  %v2125 = vsel %vm1888, %v1805, -inf
  %v2126 = vmax.f32 %v2124, %v2125
  %v2127 = vsel %vm1888, %v1435, -inf
  %v2128 = vsel %vm1888, %v1560, -inf
  %v2129 = vmax.f32 %v2127, %v2128
  %v2130 = vsel %vm1888, %v1685, -inf
  %v2131 = vmax.f32 %v2129, %v2130
  %v2132 = vsel %vm1888, %v1810, -inf
  %v2133 = vmax.f32 %v2131, %v2132
  %v2134 = vsel %vm1888, %v1440, -inf
  %v2135 = vsel %vm1888, %v1565, -inf
  %v2136 = vmax.f32 %v2134, %v2135
  %v2137 = vsel %vm1888, %v1690, -inf
  %v2138 = vmax.f32 %v2136, %v2137
  %v2139 = vsel %vm1888, %v1815, -inf
  %v2140 = vmax.f32 %v2138, %v2139
  %v2141 = vsel %vm1888, %v1445, -inf
  %v2142 = vsel %vm1888, %v1570, -inf
  %v2143 = vmax.f32 %v2141, %v2142
  %v2144 = vsel %vm1888, %v1695, -inf
  %v2145 = vmax.f32 %v2143, %v2144
  %v2146 = vsel %vm1888, %v1820, -inf
  %v2147 = vmax.f32 %v2145, %v2146
  %v2148 = vsel %vm1888, %v1450, -inf
  %v2149 = vsel %vm1888, %v1575, -inf
  %v2150 = vmax.f32 %v2148, %v2149
  %v2151 = vsel %vm1888, %v1700, -inf
  %v2152 = vmax.f32 %v2150, %v2151
  %v2153 = vsel %vm1888, %v1825, -inf
  %v2154 = vmax.f32 %v2152, %v2153
  %v2155 = vsel %vm1888, %v1455, -inf
  %v2156 = vsel %vm1888, %v1580, -inf
  %v2157 = vmax.f32 %v2155, %v2156
  %v2158 = vsel %vm1888, %v1705, -inf
  %v2159 = vmax.f32 %v2157, %v2158
  %v2160 = vsel %vm1888, %v1830, -inf
  %v2161 = vmax.f32 %v2159, %v2160
  %v2162 = vsel %vm1888, %v1460, -inf
  %v2163 = vsel %vm1888, %v1585, -inf
  %v2164 = vmax.f32 %v2162, %v2163
  %v2165 = vsel %vm1888, %v1710, -inf
  %v2166 = vmax.f32 %v2164, %v2165
  %v2167 = vsel %vm1888, %v1835, -inf
  %v2168 = vmax.f32 %v2166, %v2167
  %v2169 = vsel %vm1888, %v1465, -inf
  %v2170 = vsel %vm1888, %v1590, -inf
  %v2171 = vmax.f32 %v2169, %v2170
  %v2172 = vsel %vm1888, %v1715, -inf
  %v2173 = vmax.f32 %v2171, %v2172
  %v2174 = vsel %vm1888, %v1840, -inf
  %v2175 = vmax.f32 %v2173, %v2174
  %v2176 = vsel %vm1888, %v1470, -inf
  %v2177 = vsel %vm1888, %v1595, -inf
  %v2178 = vmax.f32 %v2176, %v2177
  %v2179 = vsel %vm1888, %v1720, -inf
  %v2180 = vmax.f32 %v2178, %v2179
  %v2181 = vsel %vm1888, %v1845, -inf
  %v2182 = vmax.f32 %v2180, %v2181
  %v2183 = vsel %vm1888, %v1475, -inf
  %v2184 = vsel %vm1888, %v1600, -inf
  %v2185 = vmax.f32 %v2183, %v2184
  %v2186 = vsel %vm1888, %v1725, -inf
  %v2187 = vmax.f32 %v2185, %v2186
  %v2188 = vsel %vm1888, %v1850, -inf
  %v2189 = vmax.f32 %v2187, %v2188
  %v2190 = vsel %vm1888, %v1480, -inf
  %v2191 = vsel %vm1888, %v1605, -inf
  %v2192 = vmax.f32 %v2190, %v2191
  %v2193 = vsel %vm1888, %v1730, -inf
  %v2194 = vmax.f32 %v2192, %v2193
  %v2195 = vsel %vm1888, %v1855, -inf
  %v2196 = vmax.f32 %v2194, %v2195
  %v2197 = vsel %vm1888, %v1485, -inf
  %v2198 = vsel %vm1888, %v1610, -inf
  %v2199 = vmax.f32 %v2197, %v2198
  %v2200 = vsel %vm1888, %v1735, -inf
  %v2201 = vmax.f32 %v2199, %v2200
  %v2202 = vsel %vm1888, %v1860, -inf
  %v2203 = vmax.f32 %v2201, %v2202
  %v2204 = vsel %vm1888, %v1490, -inf
  %v2205 = vsel %vm1888, %v1615, -inf
  %v2206 = vmax.f32 %v2204, %v2205
  %v2207 = vsel %vm1888, %v1740, -inf
  %v2208 = vmax.f32 %v2206, %v2207
  %v2209 = vsel %vm1888, %v1865, -inf
  %v2210 = vmax.f32 %v2208, %v2209
  %v2211 = vsel %vm1888, %v1495, -inf
  %v2212 = vsel %vm1888, %v1620, -inf
  %v2213 = vmax.f32 %v2211, %v2212
  %v2214 = vsel %vm1888, %v1745, -inf
  %v2215 = vmax.f32 %v2213, %v2214
  %v2216 = vsel %vm1888, %v1870, -inf
  %v2217 = vmax.f32 %v2215, %v2216
  %v2218 = vsel %vm1888, %v1500, -inf
  %v2219 = vsel %vm1888, %v1625, -inf
  %v2220 = vmax.f32 %v2218, %v2219
  %v2221 = vsel %vm1888, %v1750, -inf
  %v2222 = vmax.f32 %v2220, %v2221
  %v2223 = vsel %vm1888, %v1875, -inf
  %v2224 = vmax.f32 %v2222, %v2223
  %v2225 = vsel %vm1888, %v1505, -inf
  %v2226 = vsel %vm1888, %v1630, -inf
  %v2227 = vmax.f32 %v2225, %v2226
  %v2228 = vsel %vm1888, %v1755, -inf
  %v2229 = vmax.f32 %v2227, %v2228
  %v2230 = vsel %vm1888, %v1880, -inf
  %v2231 = vmax.f32 %v2229, %v2230
  %v2232 = vsel %vm1888, %v1510, -inf
  %v2233 = vsel %vm1888, %v1635, -inf
  %v2234 = vmax.f32 %v2232, %v2233
  %v2235 = vsel %vm1888, %v1760, -inf
  %v2236 = vmax.f32 %v2234, %v2235
  %v2237 = vsel %vm1888, %v1885, -inf
  %v2238 = vmax.f32 %v2236, %v2237
  %v2239 = vld [vmem:[%s2] sm:$0x1]
  %v2241 = vlaneseq
  %v2242 = vshrl.u32 %v2241, 7
  %v2243 = vsub.s32 0, %v2242
  %v2244 = vrot.slane %v2239, %v2243
  %v2246 = vadd.f32 %v1895, %v2244
  %v2247 = vadd.f32 %v1902, %v2244
  %v2248 = vadd.f32 %v1909, %v2244
  %v2249 = vadd.f32 %v1916, %v2244
  %v2250 = vadd.f32 %v1923, %v2244
  %v2251 = vadd.f32 %v1930, %v2244
  %v2252 = vadd.f32 %v1937, %v2244
  %v2253 = vadd.f32 %v1944, %v2244
  %v2254 = vadd.f32 %v1951, %v2244
  %v2255 = vadd.f32 %v1958, %v2244
  %v2256 = vadd.f32 %v1965, %v2244
  %v2257 = vadd.f32 %v1972, %v2244
  %v2258 = vadd.f32 %v1979, %v2244
  %v2259 = vadd.f32 %v1986, %v2244
  %v2260 = vadd.f32 %v1993, %v2244
  %v2261 = vadd.f32 %v2000, %v2244
  %v2262 = vadd.f32 %v2007, %v2244
  %v2263 = vadd.f32 %v2014, %v2244
  %v2264 = vadd.f32 %v2021, %v2244
  %v2265 = vadd.f32 %v2028, %v2244
  %v2266 = vadd.f32 %v2035, %v2244
  %v2267 = vadd.f32 %v2042, %v2244
  %v2268 = vadd.f32 %v2049, %v2244
  %v2269 = vadd.f32 %v2056, %v2244
  %v2270 = vadd.f32 %v2063, %v2244
  %v2271 = vadd.f32 %v2070, %v2244
  %v2272 = vadd.f32 %v2077, %v2244
  %v2273 = vadd.f32 %v2084, %v2244
  %v2274 = vadd.f32 %v2091, %v2244
  %v2275 = vadd.f32 %v2098, %v2244
  %v2276 = vadd.f32 %v2105, %v2244
  %v2277 = vadd.f32 %v2112, %v2244
  %v2278 = vadd.f32 %v2119, %v2244
  %v2279 = vadd.f32 %v2126, %v2244
  %v2280 = vadd.f32 %v2133, %v2244
  %v2281 = vadd.f32 %v2140, %v2244
  %v2282 = vadd.f32 %v2147, %v2244
  %v2283 = vadd.f32 %v2154, %v2244
  %v2284 = vadd.f32 %v2161, %v2244
  %v2285 = vadd.f32 %v2168, %v2244
  %v2286 = vadd.f32 %v2175, %v2244
  %v2287 = vadd.f32 %v2182, %v2244
  %v2288 = vadd.f32 %v2189, %v2244
  %v2289 = vadd.f32 %v2196, %v2244
  %v2290 = vadd.f32 %v2203, %v2244
  %v2291 = vadd.f32 %v2210, %v2244
  %v2292 = vadd.f32 %v2217, %v2244
  %v2293 = vadd.f32 %v2224, %v2244
  %v2294 = vadd.f32 %v2231, %v2244
  %v2295 = vadd.f32 %v2238, %v2244
  %v2296 = vmax.f32 %v2246, 0.0
  %v2297 = vmax.f32 %v2247, 0.0
  %v2298 = vmax.f32 %v2248, 0.0
  %v2299 = vmax.f32 %v2249, 0.0
  %v2300 = vmax.f32 %v2250, 0.0
  %v2301 = vmax.f32 %v2251, 0.0
  %v2302 = vmax.f32 %v2252, 0.0
  %v2303 = vmax.f32 %v2253, 0.0
  %v2304 = vmax.f32 %v2254, 0.0
  %v2305 = vmax.f32 %v2255, 0.0
  %v2306 = vmax.f32 %v2256, 0.0
  %v2307 = vmax.f32 %v2257, 0.0
  %v2308 = vmax.f32 %v2258, 0.0
  %v2309 = vmax.f32 %v2259, 0.0
  %v2310 = vmax.f32 %v2260, 0.0
  %v2311 = vmax.f32 %v2261, 0.0
  %v2312 = vmax.f32 %v2262, 0.0
  %v2313 = vmax.f32 %v2263, 0.0
  %v2314 = vmax.f32 %v2264, 0.0
  %v2315 = vmax.f32 %v2265, 0.0
  %v2316 = vmax.f32 %v2266, 0.0
  %v2317 = vmax.f32 %v2267, 0.0
  %v2318 = vmax.f32 %v2268, 0.0
  %v2319 = vmax.f32 %v2269, 0.0
  %v2320 = vmax.f32 %v2270, 0.0
  %v2321 = vmax.f32 %v2271, 0.0
  %v2322 = vmax.f32 %v2272, 0.0
  %v2323 = vmax.f32 %v2273, 0.0
  %v2324 = vmax.f32 %v2274, 0.0
  %v2325 = vmax.f32 %v2275, 0.0
  %v2326 = vmax.f32 %v2276, 0.0
  %v2327 = vmax.f32 %v2277, 0.0
  %v2328 = vmax.f32 %v2278, 0.0
  %v2329 = vmax.f32 %v2279, 0.0
  %v2330 = vmax.f32 %v2280, 0.0
  %v2331 = vmax.f32 %v2281, 0.0
  %v2332 = vmax.f32 %v2282, 0.0
  %v2333 = vmax.f32 %v2283, 0.0
  %v2334 = vmax.f32 %v2284, 0.0
  %v2335 = vmax.f32 %v2285, 0.0
  %v2336 = vmax.f32 %v2286, 0.0
  %v2337 = vmax.f32 %v2287, 0.0
  %v2338 = vmax.f32 %v2288, 0.0
  %v2339 = vmax.f32 %v2289, 0.0
  %v2340 = vmax.f32 %v2290, 0.0
  %v2341 = vmax.f32 %v2291, 0.0
  %v2342 = vmax.f32 %v2292, 0.0
  %v2343 = vmax.f32 %v2293, 0.0
  %v2344 = vmax.f32 %v2294, 0.0
  %v2345 = vmax.f32 %v2295, 0.0
  %2346 = vst.msk [vmem:[%s3] sm:$0xff] %vm1888, %v2296
  %2347 = vst.msk [vmem:[%s3 + $0x8] sm:$0xff] %vm1888, %v2297
  %2348 = vst.msk [vmem:[%s3 + $0x10] sm:$0xff] %vm1888, %v2298
  %2349 = vst.msk [vmem:[%s3 + $0x18] sm:$0xff] %vm1888, %v2299
  %2350 = vst.msk [vmem:[%s3 + $0x20] sm:$0xff] %vm1888, %v2300
  %2351 = vst.msk [vmem:[%s3 + $0x28] sm:$0xff] %vm1888, %v2301
  %2352 = vst.msk [vmem:[%s3 + $0x30] sm:$0xff] %vm1888, %v2302
  %2353 = vst.msk [vmem:[%s3 + $0x38] sm:$0xff] %vm1888, %v2303
  %2354 = vst.msk [vmem:[%s3 + $0x40] sm:$0xff] %vm1888, %v2304
  %2355 = vst.msk [vmem:[%s3 + $0x48] sm:$0xff] %vm1888, %v2305
  %2356 = vst.msk [vmem:[%s3 + $0x50] sm:$0xff] %vm1888, %v2306
  %2357 = vst.msk [vmem:[%s3 + $0x58] sm:$0xff] %vm1888, %v2307
  %2358 = vst.msk [vmem:[%s3 + $0x60] sm:$0xff] %vm1888, %v2308
  %2359 = vst.msk [vmem:[%s3 + $0x68] sm:$0xff] %vm1888, %v2309
  %2360 = vst.msk [vmem:[%s3 + $0x70] sm:$0xff] %vm1888, %v2310
  %2361 = vst.msk [vmem:[%s3 + $0x78] sm:$0xff] %vm1888, %v2311
  %2362 = vst.msk [vmem:[%s3 + $0x80] sm:$0xff] %vm1888, %v2312
  %2363 = vst.msk [vmem:[%s3 + $0x88] sm:$0xff] %vm1888, %v2313
  %2364 = vst.msk [vmem:[%s3 + $0x90] sm:$0xff] %vm1888, %v2314
  %2365 = vst.msk [vmem:[%s3 + $0x98] sm:$0xff] %vm1888, %v2315
  %2366 = vst.msk [vmem:[%s3 + $0xa0] sm:$0xff] %vm1888, %v2316
  %2367 = vst.msk [vmem:[%s3 + $0xa8] sm:$0xff] %vm1888, %v2317
  %2368 = vst.msk [vmem:[%s3 + $0xb0] sm:$0xff] %vm1888, %v2318
  %2369 = vst.msk [vmem:[%s3 + $0xb8] sm:$0xff] %vm1888, %v2319
  %2370 = vst.msk [vmem:[%s3 + $0xc0] sm:$0xff] %vm1888, %v2320
  %2371 = vst.msk [vmem:[%s3 + $0xc8] sm:$0xff] %vm1888, %v2321
  %2372 = vst.msk [vmem:[%s3 + $0xd0] sm:$0xff] %vm1888, %v2322
  %2373 = vst.msk [vmem:[%s3 + $0xd8] sm:$0xff] %vm1888, %v2323
  %2374 = vst.msk [vmem:[%s3 + $0xe0] sm:$0xff] %vm1888, %v2324
  %2375 = vst.msk [vmem:[%s3 + $0xe8] sm:$0xff] %vm1888, %v2325
  %2376 = vst.msk [vmem:[%s3 + $0xf0] sm:$0xff] %vm1888, %v2326
  %2377 = vst.msk [vmem:[%s3 + $0xf8] sm:$0xff] %vm1888, %v2327
  %2378 = vst.msk [vmem:[%s3 + $0x100] sm:$0xff] %vm1888, %v2328
  %2379 = vst.msk [vmem:[%s3 + $0x108] sm:$0xff] %vm1888, %v2329
  %2380 = vst.msk [vmem:[%s3 + $0x110] sm:$0xff] %vm1888, %v2330
  %2381 = vst.msk [vmem:[%s3 + $0x118] sm:$0xff] %vm1888, %v2331
  %2382 = vst.msk [vmem:[%s3 + $0x120] sm:$0xff] %vm1888, %v2332
  %2383 = vst.msk [vmem:[%s3 + $0x128] sm:$0xff] %vm1888, %v2333
  %2384 = vst.msk [vmem:[%s3 + $0x130] sm:$0xff] %vm1888, %v2334
  %2385 = vst.msk [vmem:[%s3 + $0x138] sm:$0xff] %vm1888, %v2335
  %2386 = vst.msk [vmem:[%s3 + $0x140] sm:$0xff] %vm1888, %v2336
  %2387 = vst.msk [vmem:[%s3 + $0x148] sm:$0xff] %vm1888, %v2337
  %2388 = vst.msk [vmem:[%s3 + $0x150] sm:$0xff] %vm1888, %v2338
  %2389 = vst.msk [vmem:[%s3 + $0x158] sm:$0xff] %vm1888, %v2339
  %2390 = vst.msk [vmem:[%s3 + $0x160] sm:$0xff] %vm1888, %v2340
  %2391 = vst.msk [vmem:[%s3 + $0x168] sm:$0xff] %vm1888, %v2341
  %2392 = vst.msk [vmem:[%s3 + $0x170] sm:$0xff] %vm1888, %v2342
  %2393 = vst.msk [vmem:[%s3 + $0x178] sm:$0xff] %vm1888, %v2343
  %2394 = vst.msk [vmem:[%s3 + $0x180] sm:$0xff] %vm1888, %v2344
  %2395 = vst.msk [vmem:[%s3 + $0x188] sm:$0xff] %vm1888, %v2345
  // Predicated region
  $region14: #{lenet_forward.3} parent=0 // pred_check
    _
  $region15: #{lenet_forward.3} parent=0 // pred_check_branch
    %2397 = sbr.rel (0) target = $region17
  $region16: #{lenet_forward.3} parent=0 // pred_region
    _
  $region17: #{lenet_forward.3} parent=0 // pred_fallthru
    _
  // Predicated region
  $region18: #{lenet_forward.3} parent=0 // pred_check
    _
  $region19: #{lenet_forward.3} parent=0 // pred_check_branch
    %2399 = sbr.rel (0) target = $region21
  $region20: #{lenet_forward.3} parent=0 // pred_region
    _
  $region21: #{lenet_forward.3} parent=0 // pred_fallthru
    _

// kernel: lenet_forward.4
$region0: #{lenet_forward.4}
  #allocation0 [shape = 'u32[]', space=smem, size = 0x4, offset = 0x4, fixed_abs, tag = 'smem constant byte address 0x4 - core index']
  #allocation1 [shape = 'u32[144,128]{1,0:T(1,128)}', space=vmem, size = 0x12000, scoped, tag = 'internal scratch']
  %s0 = inlined_call_operand.vmem [shape: f32[2,4,32,150], index: 0, kind: input, shape index: {}]
  %s1 = inlined_call_operand.vmem [shape: f32[150,16], index: 1, kind: input, shape index: {}]
  %s2 = inlined_call_operand.vmem [shape: f32[1,16], index: 2, kind: input, shape index: {}]
  %s3 = inlined_call_operand.vmem [shape: f32[2,32,16], index: 3, kind: output, shape index: {}]
  %s4 = sld [smem:[#allocation0]]
  $region22: #{lenet_forward.4} parent=0
    _
  %s6 = ssub.s32 1, %s4
  %s7 = scalar_select 0, %s6, %s4
  // Predicated region
  $region2: #{lenet_forward.4} parent=0 // pred_check
    _
  $region3: #{lenet_forward.4} parent=0 // pred_check_branch
    %9 = sbr.rel (0) target = $region5
  $region4: #{lenet_forward.4} parent=0 // pred_region
    _
  $region5: #{lenet_forward.4} parent=0 // pred_fallthru
    _
  // Predicated region
  $region6: #{lenet_forward.4} parent=0 // pred_check
    _
  $region7: #{lenet_forward.4} parent=0 // pred_check_branch
    %11 = sbr.rel (0) target = $region9
  $region8: #{lenet_forward.4} parent=0 // pred_region
    _
  $region9: #{lenet_forward.4} parent=0 // pred_fallthru
    _
  // Predicated region
  $region10: #{lenet_forward.4} parent=0 // pred_check
    _
  $region11: #{lenet_forward.4} parent=0 // pred_check_branch
    %13 = sbr.rel (0) target = $region13
  $region12: #{lenet_forward.4} parent=0 // pred_region
    _
  $region13: #{lenet_forward.4} parent=0 // pred_fallthru
    _
  %v14 = vld [vmem:[%s0] sm:$0xff]
  %v15 = vld [vmem:[%s0 + $0x8] sm:$0xff]
  %v16 = vld [vmem:[%s0 + $0x10] sm:$0xff]
  %v17 = vld [vmem:[%s0 + $0x18] sm:$0xff]
  %v18 = vld [vmem:[%s0 + $0x20] sm:$0xff]
  %v19 = vld [vmem:[%s0 + $0x28] sm:$0xff]
  %v20 = vld [vmem:[%s0 + $0x30] sm:$0xff]
  %v21 = vld [vmem:[%s0 + $0x38] sm:$0xff]
  %v22 = vld [vmem:[%s0 + $0x40] sm:$0xff]
  %v23 = vld [vmem:[%s0 + $0x48] sm:$0xff]
  %v24 = vld [vmem:[%s0 + $0x50] sm:$0xff]
  %v25 = vld [vmem:[%s0 + $0x58] sm:$0xff]
  %v26 = vld [vmem:[%s0 + $0x60] sm:$0xff]
  %v27 = vld [vmem:[%s0 + $0x68] sm:$0xff]
  %v28 = vld [vmem:[%s0 + $0x70] sm:$0xff]
  %v29 = vld [vmem:[%s0 + $0x78] sm:$0xff]
  %v30 = vld [vmem:[%s0 + $0x80] sm:$0xff]
  %v31 = vld [vmem:[%s0 + $0x88] sm:$0xff]
  %v32 = vld [vmem:[%s0 + $0x90] sm:$0xff]
  %v33 = vld [vmem:[%s0 + $0x98] sm:$0xff]
  %v34 = vld [vmem:[%s0 + $0xa0] sm:$0xff]
  %v35 = vld [vmem:[%s0 + $0xa8] sm:$0xff]
  %v36 = vld [vmem:[%s0 + $0xb0] sm:$0xff]
  %v37 = vld [vmem:[%s0 + $0xb8] sm:$0xff]
  %v38 = vld [vmem:[%s0 + $0xc0] sm:$0xff]
  %v39 = vld [vmem:[%s0 + $0xc8] sm:$0xff]
  %v40 = vld [vmem:[%s0 + $0xd0] sm:$0xff]
  %v41 = vld [vmem:[%s0 + $0xd8] sm:$0xff]
  %v42 = vld [vmem:[%s0 + $0xe0] sm:$0xff]
  %v43 = vld [vmem:[%s0 + $0xe8] sm:$0xff]
  %v44 = vld [vmem:[%s0 + $0xf0] sm:$0xff]
  %v45 = vld [vmem:[%s0 + $0xf8] sm:$0xff]
  %v46 = vld [vmem:[%s0 + $0x100] sm:$0xff]
  %v47 = vld [vmem:[%s0 + $0x108] sm:$0xff]
  %v48 = vld [vmem:[%s0 + $0x110] sm:$0xff]
  %v49 = vld [vmem:[%s0 + $0x118] sm:$0xff]
  %v50 = vld [vmem:[%s0 + $0x120] sm:$0xff]
  %v51 = vld [vmem:[%s0 + $0x128] sm:$0xff]
  %v52 = vld [vmem:[%s0 + $0x130] sm:$0xff]
  %v53 = vld [vmem:[%s0 + $0x138] sm:$0xff]
  %v54 = vld [vmem:[%s0 + $0x140] sm:$0xff]
  %v55 = vld [vmem:[%s0 + $0x148] sm:$0xff]
  %v56 = vld [vmem:[%s0 + $0x150] sm:$0xff]
  %v57 = vld [vmem:[%s0 + $0x158] sm:$0xff]
  %v58 = vld [vmem:[%s0 + $0x160] sm:$0xff]
  %v59 = vld [vmem:[%s0 + $0x168] sm:$0xff]
  %v60 = vld [vmem:[%s0 + $0x170] sm:$0xff]
  %v61 = vld [vmem:[%s0 + $0x178] sm:$0xff]
  %v62 = vld [vmem:[%s0 + $0x180] sm:$0xff]
  %v63 = vld [vmem:[%s0 + $0x188] sm:$0xff]
  %v64 = vld [vmem:[%s0 + $0x190] sm:$0xff]
  %v65 = vld [vmem:[%s0 + $0x198] sm:$0xff]
  %v66 = vld [vmem:[%s0 + $0x1a0] sm:$0xff]
  %v67 = vld [vmem:[%s0 + $0x1a8] sm:$0xff]
  %v68 = vld [vmem:[%s0 + $0x1b0] sm:$0xff]
  %v69 = vld [vmem:[%s0 + $0x1b8] sm:$0xff]
  %v70 = vld [vmem:[%s0 + $0x1c0] sm:$0xff]
  %v71 = vld [vmem:[%s0 + $0x1c8] sm:$0xff]
  %v72 = vld [vmem:[%s0 + $0x1d0] sm:$0xff]
  %v73 = vld [vmem:[%s0 + $0x1d8] sm:$0xff]
  %v74 = vld [vmem:[%s0 + $0x1e0] sm:$0xff]
  %v75 = vld [vmem:[%s0 + $0x1e8] sm:$0xff]
  %v76 = vld [vmem:[%s0 + $0x1f0] sm:$0xff]
  %v77 = vld [vmem:[%s0 + $0x1f8] sm:$0xff]
  %v78 = vld [vmem:[%s1] sm:$0xff]
  %v79 = vld [vmem:[%s1 + $0x8] sm:$0xff]
  %v80 = vld [vmem:[%s1 + $0x10] sm:$0xff]
  %v81 = vld [vmem:[%s1 + $0x18] sm:$0xff]
  %v82 = vld [vmem:[%s1 + $0x20] sm:$0xff]
  %v83 = vld [vmem:[%s1 + $0x28] sm:$0xff]
  %v84 = vld [vmem:[%s1 + $0x30] sm:$0xff]
  %v85 = vld [vmem:[%s1 + $0x38] sm:$0xff]
  %v86 = vld [vmem:[%s1 + $0x40] sm:$0xff]
  %v87 = vld [vmem:[%s1 + $0x48] sm:$0xff]
  %v88 = vld [vmem:[%s1 + $0x50] sm:$0xff]
  %v89 = vld [vmem:[%s1 + $0x58] sm:$0xff]
  %v90 = vld [vmem:[%s1 + $0x60] sm:$0xff]
  %v91 = vld [vmem:[%s1 + $0x68] sm:$0xff]
  %v92 = vld [vmem:[%s1 + $0x70] sm:$0xff]
  %v93 = vld [vmem:[%s1 + $0x78] sm:$0xff]
  %v94 = vld [vmem:[%s1 + $0x80] sm:$0xff]
  %v95 = vld [vmem:[%s1 + $0x88] sm:$0xff]
  %v96 = vld [vmem:[%s1 + $0x90] sm:$0x3f]
  %vm97 = vcmask 179200
  %v99 = vsel %vm97, %v15, 0
  %v102 = vsel %vm97, %v17, 0
  %v105 = vsel %vm97, %v19, 0
  %v108 = vsel %vm97, %v21, 0
  %v111 = vsel %vm97, %v23, 0
  %v114 = vsel %vm97, %v25, 0
  %v117 = vsel %vm97, %v27, 0
  %v120 = vsel %vm97, %v29, 0
  %v123 = vsel %vm97, %v31, 0
  %v126 = vsel %vm97, %v33, 0
  %v129 = vsel %vm97, %v35, 0
  %v132 = vsel %vm97, %v37, 0
  %v135 = vsel %vm97, %v39, 0
  %v138 = vsel %vm97, %v41, 0
  %v141 = vsel %vm97, %v43, 0
  %v144 = vsel %vm97, %v45, 0
  %v147 = vsel %vm97, %v47, 0
  %v150 = vsel %vm97, %v49, 0
  %v153 = vsel %vm97, %v51, 0
  %v156 = vsel %vm97, %v53, 0
  %v159 = vsel %vm97, %v55, 0
  %v162 = vsel %vm97, %v57, 0
  %v165 = vsel %vm97, %v59, 0
  %v168 = vsel %vm97, %v61, 0
  %v171 = vsel %vm97, %v63, 0
  %v174 = vsel %vm97, %v65, 0
  %v177 = vsel %vm97, %v67, 0
  %v180 = vsel %vm97, %v69, 0
  %v183 = vsel %vm97, %v71, 0
  %v186 = vsel %vm97, %v73, 0
  %v189 = vsel %vm97, %v75, 0
  %v192 = vsel %vm97, %v77, 0
  %vm194 = vcmask 1045504
  %v196 = vsel %vm194, %v96, 0
  %198 = vmatprep.subr.mxu0 0.0
  %199 = vmatpush1.msra.mxu0 %v78
  %200 = vmatprep.subr.mxu0 0.0
  %201 = vmatpush1.msra.mxu0 %v79
  %202 = vmatprep.subr.mxu0 0.0
  %203 = vmatpush1.msra.mxu0 %v80
  %204 = vmatprep.subr.mxu0 0.0
  %205 = vmatpush1.msra.mxu0 %v81
  %206 = vmatprep.subr.mxu0 0.0
  %207 = vmatpush1.msra.mxu0 %v82
  %208 = vmatprep.subr.mxu0 0.0
  %209 = vmatpush1.msra.mxu0 %v83
  %210 = vmatprep.subr.mxu0 0.0
  %211 = vmatpush1.msra.mxu0 %v84
  %212 = vmatprep.subr.mxu0 0.0
  %213 = vmatpush1.msra.mxu0 %v85
  %214 = vmatprep.subr.mxu0 0.0
  %215 = vmatpush1.msra.mxu0 %v86
  %216 = vmatprep.subr.mxu0 0.0
  %217 = vmatpush1.msra.mxu0 %v87
  %218 = vmatprep.subr.mxu0 0.0
  %219 = vmatpush1.msra.mxu0 %v88
  %220 = vmatprep.subr.mxu0 0.0
  %221 = vmatpush1.msra.mxu0 %v89
  %222 = vmatprep.subr.mxu0 0.0
  %223 = vmatpush1.msra.mxu0 %v90
  %224 = vmatprep.subr.mxu0 0.0
  %225 = vmatpush1.msra.mxu0 %v91
  %226 = vmatprep.subr.mxu0 0.0
  %227 = vmatpush1.msra.mxu0 %v92
  %228 = vmatprep.subr.mxu0 0.0
  %229 = vmatpush1.msra.mxu0 %v93
  %230 = vmatprep.subr.mxu0 0.0
  %231 = vmatpush1.msra.mxu0 %v94
  %232 = vmatprep.subr.mxu0 0.0
  %233 = vmatpush1.msra.mxu0 %v95
  %234 = vmatprep.subr.mxu0 0.0
  %235 = vmatpush1.msra.mxu0 %v196
  %236 = vmatprep.subr.mxu0 0.0
  %237 = vmatpush1.msra.mxu0 0.0
  %238 = vmatprep.subr.mxu0 0.0
  %239 = vmatpush1.msra.mxu0 0.0
  %240 = vmatprep.subr.mxu0 0.0
  %241 = vmatpush1.msra.mxu0 0.0
  %242 = vmatprep.subr.mxu0 0.0
  %243 = vmatpush1.msra.mxu0 0.0
  %244 = vmatprep.subr.mxu0 0.0
  %245 = vmatpush1.msra.mxu0 0.0
  %246 = vmatprep.subr.mxu0 0.0
  %247 = vmatpush1.msra.mxu0 0.0
  %248 = vmatprep.subr.mxu0 0.0
  %249 = vmatpush1.msra.mxu0 0.0
  %250 = vmatprep.subr.mxu0 0.0
  %251 = vmatpush1.msra.mxu0 0.0
  %252 = vmatprep.subr.mxu0 0.0
  %253 = vmatpush1.msra.mxu0 0.0
  %254 = vmatprep.subr.mxu0 0.0
  %255 = vmatpush1.msra.mxu0 0.0
  %256 = vmatprep.subr.mxu0 0.0
  %257 = vmatpush1.msra.mxu0 0.0
  %258 = vmatprep.subr.mxu0 0.0
  %259 = vmatpush1.msra.mxu0 0.0
  %260 = vmatprep.subr.mxu0 0.0
  %261 = vmatpush1.msra.mxu0 0.0
  %262 = vmatprep.mubr.f32.mxu0 %v99
  %263 = vmatmul.mubr.f32.gmra.mrb[0].mxu0 %v14
  %v264 = vpop.f32.mrb[0].mxu0
  %v265 = vadd.f32 0.0, %v264
  %v266 = vpop.f32.mrb[0].mxu0
  %267 = vmatprep.mubr.f32.mxu0 %v102
  %268 = vmatmul.mubr.f32.gmra.mrb[0].mxu0 %v16
  %v269 = vpop.f32.mrb[0].mxu0
  %v270 = vadd.f32 0.0, %v269
  %v271 = vpop.f32.mrb[0].mxu0
  %272 = vmatprep.mubr.f32.mxu0 %v105
  %273 = vmatmul.mubr.f32.gmra.mrb[0].mxu0 %v18
  %v274 = vpop.f32.mrb[0].mxu0
  %v275 = vadd.f32 0.0, %v274
  %v276 = vpop.f32.mrb[0].mxu0
  %277 = vmatprep.mubr.f32.mxu0 %v108
  %278 = vmatmul.mubr.f32.gmra.mrb[0].mxu0 %v20
  %v279 = vpop.f32.mrb[0].mxu0
  %v280 = vadd.f32 0.0, %v279
  %v281 = vpop.f32.mrb[0].mxu0
  %282 = vmatprep.mubr.f32.mxu0 %v111
  %283 = vmatmul.mubr.f32.gmra.mrb[0].mxu0 %v22
  %v284 = vpop.f32.mrb[0].mxu0
  %v285 = vadd.f32 0.0, %v284
  %v286 = vpop.f32.mrb[0].mxu0
  %287 = vmatprep.mubr.f32.mxu0 %v114
  %288 = vmatmul.mubr.f32.gmra.mrb[0].mxu0 %v24
  %v289 = vpop.f32.mrb[0].mxu0
  %v290 = vadd.f32 0.0, %v289
  %v291 = vpop.f32.mrb[0].mxu0
  %292 = vmatprep.mubr.f32.mxu0 %v117
  %293 = vmatmul.mubr.f32.gmra.mrb[0].mxu0 %v26
  %v294 = vpop.f32.mrb[0].mxu0
  %v295 = vadd.f32 0.0, %v294
  %v296 = vpop.f32.mrb[0].mxu0
  %297 = vmatprep.mubr.f32.mxu0 %v120
  %298 = vmatmul.mubr.f32.gmra.mrb[0].mxu0 %v28
  %v299 = vpop.f32.mrb[0].mxu0
  %v300 = vadd.f32 0.0, %v299
  %v301 = vpop.f32.mrb[0].mxu0
  %302 = vmatprep.mubr.f32.mxu0 %v123
  %303 = vmatmul.mubr.f32.gmra.mrb[0].mxu0 %v30
  %v304 = vpop.f32.mrb[0].mxu0
  %v305 = vadd.f32 0.0, %v304
  %v306 = vpop.f32.mrb[0].mxu0
  %307 = vmatprep.mubr.f32.mxu0 %v126
  %308 = vmatmul.mubr.f32.gmra.mrb[0].mxu0 %v32
  %v309 = vpop.f32.mrb[0].mxu0
  %v310 = vadd.f32 0.0, %v309
  %v311 = vpop.f32.mrb[0].mxu0
  %312 = vmatprep.mubr.f32.mxu0 %v129
  %313 = vmatmul.mubr.f32.gmra.mrb[0].mxu0 %v34
  %v314 = vpop.f32.mrb[0].mxu0
  %v315 = vadd.f32 0.0, %v314
  %v316 = vpop.f32.mrb[0].mxu0
  %317 = vmatprep.mubr.f32.mxu0 %v132
  %318 = vmatmul.mubr.f32.gmra.mrb[0].mxu0 %v36
  %v319 = vpop.f32.mrb[0].mxu0
  %v320 = vadd.f32 0.0, %v319
  %v321 = vpop.f32.mrb[0].mxu0
  %322 = vmatprep.mubr.f32.mxu0 %v135
  %323 = vmatmul.mubr.f32.gmra.mrb[0].mxu0 %v38
  %v324 = vpop.f32.mrb[0].mxu0
  %v325 = vadd.f32 0.0, %v324
  %v326 = vpop.f32.mrb[0].mxu0
  %327 = vmatprep.mubr.f32.mxu0 %v138
  %328 = vmatmul.mubr.f32.gmra.mrb[0].mxu0 %v40
  %v329 = vpop.f32.mrb[0].mxu0
  %v330 = vadd.f32 0.0, %v329
  %v331 = vpop.f32.mrb[0].mxu0
  %332 = vmatprep.mubr.f32.mxu0 %v141
  %333 = vmatmul.mubr.f32.gmra.mrb[0].mxu0 %v42
  %v334 = vpop.f32.mrb[0].mxu0
  %v335 = vadd.f32 0.0, %v334
  %v336 = vpop.f32.mrb[0].mxu0
  %337 = vmatprep.mubr.f32.mxu0 %v144
  %338 = vmatmul.mubr.f32.gmra.mrb[0].mxu0 %v44
  %v339 = vpop.f32.mrb[0].mxu0
  %v340 = vadd.f32 0.0, %v339
  %v341 = vpop.f32.mrb[0].mxu0
  %342 = vmatprep.mubr.f32.mxu0 %v147
  %343 = vmatmul.mubr.f32.gmra.mrb[0].mxu0 %v46
  %v344 = vpop.f32.mrb[0].mxu0
  %v345 = vadd.f32 0.0, %v344
  %v346 = vpop.f32.mrb[0].mxu0
  %347 = vmatprep.mubr.f32.mxu0 %v150
  %348 = vmatmul.mubr.f32.gmra.mrb[0].mxu0 %v48
  %v349 = vpop.f32.mrb[0].mxu0
  %v350 = vadd.f32 0.0, %v349
  %v351 = vpop.f32.mrb[0].mxu0
  %352 = vmatprep.mubr.f32.mxu0 %v153
  %353 = vmatmul.mubr.f32.gmra.mrb[0].mxu0 %v50
  %v354 = vpop.f32.mrb[0].mxu0
  %v355 = vadd.f32 0.0, %v354
  %v356 = vpop.f32.mrb[0].mxu0
  %357 = vmatprep.mubr.f32.mxu0 %v156
  %358 = vmatmul.mubr.f32.gmra.mrb[0].mxu0 %v52
  %v359 = vpop.f32.mrb[0].mxu0
  %v360 = vadd.f32 0.0, %v359
  %v361 = vpop.f32.mrb[0].mxu0
  %362 = vmatprep.mubr.f32.mxu0 %v159
  %363 = vmatmul.mubr.f32.gmra.mrb[0].mxu0 %v54
  %v364 = vpop.f32.mrb[0].mxu0
  %v365 = vadd.f32 0.0, %v364
  %v366 = vpop.f32.mrb[0].mxu0
  %367 = vmatprep.mubr.f32.mxu0 %v162
  %368 = vmatmul.mubr.f32.gmra.mrb[0].mxu0 %v56
  %v369 = vpop.f32.mrb[0].mxu0
  %v370 = vadd.f32 0.0, %v369
  %v371 = vpop.f32.mrb[0].mxu0
  %372 = vmatprep.mubr.f32.mxu0 %v165
  %373 = vmatmul.mubr.f32.gmra.mrb[0].mxu0 %v58
  %v374 = vpop.f32.mrb[0].mxu0
  %v375 = vadd.f32 0.0, %v374
  %v376 = vpop.f32.mrb[0].mxu0
  %377 = vmatprep.mubr.f32.mxu0 %v168
  %378 = vmatmul.mubr.f32.gmra.mrb[0].mxu0 %v60
  %v379 = vpop.f32.mrb[0].mxu0
  %v380 = vadd.f32 0.0, %v379
  %v381 = vpop.f32.mrb[0].mxu0
  %382 = vmatprep.mubr.f32.mxu0 %v171
  %383 = vmatmul.mubr.f32.gmra.mrb[0].mxu0 %v62
  %v384 = vpop.f32.mrb[0].mxu0
  %v385 = vadd.f32 0.0, %v384
  %v386 = vpop.f32.mrb[0].mxu0
  %387 = vmatprep.mubr.f32.mxu0 %v174
  %388 = vmatmul.mubr.f32.gmra.mrb[0].mxu0 %v64
  %v389 = vpop.f32.mrb[0].mxu0
  %v390 = vadd.f32 0.0, %v389
  %v391 = vpop.f32.mrb[0].mxu0
  %392 = vmatprep.mubr.f32.mxu0 %v177
  %393 = vmatmul.mubr.f32.gmra.mrb[0].mxu0 %v66
  %v394 = vpop.f32.mrb[0].mxu0
  %v395 = vadd.f32 0.0, %v394
  %v396 = vpop.f32.mrb[0].mxu0
  %397 = vmatprep.mubr.f32.mxu0 %v180
  %398 = vmatmul.mubr.f32.gmra.mrb[0].mxu0 %v68
  %v399 = vpop.f32.mrb[0].mxu0
  %v400 = vadd.f32 0.0, %v399
  %v401 = vpop.f32.mrb[0].mxu0
  %402 = vmatprep.mubr.f32.mxu0 %v183
  %403 = vmatmul.mubr.f32.gmra.mrb[0].mxu0 %v70
  %v404 = vpop.f32.mrb[0].mxu0
  %v405 = vadd.f32 0.0, %v404
  %v406 = vpop.f32.mrb[0].mxu0
  %407 = vmatprep.mubr.f32.mxu0 %v186
  %408 = vmatmul.mubr.f32.gmra.mrb[0].mxu0 %v72
  %v409 = vpop.f32.mrb[0].mxu0
  %v410 = vadd.f32 0.0, %v409
  %v411 = vpop.f32.mrb[0].mxu0
  %412 = vmatprep.mubr.f32.mxu0 %v189
  %413 = vmatmul.mubr.f32.gmra.mrb[0].mxu0 %v74
  %v414 = vpop.f32.mrb[0].mxu0
  %v415 = vadd.f32 0.0, %v414
  %v416 = vpop.f32.mrb[0].mxu0
  %417 = vmatprep.mubr.f32.mxu0 %v192
  %418 = vmatmul.mubr.f32.gmra.mrb[0].mxu0 %v76
  %v419 = vpop.f32.mrb[0].mxu0
  %v420 = vadd.f32 0.0, %v419
  %v421 = vpop.f32.mrb[0].mxu0
  %422 = vdwg.mxu0
  %vm423 = vcmask 130048
  %v424 = vsel %vm423, %v265, -inf
  %v425 = vsel %vm423, %v285, -inf
  %v426 = vmax.f32 %v424, %v425
  %v427 = vsel %vm423, %v305, -inf
  %v428 = vmax.f32 %v426, %v427
  %v429 = vsel %vm423, %v325, -inf
  %v430 = vmax.f32 %v428, %v429
  %v431 = vsel %vm423, %v270, -inf
  %v432 = vsel %vm423, %v290, -inf
  %v433 = vmax.f32 %v431, %v432
  %v434 = vsel %vm423, %v310, -inf
  %v435 = vmax.f32 %v433, %v434
  %v436 = vsel %vm423, %v330, -inf
  %v437 = vmax.f32 %v435, %v436
  %v438 = vsel %vm423, %v275, -inf
  %v439 = vsel %vm423, %v295, -inf
  %v440 = vmax.f32 %v438, %v439
  %v441 = vsel %vm423, %v315, -inf
  %v442 = vmax.f32 %v440, %v441
  %v443 = vsel %vm423, %v335, -inf
  %v444 = vmax.f32 %v442, %v443
  %v445 = vsel %vm423, %v280, -inf
  %v446 = vsel %vm423, %v300, -inf
  %v447 = vmax.f32 %v445, %v446
  %v448 = vsel %vm423, %v320, -inf
  %v449 = vmax.f32 %v447, %v448
  %v450 = vsel %vm423, %v340, -inf
  %v451 = vmax.f32 %v449, %v450
  %v452 = vsel %vm423, %v345, -inf
  %v453 = vsel %vm423, %v365, -inf
  %v454 = vmax.f32 %v452, %v453
  %v455 = vsel %vm423, %v385, -inf
  %v456 = vmax.f32 %v454, %v455
  %v457 = vsel %vm423, %v405, -inf
  %v458 = vmax.f32 %v456, %v457
  %v459 = vsel %vm423, %v350, -inf
  %v460 = vsel %vm423, %v370, -inf
  %v461 = vmax.f32 %v459, %v460
  %v462 = vsel %vm423, %v390, -inf
  %v463 = vmax.f32 %v461, %v462
  %v464 = vsel %vm423, %v410, -inf
  %v465 = vmax.f32 %v463, %v464
  %v466 = vsel %vm423, %v355, -inf
  %v467 = vsel %vm423, %v375, -inf
  %v468 = vmax.f32 %v466, %v467
  %v469 = vsel %vm423, %v395, -inf
  %v470 = vmax.f32 %v468, %v469
  %v471 = vsel %vm423, %v415, -inf
  %v472 = vmax.f32 %v470, %v471
  %v473 = vsel %vm423, %v360, -inf
  %v474 = vsel %vm423, %v380, -inf
  %v475 = vmax.f32 %v473, %v474
  %v476 = vsel %vm423, %v400, -inf
  %v477 = vmax.f32 %v475, %v476
  %v478 = vsel %vm423, %v420, -inf
  %v479 = vmax.f32 %v477, %v478
  %v480 = vld [vmem:[%s2] sm:$0x1]
  %v482 = vlaneseq
  %v483 = vshrl.u32 %v482, 7
  %v484 = vsub.s32 0, %v483
  %v485 = vrot.slane %v480, %v484
  %v487 = vadd.f32 %v430, %v485
  %v488 = vadd.f32 %v437, %v485
  %v489 = vadd.f32 %v444, %v485
  %v490 = vadd.f32 %v451, %v485
  %v491 = vadd.f32 %v458, %v485
  %v492 = vadd.f32 %v465, %v485
  %v493 = vadd.f32 %v472, %v485
  %v494 = vadd.f32 %v479, %v485
  %v495 = vmax.f32 %v487, 0.0
  %v496 = vmax.f32 %v488, 0.0
  %v497 = vmax.f32 %v489, 0.0
  %v498 = vmax.f32 %v490, 0.0
  %v499 = vmax.f32 %v491, 0.0
  %v500 = vmax.f32 %v492, 0.0
  %v501 = vmax.f32 %v493, 0.0
  %v502 = vmax.f32 %v494, 0.0
  %503 = vst.msk [vmem:[%s3] sm:$0xff] %vm423, %v495
  %504 = vst.msk [vmem:[%s3 + $0x8] sm:$0xff] %vm423, %v496
  %505 = vst.msk [vmem:[%s3 + $0x10] sm:$0xff] %vm423, %v497
  %506 = vst.msk [vmem:[%s3 + $0x18] sm:$0xff] %vm423, %v498
  %507 = vst.msk [vmem:[%s3 + $0x20] sm:$0xff] %vm423, %v499
  %508 = vst.msk [vmem:[%s3 + $0x28] sm:$0xff] %vm423, %v500
  %509 = vst.msk [vmem:[%s3 + $0x30] sm:$0xff] %vm423, %v501
  %510 = vst.msk [vmem:[%s3 + $0x38] sm:$0xff] %vm423, %v502
  // Predicated region
  $region14: #{lenet_forward.4} parent=0 // pred_check
    _
  $region15: #{lenet_forward.4} parent=0 // pred_check_branch
    %512 = sbr.rel (0) target = $region17
  $region16: #{lenet_forward.4} parent=0 // pred_region
    _
  $region17: #{lenet_forward.4} parent=0 // pred_fallthru
    _
  // Predicated region
  $region18: #{lenet_forward.4} parent=0 // pred_check
    _
  $region19: #{lenet_forward.4} parent=0 // pred_check_branch
    %514 = sbr.rel (0) target = $region21
  $region20: #{lenet_forward.4} parent=0 // pred_region
    _
  $region21: #{lenet_forward.4} parent=0 // pred_fallthru
    _

// kernel: lenet_forward.5
$region0: #{lenet_forward.5}
  #allocation0 [shape = 'u32[]', space=smem, size = 0x4, offset = 0x4, fixed_abs, tag = 'smem constant byte address 0x4 - core index']
  #allocation1 [shape = 'u32[144,128]{1,0:T(1,128)}', space=vmem, size = 0x12000, scoped, tag = 'internal scratch']
  %s0 = inlined_call_operand.vmem [shape: f32[2,400], index: 0, kind: input, shape index: {}]
  %s1 = inlined_call_operand.vmem [shape: f32[400,120], index: 1, kind: input, shape index: {}]
  %s2 = inlined_call_operand.vmem [shape: f32[1,120], index: 2, kind: input, shape index: {}]
  %s3 = inlined_call_operand.vmem [shape: f32[120,84], index: 3, kind: input, shape index: {}]
  %s4 = inlined_call_operand.vmem [shape: f32[1,84], index: 4, kind: input, shape index: {}]
  %s5 = inlined_call_operand.vmem [shape: f32[84,10], index: 5, kind: input, shape index: {}]
  %s6 = inlined_call_operand.vmem [shape: f32[1,10], index: 6, kind: input, shape index: {}]
  %s7 = inlined_call_operand.hbm [shape: f32[2,10], index: 7, kind: output, shape index: {}]
  %s8 = sld [smem:[#allocation0]]
  $region38: #{lenet_forward.5} parent=0
    _
  %s10 = ssub.s32 1, %s8
  %s11 = scalar_select 0, %s10, %s8
  $region1: #{lenet_forward.5} parent=0
    #allocation2 [shape = 'u8[1024]{0}', space=vmem, size = 0x400, scoped, tag = 'output window, operand 0, single buffered']
    #allocation3 [shape = 's32[1]{0}', space=sflag, size = 0x4, scoped, tag = 'scoped memory for lenet_forward.5']
    %12 = vsyncpa [#allocation3], 0
    // Predicated region
    $region2: #{lenet_forward.5} parent=1 // pred_check
      _
    $region3: #{lenet_forward.5} parent=1 // pred_check_branch
      %14 = sbr.rel (0) target = $region5
    $region4: #{lenet_forward.5} parent=1 // pred_region
      _
    $region5: #{lenet_forward.5} parent=1 // pred_fallthru
      _
    // Predicated region
    $region6: #{lenet_forward.5} parent=1 // pred_check
      _
    $region7: #{lenet_forward.5} parent=1 // pred_check_branch
      %16 = sbr.rel (0) target = $region9
    $region8: #{lenet_forward.5} parent=1 // pred_region
      _
    $region9: #{lenet_forward.5} parent=1 // pred_fallthru
      _
    // Predicated region
    $region10: #{lenet_forward.5} parent=1 // pred_check
      _
    $region11: #{lenet_forward.5} parent=1 // pred_check_branch
      %18 = sbr.rel (0) target = $region13
    $region12: #{lenet_forward.5} parent=1 // pred_region
      _
    $region13: #{lenet_forward.5} parent=1 // pred_fallthru
      _
    // Predicated region
    $region14: #{lenet_forward.5} parent=1 // pred_check
      _
    $region15: #{lenet_forward.5} parent=1 // pred_check_branch
      %20 = sbr.rel (0) target = $region17
    $region16: #{lenet_forward.5} parent=1 // pred_region
      _
    $region17: #{lenet_forward.5} parent=1 // pred_fallthru
      _
    // Predicated region
    $region18: #{lenet_forward.5} parent=1 // pred_check
      _
    $region19: #{lenet_forward.5} parent=1 // pred_check_branch
      %22 = sbr.rel (0) target = $region21
    $region20: #{lenet_forward.5} parent=1 // pred_region
      _
    $region21: #{lenet_forward.5} parent=1 // pred_fallthru
      _
    // Predicated region
    $region22: #{lenet_forward.5} parent=1 // pred_check
      _
    $region23: #{lenet_forward.5} parent=1 // pred_check_branch
      %24 = sbr.rel (0) target = $region25
    $region24: #{lenet_forward.5} parent=1 // pred_region
      _
    $region25: #{lenet_forward.5} parent=1 // pred_fallthru
      _
    // Predicated region
    $region26: #{lenet_forward.5} parent=1 // pred_check
      _
    $region27: #{lenet_forward.5} parent=1 // pred_check_branch
      %26 = sbr.rel (0) target = $region29
    $region28: #{lenet_forward.5} parent=1 // pred_region
      _
    $region29: #{lenet_forward.5} parent=1 // pred_fallthru
      _
    %v27 = vld [vmem:[%s0] sm:$0xff]
    %v28 = vld [vmem:[%s1] sm:$0xff]
    %v29 = vld [vmem:[%s1 + $0x8] sm:$0xff]
    %v30 = vld [vmem:[%s1 + $0x10] sm:$0xff]
    %v31 = vld [vmem:[%s1 + $0x18] sm:$0xff]
    %v32 = vld [vmem:[%s1 + $0x20] sm:$0xff]
    %v33 = vld [vmem:[%s1 + $0x28] sm:$0xff]
    %v34 = vld [vmem:[%s1 + $0x30] sm:$0xff]
    %v35 = vld [vmem:[%s1 + $0x38] sm:$0xff]
    %v36 = vld [vmem:[%s1 + $0x40] sm:$0xff]
    %v37 = vld [vmem:[%s1 + $0x48] sm:$0xff]
    %v38 = vld [vmem:[%s1 + $0x50] sm:$0xff]
    %v39 = vld [vmem:[%s1 + $0x58] sm:$0xff]
    %v40 = vld [vmem:[%s1 + $0x60] sm:$0xff]
    %v41 = vld [vmem:[%s1 + $0x68] sm:$0xff]
    %v42 = vld [vmem:[%s1 + $0x70] sm:$0xff]
    %v43 = vld [vmem:[%s1 + $0x78] sm:$0xff]
    %v44 = vld [vmem:[%s1 + $0x80] sm:$0xff]
    %v45 = vld [vmem:[%s1 + $0x88] sm:$0xff]
    %v46 = vld [vmem:[%s1 + $0x90] sm:$0xff]
    %v47 = vld [vmem:[%s1 + $0x98] sm:$0xff]
    %v48 = vld [vmem:[%s1 + $0xa0] sm:$0xff]
    %v49 = vld [vmem:[%s1 + $0xa8] sm:$0xff]
    %v50 = vld [vmem:[%s1 + $0xb0] sm:$0xff]
    %v51 = vld [vmem:[%s1 + $0xb8] sm:$0xff]
    %v52 = vld [vmem:[%s1 + $0xc0] sm:$0xff]
    %v53 = vld [vmem:[%s1 + $0xc8] sm:$0xff]
    %v54 = vld [vmem:[%s1 + $0xd0] sm:$0xff]
    %v55 = vld [vmem:[%s1 + $0xd8] sm:$0xff]
    %v56 = vld [vmem:[%s1 + $0xe0] sm:$0xff]
    %v57 = vld [vmem:[%s1 + $0xe8] sm:$0xff]
    %v58 = vld [vmem:[%s1 + $0xf0] sm:$0xff]
    %v59 = vld [vmem:[%s1 + $0xf8] sm:$0xff]
    %v60 = vld [vmem:[%s1 + $0x100] sm:$0xff]
    %v61 = vld [vmem:[%s1 + $0x108] sm:$0xff]
    %v62 = vld [vmem:[%s1 + $0x110] sm:$0xff]
    %v63 = vld [vmem:[%s1 + $0x118] sm:$0xff]
    %v64 = vld [vmem:[%s1 + $0x120] sm:$0xff]
    %v65 = vld [vmem:[%s1 + $0x128] sm:$0xff]
    %v66 = vld [vmem:[%s1 + $0x130] sm:$0xff]
    %v67 = vld [vmem:[%s1 + $0x138] sm:$0xff]
    %v68 = vld [vmem:[%s1 + $0x140] sm:$0xff]
    %v69 = vld [vmem:[%s1 + $0x148] sm:$0xff]
    %v70 = vld [vmem:[%s1 + $0x150] sm:$0xff]
    %v71 = vld [vmem:[%s1 + $0x158] sm:$0xff]
    %v72 = vld [vmem:[%s1 + $0x160] sm:$0xff]
    %v73 = vld [vmem:[%s1 + $0x168] sm:$0xff]
    %v74 = vld [vmem:[%s1 + $0x170] sm:$0xff]
    %v75 = vld [vmem:[%s1 + $0x178] sm:$0xff]
    %v76 = vld [vmem:[%s1 + $0x180] sm:$0xff]
    %v77 = vld [vmem:[%s1 + $0x188] sm:$0xff]
    %v78 = vld [vmem:[%s2] sm:$0x1]
    %v80 = vlaneseq
    %v81 = vshrl.u32 %v80, 7
    %v82 = vsub.s32 0, %v81
    %v83 = vrot.slane %v78, %v82
    %v86 = vcombine.high %v27, %v27
    %v88 = vunpack.c.l.s4 1983009808
    %v89 = vunpack.c.0.s8 %v88
    %v90 = vlaneseq
    %v91 = vshrl.u32 %v90, 7
    %v92 = vsub.s32 %v89, %v91
    %v93 = vrot.slane %v27, %v92
    %v95 = vunpack.c.l.s4 1983009808
    %v96 = vunpack.c.0.s8 %v95
    %v97 = vlaneseq
    %v98 = vshrl.u32 %v97, 7
    %v99 = vsub.s32 %v96, %v98
    %v100 = vrot.slane %v86, %v99
    %v101 = vcombine.high %v93, %v93
    %v102 = vcombine.high %v100, %v100
    %vm106 = vcmask 130048
    %v107 = vsel %vm106, %v102, 0
    %109 = vmatprep.subr.mxu0 0.0
    %110 = vmatpush1.msra.mxu0 %v28
    %111 = vmatprep.subr.mxu0 0.0
    %112 = vmatpush1.msra.mxu0 %v29
    %113 = vmatprep.subr.mxu0 0.0
    %114 = vmatpush1.msra.mxu0 %v30
    %115 = vmatprep.subr.mxu0 0.0
    %116 = vmatpush1.msra.mxu0 %v31
    %117 = vmatprep.subr.mxu0 0.0
    %118 = vmatpush1.msra.mxu0 %v32
    %119 = vmatprep.subr.mxu0 0.0
    %120 = vmatpush1.msra.mxu0 %v33
    %121 = vmatprep.subr.mxu0 0.0
    %122 = vmatpush1.msra.mxu0 %v34
    %123 = vmatprep.subr.mxu0 0.0
    %124 = vmatpush1.msra.mxu0 %v35
    %125 = vmatprep.subr.mxu0 0.0
    %126 = vmatpush1.msra.mxu0 %v36
    %127 = vmatprep.subr.mxu0 0.0
    %128 = vmatpush1.msra.mxu0 %v37
    %129 = vmatprep.subr.mxu0 0.0
    %130 = vmatpush1.msra.mxu0 %v38
    %131 = vmatprep.subr.mxu0 0.0
    %132 = vmatpush1.msra.mxu0 %v39
    %133 = vmatprep.subr.mxu0 0.0
    %134 = vmatpush1.msra.mxu0 %v40
    %135 = vmatprep.subr.mxu0 0.0
    %136 = vmatpush1.msra.mxu0 %v41
    %137 = vmatprep.subr.mxu0 0.0
    %138 = vmatpush1.msra.mxu0 %v42
    %139 = vmatprep.subr.mxu0 0.0
    %140 = vmatpush1.msra.mxu0 %v43
    %141 = vmatprep.subr.mxu0 0.0
    %142 = vmatpush1.msra.mxu0 %v44
    %143 = vmatprep.subr.mxu0 0.0
    %144 = vmatpush1.msra.mxu0 %v45
    %145 = vmatprep.subr.mxu0 0.0
    %146 = vmatpush1.msra.mxu0 %v46
    %147 = vmatprep.subr.mxu0 0.0
    %148 = vmatpush1.msra.mxu0 %v47
    %149 = vmatprep.subr.mxu0 0.0
    %150 = vmatpush1.msra.mxu0 %v48
    %151 = vmatprep.subr.mxu0 0.0
    %152 = vmatpush1.msra.mxu0 %v49
    %153 = vmatprep.subr.mxu0 0.0
    %154 = vmatpush1.msra.mxu0 %v50
    %155 = vmatprep.subr.mxu0 0.0
    %156 = vmatpush1.msra.mxu0 %v51
    %157 = vmatprep.subr.mxu0 0.0
    %158 = vmatpush1.msra.mxu0 %v52
    %159 = vmatprep.subr.mxu0 0.0
    %160 = vmatpush1.msra.mxu0 %v53
    %161 = vmatprep.subr.mxu0 0.0
    %162 = vmatpush1.msra.mxu0 %v54
    %163 = vmatprep.subr.mxu0 0.0
    %164 = vmatpush1.msra.mxu0 %v55
    %165 = vmatprep.subr.mxu0 0.0
    %166 = vmatpush1.msra.mxu0 %v56
    %167 = vmatprep.subr.mxu0 0.0
    %168 = vmatpush1.msra.mxu0 %v57
    %169 = vmatprep.subr.mxu0 0.0
    %170 = vmatpush1.msra.mxu0 %v58
    %171 = vmatprep.subr.mxu0 0.0
    %172 = vmatpush1.msra.mxu0 %v59
    %173 = vmatprep.mubr.f32.mxu0 %v101
    %174 = vmatmul.mubr.f32.gmra.mrb[0].mxu0 %v93
    %v175 = vpop.f32.mrb[0].mxu0
    %v176 = vadd.f32 %v83, %v175
    %v177 = vpop.f32.mrb[0].mxu0
    %178 = vdwg.mxu0
    %179 = vmatprep.subr.mxu0 0.0
    %180 = vmatpush1.msra.mxu0 %v60
    %181 = vmatprep.subr.mxu0 0.0
    %182 = vmatpush1.msra.mxu0 %v61
    %183 = vmatprep.subr.mxu0 0.0
    %184 = vmatpush1.msra.mxu0 %v62
    %185 = vmatprep.subr.mxu0 0.0
    %186 = vmatpush1.msra.mxu0 %v63
    %187 = vmatprep.subr.mxu0 0.0
    %188 = vmatpush1.msra.mxu0 %v64
    %189 = vmatprep.subr.mxu0 0.0
    %190 = vmatpush1.msra.mxu0 %v65
    %191 = vmatprep.subr.mxu0 0.0
    %192 = vmatpush1.msra.mxu0 %v66
    %193 = vmatprep.subr.mxu0 0.0
    %194 = vmatpush1.msra.mxu0 %v67
    %195 = vmatprep.subr.mxu0 0.0
    %196 = vmatpush1.msra.mxu0 %v68
    %197 = vmatprep.subr.mxu0 0.0
    %198 = vmatpush1.msra.mxu0 %v69
    %199 = vmatprep.subr.mxu0 0.0
    %200 = vmatpush1.msra.mxu0 %v70
    %201 = vmatprep.subr.mxu0 0.0
    %202 = vmatpush1.msra.mxu0 %v71
    %203 = vmatprep.subr.mxu0 0.0
    %204 = vmatpush1.msra.mxu0 %v72
    %205 = vmatprep.subr.mxu0 0.0
    %206 = vmatpush1.msra.mxu0 %v73
    %207 = vmatprep.subr.mxu0 0.0
    %208 = vmatpush1.msra.mxu0 %v74
    %209 = vmatprep.subr.mxu0 0.0
    %210 = vmatpush1.msra.mxu0 %v75
    %211 = vmatprep.subr.mxu0 0.0
    %212 = vmatpush1.msra.mxu0 %v76
    %213 = vmatprep.subr.mxu0 0.0
    %214 = vmatpush1.msra.mxu0 %v77
    %215 = vmatprep.subr.mxu0 0.0
    %216 = vmatpush1.msra.mxu0 0.0
    %217 = vmatprep.subr.mxu0 0.0
    %218 = vmatpush1.msra.mxu0 0.0
    %219 = vmatprep.subr.mxu0 0.0
    %220 = vmatpush1.msra.mxu0 0.0
    %221 = vmatprep.subr.mxu0 0.0
    %222 = vmatpush1.msra.mxu0 0.0
    %223 = vmatprep.subr.mxu0 0.0
    %224 = vmatpush1.msra.mxu0 0.0
    %225 = vmatprep.subr.mxu0 0.0
    %226 = vmatpush1.msra.mxu0 0.0
    %227 = vmatprep.subr.mxu0 0.0
    %228 = vmatpush1.msra.mxu0 0.0
    %229 = vmatprep.subr.mxu0 0.0
    %230 = vmatpush1.msra.mxu0 0.0
    %231 = vmatprep.subr.mxu0 0.0
    %232 = vmatpush1.msra.mxu0 0.0
    %233 = vmatprep.subr.mxu0 0.0
    %234 = vmatpush1.msra.mxu0 0.0
    %235 = vmatprep.subr.mxu0 0.0
    %236 = vmatpush1.msra.mxu0 0.0
    %237 = vmatprep.subr.mxu0 0.0
    %238 = vmatpush1.msra.mxu0 0.0
    %239 = vmatprep.subr.mxu0 0.0
    %240 = vmatpush1.msra.mxu0 0.0
    %241 = vmatprep.subr.mxu0 0.0
    %242 = vmatpush1.msra.mxu0 0.0
    %243 = vmatprep.mubr.f32.mxu0 %v107
    %244 = vmatmul.mubr.f32.gmra.mrb[0].mxu0 %v100
    %v245 = vpop.f32.mrb[0].mxu0
    %v246 = vadd.f32 %v176, %v245
    %v247 = vpop.f32.mrb[0].mxu0
    %248 = vdwg.mxu0
    %v249 = vmax.f32 %v246, 0.0
    %v250 = vld [vmem:[%s3] sm:$0xff]
    %v251 = vld [vmem:[%s3 + $0x8] sm:$0xff]
    %v252 = vld [vmem:[%s3 + $0x10] sm:$0xff]
    %v253 = vld [vmem:[%s3 + $0x18] sm:$0xff]
    %v254 = vld [vmem:[%s3 + $0x20] sm:$0xff]
    %v255 = vld [vmem:[%s3 + $0x28] sm:$0xff]
    %v256 = vld [vmem:[%s3 + $0x30] sm:$0xff]
    %v257 = vld [vmem:[%s3 + $0x38] sm:$0xff]
    %v258 = vld [vmem:[%s3 + $0x40] sm:$0xff]
    %v259 = vld [vmem:[%s3 + $0x48] sm:$0xff]
    %v260 = vld [vmem:[%s3 + $0x50] sm:$0xff]
    %v261 = vld [vmem:[%s3 + $0x58] sm:$0xff]
    %v262 = vld [vmem:[%s3 + $0x60] sm:$0xff]
    %v263 = vld [vmem:[%s3 + $0x68] sm:$0xff]
    %v264 = vld [vmem:[%s3 + $0x70] sm:$0xff]
    %v265 = vld [vmem:[%s4] sm:$0x1]
    %v267 = vlaneseq
    %v268 = vshrl.u32 %v267, 7
    %v269 = vsub.s32 0, %v268
    %v270 = vrot.slane %v265, %v269
    %vm272 = vcmask 982016
    %v274 = vsel %vm272, %v249, 0
    %276 = vmatprep.subr.mxu0 0.0
    %277 = vmatpush1.msra.mxu0 %v250
    %278 = vmatprep.subr.mxu0 0.0
    %279 = vmatpush1.msra.mxu0 %v251
    %280 = vmatprep.subr.mxu0 0.0
    %281 = vmatpush1.msra.mxu0 %v252
    %282 = vmatprep.subr.mxu0 0.0
    %283 = vmatpush1.msra.mxu0 %v253
    %284 = vmatprep.subr.mxu0 0.0
    %285 = vmatpush1.msra.mxu0 %v254
    %286 = vmatprep.subr.mxu0 0.0
    %287 = vmatpush1.msra.mxu0 %v255
    %288 = vmatprep.subr.mxu0 0.0
    %289 = vmatpush1.msra.mxu0 %v256
    %290 = vmatprep.subr.mxu0 0.0
    %291 = vmatpush1.msra.mxu0 %v257
    %292 = vmatprep.subr.mxu0 0.0
    %293 = vmatpush1.msra.mxu0 %v258
    %294 = vmatprep.subr.mxu0 0.0
    %295 = vmatpush1.msra.mxu0 %v259
    %296 = vmatprep.subr.mxu0 0.0
    %297 = vmatpush1.msra.mxu0 %v260
    %298 = vmatprep.subr.mxu0 0.0
    %299 = vmatpush1.msra.mxu0 %v261
    %300 = vmatprep.subr.mxu0 0.0
    %301 = vmatpush1.msra.mxu0 %v262
    %302 = vmatprep.subr.mxu0 0.0
    %303 = vmatpush1.msra.mxu0 %v263
    %304 = vmatprep.subr.mxu0 0.0
    %305 = vmatpush1.msra.mxu0 %v264
    %306 = vmatprep.subr.mxu0 0.0
    %307 = vmatpush1.msra.mxu0 0.0
    %308 = vmatprep.subr.mxu0 0.0
    %309 = vmatpush1.msra.mxu0 0.0
    %310 = vmatprep.subr.mxu0 0.0
    %311 = vmatpush1.msra.mxu0 0.0
    %312 = vmatprep.subr.mxu0 0.0
    %313 = vmatpush1.msra.mxu0 0.0
    %314 = vmatprep.subr.mxu0 0.0
    %315 = vmatpush1.msra.mxu0 0.0
    %316 = vmatprep.subr.mxu0 0.0
    %317 = vmatpush1.msra.mxu0 0.0
    %318 = vmatprep.subr.mxu0 0.0
    %319 = vmatpush1.msra.mxu0 0.0
    %320 = vmatprep.subr.mxu0 0.0
    %321 = vmatpush1.msra.mxu0 0.0
    %322 = vmatprep.subr.mxu0 0.0
    %323 = vmatpush1.msra.mxu0 0.0
    %324 = vmatprep.subr.mxu0 0.0
    %325 = vmatpush1.msra.mxu0 0.0
    %326 = vmatprep.subr.mxu0 0.0
    %327 = vmatpush1.msra.mxu0 0.0
    %328 = vmatprep.subr.mxu0 0.0
    %329 = vmatpush1.msra.mxu0 0.0
    %330 = vmatprep.subr.mxu0 0.0
    %331 = vmatpush1.msra.mxu0 0.0
    %332 = vmatprep.subr.mxu0 0.0
    %333 = vmatpush1.msra.mxu0 0.0
    %334 = vmatprep.subr.mxu0 0.0
    %335 = vmatpush1.msra.mxu0 0.0
    %336 = vmatprep.subr.mxu0 0.0
    %337 = vmatpush1.msra.mxu0 0.0
    %338 = vmatprep.subr.mxu0 0.0
    %339 = vmatpush1.msra.mxu0 0.0
    %340 = vmatprep.mubr.f32.mxu0 0.0
    %341 = vmatmul.mubr.f32.gmra.mrb[0].mxu0 %v274
    %v342 = vpop.f32.mrb[0].mxu0
    %v343 = vadd.f32 %v270, %v342
    %v344 = vpop.f32.mrb[0].mxu0
    %345 = vdwg.mxu0
    %v346 = vmax.f32 %v343, 0.0
    %v347 = vld [vmem:[%s5] sm:$0xff]
    %v348 = vld [vmem:[%s5 + $0x8] sm:$0xff]
    %v349 = vld [vmem:[%s5 + $0x10] sm:$0xff]
    %v350 = vld [vmem:[%s5 + $0x18] sm:$0xff]
    %v351 = vld [vmem:[%s5 + $0x20] sm:$0xff]
    %v352 = vld [vmem:[%s5 + $0x28] sm:$0xff]
    %v353 = vld [vmem:[%s5 + $0x30] sm:$0xff]
    %v354 = vld [vmem:[%s5 + $0x38] sm:$0xff]
    %v355 = vld [vmem:[%s5 + $0x40] sm:$0xff]
    %v356 = vld [vmem:[%s5 + $0x48] sm:$0xff]
    %v357 = vld [vmem:[%s5 + $0x50] sm:$0xf]
    %v358 = vld [vmem:[%s6] sm:$0x1]
    %v360 = vlaneseq
    %v361 = vshrl.u32 %v360, 7
    %v362 = vsub.s32 0, %v361
    %v363 = vrot.slane %v358, %v362
    %vm365 = vcmask 687104
    %v367 = vsel %vm365, %v346, 0
    %vm369 = vcmask 1043456
    %v371 = vsel %vm369, %v357, 0
    %373 = vmatprep.subr.mxu0 0.0
    %374 = vmatpush1.msra.mxu0 %v347
    %375 = vmatprep.subr.mxu0 0.0
    %376 = vmatpush1.msra.mxu0 %v348
    %377 = vmatprep.subr.mxu0 0.0
    %378 = vmatpush1.msra.mxu0 %v349
    %379 = vmatprep.subr.mxu0 0.0
    %380 = vmatpush1.msra.mxu0 %v350
    %381 = vmatprep.subr.mxu0 0.0
    %382 = vmatpush1.msra.mxu0 %v351
    %383 = vmatprep.subr.mxu0 0.0
    %384 = vmatpush1.msra.mxu0 %v352
    %385 = vmatprep.subr.mxu0 0.0
    %386 = vmatpush1.msra.mxu0 %v353
    %387 = vmatprep.subr.mxu0 0.0
    %388 = vmatpush1.msra.mxu0 %v354
    %389 = vmatprep.subr.mxu0 0.0
    %390 = vmatpush1.msra.mxu0 %v355
    %391 = vmatprep.subr.mxu0 0.0
    %392 = vmatpush1.msra.mxu0 %v356
    %393 = vmatprep.subr.mxu0 0.0
    %394 = vmatpush1.msra.mxu0 %v371
    %395 = vmatprep.subr.mxu0 0.0
    %396 = vmatpush1.msra.mxu0 0.0
    %397 = vmatprep.subr.mxu0 0.0
    %398 = vmatpush1.msra.mxu0 0.0
    %399 = vmatprep.subr.mxu0 0.0
    %400 = vmatpush1.msra.mxu0 0.0
    %401 = vmatprep.subr.mxu0 0.0
    %402 = vmatpush1.msra.mxu0 0.0
    %403 = vmatprep.subr.mxu0 0.0
    %404 = vmatpush1.msra.mxu0 0.0
    %405 = vmatprep.subr.mxu0 0.0
    %406 = vmatpush1.msra.mxu0 0.0
    %407 = vmatprep.subr.mxu0 0.0
    %408 = vmatpush1.msra.mxu0 0.0
    %409 = vmatprep.subr.mxu0 0.0
    %410 = vmatpush1.msra.mxu0 0.0
    %411 = vmatprep.subr.mxu0 0.0
    %412 = vmatpush1.msra.mxu0 0.0
    %413 = vmatprep.subr.mxu0 0.0
    %414 = vmatpush1.msra.mxu0 0.0
    %415 = vmatprep.subr.mxu0 0.0
    %416 = vmatpush1.msra.mxu0 0.0
    %417 = vmatprep.subr.mxu0 0.0
    %418 = vmatpush1.msra.mxu0 0.0
    %419 = vmatprep.subr.mxu0 0.0
    %420 = vmatpush1.msra.mxu0 0.0
    %421 = vmatprep.subr.mxu0 0.0
    %422 = vmatpush1.msra.mxu0 0.0
    %423 = vmatprep.subr.mxu0 0.0
    %424 = vmatpush1.msra.mxu0 0.0
    %425 = vmatprep.subr.mxu0 0.0
    %426 = vmatpush1.msra.mxu0 0.0
    %427 = vmatprep.subr.mxu0 0.0
    %428 = vmatpush1.msra.mxu0 0.0
    %429 = vmatprep.subr.mxu0 0.0
    %430 = vmatpush1.msra.mxu0 0.0
    %431 = vmatprep.subr.mxu0 0.0
    %432 = vmatpush1.msra.mxu0 0.0
    %433 = vmatprep.subr.mxu0 0.0
    %434 = vmatpush1.msra.mxu0 0.0
    %435 = vmatprep.subr.mxu0 0.0
    %436 = vmatpush1.msra.mxu0 0.0
    %437 = vmatprep.mubr.f32.mxu0 0.0
    %438 = vmatmul.mubr.f32.gmra.mrb[0].mxu0 %v367
    %v439 = vpop.f32.mrb[0].mxu0
    %v440 = vadd.f32 %v363, %v439
    %v441 = vpop.f32.mrb[0].mxu0
    %442 = vdwg.mxu0
    %vm443 = vcmask 74752
    %444 = vst.msk [vmem:[#allocation2] sm:$0x3] %vm443, %v440
    // Predicated region
    $region30: #{lenet_forward.5} parent=1 // pred_check
      _
    $region31: #{lenet_forward.5} parent=1 // pred_check_branch
      %446 = sbr.rel (0) target = $region33
    $region32: #{lenet_forward.5} parent=1 // pred_region
      %s448 = ssub.s32 32, 32
      %449 = vsyncadd [#allocation3], %s448
      %s451 = sshll.u32 [#allocation2], 4
      %s452 = int_to_ptr.vmem [resolvable:$true] %s451
      %454 = dma.vmem_to_hbm [thread:$0]  %s452, 32, %s7, [#allocation3]
    $region33: #{lenet_forward.5} parent=1 // pred_fallthru
      _
    // Predicated region
    $region34: #{lenet_forward.5} parent=1 // pred_check
      _
    $region35: #{lenet_forward.5} parent=1 // pred_check_branch
      %456 = sbr.rel (0) target = $region37
    $region36: #{lenet_forward.5} parent=1 // pred_region
      %457 = dma.done [#allocation3], 32
    $region37: #{lenet_forward.5} parent=1 // pred_fallthru
      _
    %458 = vsyncpa [#allocation3], 1

</llo_original>
